<compile_context>
chip_gen: v5e
topology: v5e:2x2
jax: 0.10.0
libtpu: 0.0.40
codegen_flags: <defaults>
</compile_context>

<pallas_src>
import functools

import jax
import jax.numpy as jnp
from jax.experimental import pallas as pl
from jax.experimental.pallas import tpu as pltpu


_LANE = 128
_SUBLANE = 8
_NEG_INF = -1e30  # finite "-inf" bias for padded class columns


def _round_up(x, m):
    return (x + m - 1) // m * m


def _tpu_vmem_bytes():
    """Physical per-core VMEM; conservative 64 MiB (v7x-sized) fallback."""
    try:
        return int(pltpu.get_tpu_info().vmem_capacity_bytes)
    except Exception:
        return 64 * 2 ** 20


@functools.lru_cache(maxsize=1)
def _supports_single_buffering():
    """Probe whether pl.BlockSpec(..., pipeline_mode=pl.Buffered(1)) lowers."""
    if not hasattr(pl, "Buffered"):
        return False
    try:
        def _probe(x_ref, o_ref):
            o_ref[...] = x_ref[...]

        f = pl.pallas_call(
            _probe,
            out_shape=jax.ShapeDtypeStruct((16, _LANE), jnp.float32),
            grid=(2,),
            in_specs=[pl.BlockSpec((8, _LANE), lambda i: (0, 0),
                                   pipeline_mode=pl.Buffered(1))],
            out_specs=pl.BlockSpec((8, _LANE), lambda i: (i, 0)),
        )
        jax.jit(f).lower(jax.ShapeDtypeStruct((8, _LANE), jnp.float32))
        return True
    except Exception:
        return False


def dnn_kernel(x_ref, w1_ref, b1_ref, w2_ref, b2_ref, w3_ref, b3_ref,
               o_ref, h_acc):
    k = pl.program_id(1)

    @pl.when(k == 0)
    def _():
        h_acc[...] = jnp.zeros_like(h_acc)

    # Layer 1 (encoder), K-streamed: accumulate this K slice on the MXU in f32.
    h_acc[...] += jnp.dot(x_ref[...], w1_ref[...],
                          preferred_element_type=jnp.float32)

    @pl.when(k == pl.num_programs(1) - 1)
    def _():
        h = jnp.maximum(h_acc[...] + b1_ref[...], 0.0)             # ReLU(encoder)
        h = jnp.dot(h.astype(jnp.bfloat16), w2_ref[...],           # h1
                    preferred_element_type=jnp.float32)
        h = jnp.maximum(h + b2_ref[...], 0.0)                      # ReLU
        logits = jnp.dot(h.astype(jnp.bfloat16), w3_ref[...],      # out
                         preferred_element_type=jnp.float32) + b3_ref[...]
        # log_softmax(dim=1); padded classes carry a -1e30 bias -> exp() = 0.
        m = jnp.max(logits, axis=-1, keepdims=True)
        shifted = logits - m
        lse = jnp.log(jnp.sum(jnp.exp(shifted), axis=-1, keepdims=True))
        o_ref[...] = (shifted - lse).astype(o_ref.dtype)


def _pick_batch_tile(B, vmem_phys):
    Bp = _round_up(B, _SUBLANE)
    if vmem_phys <= 64 * 2 ** 20:
        # v7x: the "parallel" batch axis shards over the 2 TensorCores;
        # keep >= 2 grid steps.  Use 256-row tiles only once there are >= 2.
        desired = 256 if Bp >= 512 else 128
    else:
        # v5e/v6e: single TC, 128 MiB VMEM; bigger M tile -> w1 re-streamed
        # fewer times per forward.
        desired = 256
    desired = max(_SUBLANE, min(desired, Bp))
    t = desired - desired % _SUBLANE
    while t > _SUBLANE and Bp % t:
        t -= _SUBLANE
    return max(t, _SUBLANE), Bp


def _plan_k_stream(D, Hp, H1p, Cp, vmem_cap, max_d_block=None):
    """Pick the K (in_dim) tile for streaming w1 so everything fits vmem_cap."""
    Dp_lane = _round_up(D, _LANE)
    max_bt = 256
    resident = ((Hp * H1p + H1p * Cp) * 2        # bf16 w2, w3 (held once)
                + (Hp + H1p + Cp) * 4            # f32 biases
                + max_bt * Hp * 4                # f32 encoder accumulator
                + 2 * max_bt * Cp * 4            # double-buffered output tile
                + max_bt * (H1p * 6 + Cp * 12))  # epilogue temporaries
    per_k = 2 * Hp * 2 + 2 * max_bt * 2          # dbl-buffered w1 + x bytes per K column
    budget = vmem_cap - resident - (4 << 20)     # headroom for Mosaic scratch
    d_block = (budget // per_k) // _LANE * _LANE if budget > 0 else _LANE
    d_block = max(_LANE, min(d_block, Dp_lane))
    if max_d_block is not None:
        d_block = max(_LANE, min(d_block, _round_up(max_d_block, _LANE)))
    # Even out the K steps so the last tile is not mostly zero padding.
    k_steps = pl.cdiv(Dp_lane, d_block)
    d_block = _round_up(pl.cdiv(Dp_lane, k_steps), _LANE)
    return d_block, d_block * k_steps, k_steps


def make_dnn_forward(w1, b1, w2, b2, w3, b3, *, max_d_block=None,
                     interpret=False):
    """One-time weight prep; returns forward(x) = log_softmax(DNN(x), axis=1).

    Weights are (in_features, out_features) (transpose of PyTorch layout).
    """
    D, H = w1.shape
    H1 = w2.shape[1]
    C = w3.shape[1]

    Hp = _round_up(H, _LANE)
    H1p = _round_up(H1, _LANE)
    Cp = _round_up(C, _LANE)

    vmem_phys = _tpu_vmem_bytes()
    # ~51 MiB on v7x (64 MiB physical), ~102 MiB on v5e/v6e (128 MiB physical).
    vmem_cap = min(int(vmem_phys * 0.8), 110 * 2 ** 20)

    d_block, Dp, k_steps = _plan_k_stream(D, Hp, H1p, Cp, vmem_cap, max_d_block)

    # ---- one-time padding + bf16 cast (NOT in the per-call hot path) ----
    w1p = jnp.zeros((Dp, Hp), jnp.bfloat16).at[:D, :H].set(w1.astype(jnp.bfloat16))
    w2p = jnp.zeros((Hp, H1p), jnp.bfloat16).at[:H, :H1].set(w2.astype(jnp.bfloat16))
    w3p = jnp.zeros((H1p, Cp), jnp.bfloat16).at[:H1, :C].set(w3.astype(jnp.bfloat16))
    b1p = jnp.zeros((1, Hp), jnp.float32).at[0, :H].set(b1.astype(jnp.float32))
    b2p = jnp.zeros((1, H1p), jnp.float32).at[0, :H1].set(b2.astype(jnp.float32))
    b3p = jnp.full((1, Cp), _NEG_INF, jnp.float32).at[0, :C].set(b3.astype(jnp.float32))
    w1p, w2p, w3p, b1p, b2p, b3p = jax.block_until_ready(
        (w1p, w2p, w3p, b1p, b2p, b3p))
    # TODO(synk): optional fp8 storage for w1 (per-output-channel scales) on
    # v7x only -- halves HBM streaming bytes for the dominant layer.

    single_buf = _supports_single_buffering()

    def _const_spec(shape):
        if single_buf:
            return pl.BlockSpec(shape, lambda i, k: (0, 0),
                                pipeline_mode=pl.Buffered(1))
        return pl.BlockSpec(shape, lambda i, k: (0, 0))

    def forward(x):
        B, Din = x.shape
        assert Din == D, f"expected {D} input features, got {Din}"
        batch_tile, Bp = _pick_batch_tile(B, vmem_phys)
        grid = (Bp // batch_tile, k_steps)

        if Bp == B and Dp == D:
            xp = x.astype(jnp.bfloat16)
        else:
            xp = jnp.zeros((Bp, Dp), jnp.bfloat16).at[:B, :D].set(
                x.astype(jnp.bfloat16))

        flops = 2 * Bp * (Dp * Hp + Hp * H1p + H1p * Cp)
        bytes_accessed = (xp.size * 2 + w2p.size * 2 + w3p.size * 2
                          + (b1p.size + b2p.size + b3p.size) * 4
                          + grid[0] * w1p.size * 2   # w1 re-streamed per batch tile
                          + Bp * Cp * 4)
        cost = pl.CostEstimate(flops=flops, transcendentals=Bp * Cp,
                               bytes_accessed=int(bytes_accessed))

        const_mult = 1 if single_buf else 2
        est = (2 * (d_block * Hp * 2 + batch_tile * d_block * 2)
               + const_mult * ((Hp * H1p + H1p * Cp) * 2 + (Hp + H1p + Cp) * 4)
               + batch_tile * Hp * 4
               + 2 * batch_tile * Cp * 4
               + batch_tile * (H1p * 6 + Cp * 12))
        vmem_limit = int(min(max(int(1.25 * est), 32 * 2 ** 20), vmem_cap))

        out_padded = pl.pallas_call(
            dnn_kernel,
            out_shape=jax.ShapeDtypeStruct((Bp, Cp), jnp.float32),
            grid_spec=pltpu.PrefetchScalarGridSpec(
                num_scalar_prefetch=0,
                grid=grid,
                in_specs=[
                    pl.BlockSpec((batch_tile, d_block), lambda i, k: (i, k)),  # x tile
                    pl.BlockSpec((d_block, Hp), lambda i, k: (k, 0)),          # w1 (K-streamed)
                    _const_spec((1, Hp)),                                      # b1
                    _const_spec((Hp, H1p)),                                    # w2 (resident)
                    _const_spec((1, H1p)),                                     # b2
                    _const_spec((H1p, Cp)),                                    # w3 (resident)
                    _const_spec((1, Cp)),                                      # b3
                ],
                out_specs=pl.BlockSpec((batch_tile, Cp), lambda i, k: (i, 0)),
                scratch_shapes=[pltpu.VMEM((batch_tile, Hp), jnp.float32)],
            ),
            compiler_params=pltpu.CompilerParams(
                dimension_semantics=("parallel", "arbitrary"),
                vmem_limit_bytes=vmem_limit,
            ),
            cost_estimate=cost,
            interpret=interpret,
        )(xp, w1p, b1p, w2p, b2p, w3p, b3p)

        # Drop padded batch rows / class columns.
        return out_padded[:B, :C]

    return forward


def kaiming_normal(key, fan_in, fan_out):
    # PyTorch kaiming_normal_ default: std = sqrt(2 / fan_in).  Built directly
    # as the (in, out) transpose of PyTorch's (out, in) layout.
    std = (2.0 / fan_in) ** 0.5
    return jax.random.normal(key, (fan_in, fan_out), dtype=jnp.float32) * std


def _reference(x, w1, b1, w2, b2, w3, b3):
    h = jnp.dot(x.astype(jnp.bfloat16), w1.astype(jnp.bfloat16),
                preferred_element_type=jnp.float32)
    h = jnp.maximum(h + b1, 0.0)
    h = jnp.dot(h.astype(jnp.bfloat16), w2.astype(jnp.bfloat16),
                preferred_element_type=jnp.float32)
    h = jnp.maximum(h + b2, 0.0)
    logits = jnp.dot(h.astype(jnp.bfloat16), w3.astype(jnp.bfloat16),
                     preferred_element_type=jnp.float32) + b3
    return jax.nn.log_softmax(logits, axis=1)


if __name__ == "__main__":
    # Small stand-in for DNN(in_dim=52470, hidden_dim=5000, output_dim):
    #   encoder: IN -> HIDDEN, h1: HIDDEN -> 1000, out: 1000 -> CLASSES, then
    #   log_softmax(dim=1).  max_d_block=256 forces the K-streamed encoder path
    #   (2 K-steps) so the accumulator/epilogue logic is exercised at toy size.
    B, IN_DIM, HIDDEN_DIM, H1_DIM, OUT_DIM = 256, 512, 256, 1000, 10

    key = jax.random.PRNGKey(0)
    keys = jax.random.split(key, 7)

    x = jax.random.normal(keys[0], (B, IN_DIM), dtype=jnp.float32)
    w1 = kaiming_normal(keys[1], IN_DIM, HIDDEN_DIM)
    b1 = jax.random.normal(keys[2], (HIDDEN_DIM,), dtype=jnp.float32) * 0.01
    w2 = kaiming_normal(keys[3], HIDDEN_DIM, H1_DIM)
    b2 = jax.random.normal(keys[4], (H1_DIM,), dtype=jnp.float32) * 0.01
    w3 = kaiming_normal(keys[5], H1_DIM, OUT_DIM)
    b3 = jax.random.normal(keys[6], (OUT_DIM,), dtype=jnp.float32) * 0.01

    # Weight prep (pad + bf16 cast) happens once here, outside the hot path.
    forward = jax.jit(make_dnn_forward(w1, b1, w2, b2, w3, b3, max_d_block=256))

    out = jax.block_until_ready(forward(x))
    ref = _reference(x, w1, b1, w2, b2, w3, b3)
    assert out.shape == (B, OUT_DIM)
    err = float(jnp.max(jnp.abs(out - ref)))
    assert jnp.allclose(out, ref, atol=3e-2, rtol=3e-2), (
        "mismatch vs reference (B=%d), max abs err = %f" % (B, err))

    # Second batch size (not a multiple of 128): exercises the minimal-padding
    # batch-tile selection (no garbage rows through the MXU / log-softmax).
    x2 = jax.random.normal(jax.random.PRNGKey(1), (40, IN_DIM), dtype=jnp.float32)
    out2 = jax.block_until_ready(forward(x2))
    ref2 = _reference(x2, w1, b1, w2, b2, w3, b3)
    assert out2.shape == (40, OUT_DIM)
    err2 = float(jnp.max(jnp.abs(out2 - ref2)))
    assert jnp.allclose(out2, ref2, atol=3e-2, rtol=3e-2), (
        "mismatch vs reference (B=40), max abs err = %f" % err2)

    print("KERNEL_OK")
</pallas_src>

<mosaic_0001>
module attributes {stable_mosaic.version = 11 : i64} {
  func.func @dnn_kernel(%arg0: i32, %arg1: i32, %arg2: memref<128x256xbf16, #tpu.memory_space<vmem>>, %arg3: memref<256x256xbf16, #tpu.memory_space<vmem>>, %arg4: memref<1x256xf32, #tpu.memory_space<vmem>>, %arg5: memref<256x1024xbf16, #tpu.memory_space<vmem>>, %arg6: memref<1x1024xf32, #tpu.memory_space<vmem>>, %arg7: memref<1024x128xbf16, #tpu.memory_space<vmem>>, %arg8: memref<1x128xf32, #tpu.memory_space<vmem>>, %arg9: memref<128x128xf32, #tpu.memory_space<vmem>>, %arg10: memref<128x256xf32, #tpu.memory_space<vmem>>) attributes {dimension_semantics = [#tpu.dimension_semantics<parallel>, #tpu.dimension_semantics<arbitrary>], iteration_bounds = array<i64: 2, 2>, scalar_prefetch = 0 : i64, scratch_operands = 1 : i64, tpu.core_type = #tpu.core_type<tc>, window_params = [{transform_indices = @transform_0, window_bounds = array<i64: 128, 256>}, {transform_indices = @transform_1, window_bounds = array<i64: 256, 256>}, {pipeline_mode = #tpu.pipeline_mode<synchronous>, transform_indices = @transform_2, window_bounds = array<i64: 1, 256>}, {pipeline_mode = #tpu.pipeline_mode<synchronous>, transform_indices = @transform_3, window_bounds = array<i64: 256, 1024>}, {pipeline_mode = #tpu.pipeline_mode<synchronous>, transform_indices = @transform_4, window_bounds = array<i64: 1, 1024>}, {pipeline_mode = #tpu.pipeline_mode<synchronous>, transform_indices = @transform_5, window_bounds = array<i64: 1024, 128>}, {pipeline_mode = #tpu.pipeline_mode<synchronous>, transform_indices = @transform_6, window_bounds = array<i64: 1, 128>}, {transform_indices = @transform_7, window_bounds = array<i64: 128, 128>}]} {
    %c0_i32 = arith.constant 0 : i32
    %0 = arith.cmpi eq, %arg1, %c0_i32 : i32
    %1 = arith.extui %0 : i1 to i32
    %c0_i32_0 = arith.constant 0 : i32
    %2 = arith.cmpi ne, %1, %c0_i32_0 : i32
    scf.if %2 {
      %cst_9 = arith.constant 0.000000e+00 : f32
      %12 = vector.broadcast %cst_9 : f32 to vector<128x256xf32>
      %c0_10 = arith.constant 0 : index
      %c0_11 = arith.constant 0 : index
      %13 = vector.load %arg10[%c0_10, %c0_11] : memref<128x256xf32, #tpu.memory_space<vmem>>, vector<128x256xf32>
      tpu.vector_store %arg10[%c0_10, %c0_11], %12 {strides = array<i32>} : memref<128x256xf32, #tpu.memory_space<vmem>>, vector<128x256xf32>,
    } else {
    }
    %c0 = arith.constant 0 : index
    %c0_1 = arith.constant 0 : index
    %3 = vector.load %arg10[%c0, %c0_1] : memref<128x256xf32, #tpu.memory_space<vmem>>, vector<128x256xf32>
    %c0_2 = arith.constant 0 : index
    %c0_3 = arith.constant 0 : index
    %4 = vector.load %arg2[%c0_2, %c0_3] : memref<128x256xbf16, #tpu.memory_space<vmem>>, vector<128x256xbf16>
    %c0_4 = arith.constant 0 : index
    %c0_5 = arith.constant 0 : index
    %5 = vector.load %arg3[%c0_4, %c0_5] : memref<256x256xbf16, #tpu.memory_space<vmem>>, vector<256x256xbf16>
    %cst = arith.constant dense<0.000000e+00> : vector<128x256xf32>
    %6 = tpu.matmul %4, %5, %cst {dimension_numbers = #tpu.dot_dimension_numbers<[1], [0], [0], [1], [0, 0, 1, 1], [], []>} : vector<128x256xbf16>, vector<256x256xbf16>, vector<128x256xf32> -> vector<128x256xf32>
    %7 = arith.addf %3, %6 : vector<128x256xf32>
    %c0_6 = arith.constant 0 : index
    %c0_7 = arith.constant 0 : index
    %8 = vector.load %arg10[%c0_6, %c0_7] : memref<128x256xf32, #tpu.memory_space<vmem>>, vector<128x256xf32>
    tpu.vector_store %arg10[%c0_6, %c0_7], %7 {strides = array<i32>} : memref<128x256xf32, #tpu.memory_space<vmem>>, vector<128x256xf32>,
    %c1_i32 = arith.constant 1 : i32
    %9 = arith.cmpi eq, %arg1, %c1_i32 : i32
    %10 = arith.extui %9 : i1 to i32
    %c0_i32_8 = arith.constant 0 : i32
    %11 = arith.cmpi ne, %10, %c0_i32_8 : i32
    scf.if %11 {
      %c0_9 = arith.constant 0 : index
      %c0_10 = arith.constant 0 : index
      %12 = vector.load %arg10[%c0_9, %c0_10] : memref<128x256xf32, #tpu.memory_space<vmem>>, vector<128x256xf32>
      %c0_11 = arith.constant 0 : index
      %c0_12 = arith.constant 0 : index
      %13 = vector.load %arg4[%c0_11, %c0_12] : memref<1x256xf32, #tpu.memory_space<vmem>>, vector<1x256xf32>
      %14 = vector.broadcast %13 : vector<1x256xf32> to vector<128x256xf32>
      %15 = arith.addf %12, %14 : vector<128x256xf32>
      %cst_13 = arith.constant 0.000000e+00 : f32
      %16 = vector.broadcast %cst_13 : f32 to vector<128x256xf32>
      %17 = arith.maximumf %15, %16 : vector<128x256xf32>
      %18 = arith.truncf %17 : vector<128x256xf32> to vector<128x256xbf16>
      %c0_14 = arith.constant 0 : index
      %c0_15 = arith.constant 0 : index
      %19 = vector.load %arg5[%c0_14, %c0_15] : memref<256x1024xbf16, #tpu.memory_space<vmem>>, vector<256x1024xbf16>
      %cst_16 = arith.constant dense<0.000000e+00> : vector<128x1024xf32>
      %20 = tpu.matmul %18, %19, %cst_16 {dimension_numbers = #tpu.dot_dimension_numbers<[1], [0], [0], [1], [0, 0, 1, 1], [], []>} : vector<128x256xbf16>, vector<256x1024xbf16>, vector<128x1024xf32> -> vector<128x1024xf32>
      %c0_17 = arith.constant 0 : index
      %c0_18 = arith.constant 0 : index
      %21 = vector.load %arg6[%c0_17, %c0_18] : memref<1x1024xf32, #tpu.memory_space<vmem>>, vector<1x1024xf32>
      %22 = vector.broadcast %21 : vector<1x1024xf32> to vector<128x1024xf32>
      %23 = arith.addf %20, %22 : vector<128x1024xf32>
      %cst_19 = arith.constant 0.000000e+00 : f32
      %24 = vector.broadcast %cst_19 : f32 to vector<128x1024xf32>
      %25 = arith.maximumf %23, %24 : vector<128x1024xf32>
      %26 = arith.truncf %25 : vector<128x1024xf32> to vector<128x1024xbf16>
      %c0_20 = arith.constant 0 : index
      %c0_21 = arith.constant 0 : index
      %27 = vector.load %arg7[%c0_20, %c0_21] : memref<1024x128xbf16, #tpu.memory_space<vmem>>, vector<1024x128xbf16>
      %cst_22 = arith.constant dense<0.000000e+00> : vector<128x128xf32>
      %28 = tpu.matmul %26, %27, %cst_22 {dimension_numbers = #tpu.dot_dimension_numbers<[1], [0], [0], [1], [0, 0, 1, 1], [], []>} : vector<128x1024xbf16>, vector<1024x128xbf16>, vector<128x128xf32> -> vector<128x128xf32>
      %c0_23 = arith.constant 0 : index
      %c0_24 = arith.constant 0 : index
      %29 = vector.load %arg8[%c0_23, %c0_24] : memref<1x128xf32, #tpu.memory_space<vmem>>, vector<1x128xf32>
      %30 = vector.broadcast %29 : vector<1x128xf32> to vector<128x128xf32>
      %31 = arith.addf %28, %30 : vector<128x128xf32>
      %cst_25 = arith.constant dense<0xFF800000> : vector<128xf32>
      %32 = vector.multi_reduction <maximumf>, %31, %cst_25 [1] : vector<128x128xf32> to vector<128xf32>
      %33 = vector.shape_cast %32 : vector<128xf32> to vector<128x1xf32>
      %34 = vector.broadcast %33 : vector<128x1xf32> to vector<128x128xf32>
      %35 = arith.subf %31, %34 : vector<128x128xf32>
      %36 = math.exp %35 : vector<128x128xf32>
      %cst_26 = arith.constant dense<0.000000e+00> : vector<128xf32>
      %37 = vector.multi_reduction <add>, %36, %cst_26 [1] : vector<128x128xf32> to vector<128xf32>
      %38 = vector.shape_cast %37 : vector<128xf32> to vector<128x1xf32>
      %39 = math.log %38 : vector<128x1xf32>
      %40 = vector.broadcast %39 : vector<128x1xf32> to vector<128x128xf32>
      %41 = arith.subf %35, %40 : vector<128x128xf32>
      %c0_27 = arith.constant 0 : index
      %c0_28 = arith.constant 0 : index
      %42 = vector.load %arg9[%c0_27, %c0_28] : memref<128x128xf32, #tpu.memory_space<vmem>>, vector<128x128xf32>
      tpu.vector_store %arg9[%c0_27, %c0_28], %41 {strides = array<i32>} : memref<128x128xf32, #tpu.memory_space<vmem>>, vector<128x128xf32>,
    } else {
    }
    return
  }
  func.func @transform_0(%arg0: i32, %arg1: i32) -> (i32, i32) {
    %c0_i32 = arith.constant 0 : i32
    return %arg0, %arg1 : i32, i32
  }
  func.func @transform_1(%arg0: i32, %arg1: i32) -> (i32, i32) {
    %c0_i32 = arith.constant 0 : i32
    %c0_i32_0 = arith.constant 0 : i32
    return %arg1, %c0_i32 : i32, i32
  }
  func.func @transform_2(%arg0: i32, %arg1: i32) -> (i32, i32) {
    %c0_i32 = arith.constant 0 : i32
    %c0_i32_0 = arith.constant 0 : i32
    %c0_i32_1 = arith.constant 0 : i32
    return %c0_i32, %c0_i32_0 : i32, i32
  }
  func.func @transform_3(%arg0: i32, %arg1: i32) -> (i32, i32) {
    %c0_i32 = arith.constant 0 : i32
    %c0_i32_0 = arith.constant 0 : i32
    %c0_i32_1 = arith.constant 0 : i32
    return %c0_i32, %c0_i32_0 : i32, i32
  }
  func.func @transform_4(%arg0: i32, %arg1: i32) -> (i32, i32) {
    %c0_i32 = arith.constant 0 : i32
    %c0_i32_0 = arith.constant 0 : i32
    %c0_i32_1 = arith.constant 0 : i32
    return %c0_i32, %c0_i32_0 : i32, i32
  }
  func.func @transform_5(%arg0: i32, %arg1: i32) -> (i32, i32) {
    %c0_i32 = arith.constant 0 : i32
    %c0_i32_0 = arith.constant 0 : i32
    %c0_i32_1 = arith.constant 0 : i32
    return %c0_i32, %c0_i32_0 : i32, i32
  }
  func.func @transform_6(%arg0: i32, %arg1: i32) -> (i32, i32) {
    %c0_i32 = arith.constant 0 : i32
    %c0_i32_0 = arith.constant 0 : i32
    %c0_i32_1 = arith.constant 0 : i32
    return %c0_i32, %c0_i32_0 : i32, i32
  }
  func.func @transform_7(%arg0: i32, %arg1: i32) -> (i32, i32) {
    %c0_i32 = arith.constant 0 : i32
    %c0_i32_0 = arith.constant 0 : i32
    return %arg0, %c0_i32 : i32, i32
  }
}

</mosaic_0001>

<llo_original>
// kernel: forward.1
$region0: #{forward.1}
  #allocation0 [shape = 'u32[]', space=smem, size = 0x4, offset = 0x4, fixed_abs, tag = 'smem constant byte address 0x4 - core index']
  #allocation1 [shape = 'u32[72,128]{1,0:T(1,128)}', space=vmem, size = 0x9000, scoped, tag = 'internal scratch']
  #allocation2 [shape = 'f32[128,256]{1,0:T(8,128)}', space=vmem, size = 0x20000, scoped, tag = 'scratch operand']
  %s0 = inlined_call_operand.vmem [shape: bf16[256,512], index: 0, kind: input, shape index: {}]
  %s1 = inlined_call_operand.hbm [shape: bf16[512,256], index: 1, kind: input, shape index: {}]
  %s2 = inlined_call_operand.vmem [shape: f32[1,256], index: 2, kind: input, shape index: {}]
  %s3 = inlined_call_operand.vmem [shape: bf16[256,1024], index: 3, kind: input, shape index: {}]
  %s4 = inlined_call_operand.hbm [shape: f32[1,1024], index: 4, kind: input, shape index: {}]
  %s5 = inlined_call_operand.vmem [shape: bf16[1024,128], index: 5, kind: input, shape index: {}]
  %s6 = inlined_call_operand.hbm [shape: f32[1,128], index: 6, kind: input, shape index: {}]
  %s7 = inlined_call_operand.vmem [shape: f32[256,128], index: 7, kind: output, shape index: {}]
  %s8 = sld [smem:[#allocation0]]
  $region119: #{forward.1} parent=0
    _
  %s10 = ssub.s32 1, %s8
  %s11 = scalar_select 0, %s10, %s8
  $region1: #{forward.1} parent=0
    #allocation3 [shape = 'u8[131072]{0}', space=vmem, size = 0x20000, scoped, tag = 'input window, operand 0']
    #allocation4 [shape = 'u8[262144]{0}', space=vmem, size = 0x40000, scoped, tag = 'input window, operand 1']
    #allocation5 [shape = 's32[2]{0}', space=sflag, size = 0x8, scoped, tag = 'scoped memory for forward.1']
    #allocation6 [shape = 'u8[4096]{0}', space=vmem, size = 0x1000, scoped, tag = 'input window, operand 4, single buffered']
    #allocation7 [shape = 's32[1]{0}', space=sflag, size = 0x4, scoped, tag = 'scoped memory for forward.1']
    #allocation8 [shape = 'u8[512]{0}', space=vmem, size = 0x400, scoped, tag = 'input window, operand 6, single buffered']
    %12 = vsyncpa [#allocation5], 0
    %s13 = scalar_lea.sflag [#allocation5], 1
    %14 = vsyncpa %s13, 0
    %15 = vsyncpa [#allocation7], 0
    loop: start=0, step=1, limit=6
    $region2: #{forward.1} parent=1 // loop_pre_header
      _
    $region3: #{forward.1} parent=1 // loop_header
      %s17 = sphi 0, %s21
      %p18 = scmp.ge.s32.totalorder %s17, 6
      %s24 = sphi 0, %s36
      %s25 = sphi 0, %s32
      %s26 = sphi 0, %s24
      %s27 = sphi 0, %s25
      %s28 = sphi 0, %s26
      %s29 = sphi 0, %s27
      %s41 = sphi 0, %s43
      %s44 = sphi 0, %s41
      %s45 = sphi 0, %s44
      %s61 = sphi 0, %s45
      %s67 = sphi 0, %s69
      %s70 = sphi 0, %s67
      %s71 = sphi 0, %s70
      %s87 = sphi 0, %s71
      %s91 = sphi 0, %s91
      %s93 = sphi 0, %s91
      %s94 = sphi 0, %s93
      %s108 = sphi 0, %s94
      %s112 = sphi 0, %s112
      %s114 = sphi 0, %s112
      %s115 = sphi 0, %s114
      %s129 = sphi 0, %s115
      %s133 = sphi 0, %s133
      %s135 = sphi 0, %s133
      %s136 = sphi 0, %s135
      %s150 = sphi 0, %s136
      %s154 = sphi 0, %s154
      %s156 = sphi 0, %s154
      %s157 = sphi 0, %s156
      %s171 = sphi 0, %s157
      %s175 = sphi 0, %s175
      %s177 = sphi 0, %s175
      %s178 = sphi 0, %s177
      %s192 = sphi 0, %s178
      %s198 = sphi 0, %s200
      %s201 = sphi 0, %s198
      %s202 = sphi 0, %s201
      %s218 = sphi 0, %s202
    $region4: #{forward.1} parent=1 // loop_header_branch
      %20 = sbr.rel (%p18) target = $region8
    $region5: #{forward.1} parent=1 // loop_body
      %s22 = ssub.s32 %s17, 1
      %s23 = ssub.s32 %s17, 2
      %s30 = sadd.s32 1, %s25
      %p31 = scmp.ge.s32.totalorder %s30, 2
      %s32 = scalar_select %p31, 0, %s30
      %s33 = sadd.s32 1, %s24
      %s34 = scalar_select %p31, %s33, %s24
      %p35 = scmp.ge.s32.totalorder %s34, 2
      %s36 = scalar_select %p35, 0, %s34
      %s37 = ssub.s32 %s24, %s36
      %s38 = ssub.s32 %s25, %s32
      %s39 = sor.u32 %s37, %s38
      %p40 = scmp.eq.s32.totalorder %s39, 0
      %s42 = sadd.s32 %s41, 1
      %s43 = scalar_select %p40, %s41, %s42
      %p46 = pneg %p40
      %p47 = scmp.eq.s32.totalorder %s17, 3
      %p48 = por %p46, %p47
      %p49 = scmp.ne.s32.totalorder %s41, %s44
      %p50 = scmp.eq.s32.totalorder %s17, 0
      %p51 = por %p49, %p50
      %p52 = scmp.ne.s32.totalorder %s41, %s44
      %p53 = scmp.eq.s32.totalorder %s22, 3
      %p54 = por %p52, %p53
      %p55 = scmp.ne.s32.totalorder %s44, %s45
      %p56 = scmp.eq.s32.totalorder %s22, 0
      %p57 = por %p55, %p56
      %p58 = scmp.ne.s32.totalorder %s44, %s45
      %p59 = scmp.eq.s32.totalorder %s23, 3
      %p60 = por %p58, %p59
      %p62 = scmp.ne.s32.totalorder %s45, %s61
      %p63 = scmp.eq.s32.totalorder %s23, 0
      %p64 = por %p62, %p63
      %s65 = ssub.s32 %s25, %s32
      %p66 = scmp.eq.s32.totalorder %s65, 0
      %s68 = sadd.s32 %s67, 1
      %s69 = scalar_select %p66, %s67, %s68
      %p72 = pneg %p66
      %p73 = scmp.eq.s32.totalorder %s17, 3
      %p74 = por %p72, %p73
      %p75 = scmp.ne.s32.totalorder %s67, %s70
      %p76 = scmp.eq.s32.totalorder %s17, 0
      %p77 = por %p75, %p76
      %p78 = scmp.ne.s32.totalorder %s67, %s70
      %p79 = scmp.eq.s32.totalorder %s22, 3
      %p80 = por %p78, %p79
      %p81 = scmp.ne.s32.totalorder %s70, %s71
      %p82 = scmp.eq.s32.totalorder %s22, 0
      %p83 = por %p81, %p82
      %p84 = scmp.ne.s32.totalorder %s70, %s71
      %p85 = scmp.eq.s32.totalorder %s23, 3
      %p86 = por %p84, %p85
      %p88 = scmp.ne.s32.totalorder %s71, %s87
      %p89 = scmp.eq.s32.totalorder %s23, 0
      %p90 = por %p88, %p89
      %s92 = sadd.s32 %s91, 1
      %p95 = scmp.eq.s32.totalorder %s17, 3
      %p96 = scmp.ne.s32.totalorder %s91, %s93
      %p97 = scmp.eq.s32.totalorder %s17, 0
      %p98 = por %p96, %p97
      %p99 = scmp.ne.s32.totalorder %s91, %s93
      %p100 = scmp.eq.s32.totalorder %s22, 3
      %p101 = por %p99, %p100
      %p102 = scmp.ne.s32.totalorder %s93, %s94
      %p103 = scmp.eq.s32.totalorder %s22, 0
      %p104 = por %p102, %p103
      %p105 = scmp.ne.s32.totalorder %s93, %s94
      %p106 = scmp.eq.s32.totalorder %s23, 3
      %p107 = por %p105, %p106
      %p109 = scmp.ne.s32.totalorder %s94, %s108
      %p110 = scmp.eq.s32.totalorder %s23, 0
      %p111 = por %p109, %p110
      %s113 = sadd.s32 %s112, 1
      %p116 = scmp.eq.s32.totalorder %s17, 3
      %p117 = scmp.ne.s32.totalorder %s112, %s114
      %p118 = scmp.eq.s32.totalorder %s17, 0
      %p119 = por %p117, %p118
      %p120 = scmp.ne.s32.totalorder %s112, %s114
      %p121 = scmp.eq.s32.totalorder %s22, 3
      %p122 = por %p120, %p121
      %p123 = scmp.ne.s32.totalorder %s114, %s115
      %p124 = scmp.eq.s32.totalorder %s22, 0
      %p125 = por %p123, %p124
      %p126 = scmp.ne.s32.totalorder %s114, %s115
      %p127 = scmp.eq.s32.totalorder %s23, 3
      %p128 = por %p126, %p127
      %p130 = scmp.ne.s32.totalorder %s115, %s129
      %p131 = scmp.eq.s32.totalorder %s23, 0
      %p132 = por %p130, %p131
      %s134 = sadd.s32 %s133, 1
      %p137 = scmp.eq.s32.totalorder %s17, 3
      %p138 = scmp.ne.s32.totalorder %s133, %s135
      %p139 = scmp.eq.s32.totalorder %s17, 0
      %p140 = por %p138, %p139
      %p141 = scmp.ne.s32.totalorder %s133, %s135
      %p142 = scmp.eq.s32.totalorder %s22, 3
      %p143 = por %p141, %p142
      %p144 = scmp.ne.s32.totalorder %s135, %s136
      %p145 = scmp.eq.s32.totalorder %s22, 0
      %p146 = por %p144, %p145
      %p147 = scmp.ne.s32.totalorder %s135, %s136
      %p148 = scmp.eq.s32.totalorder %s23, 3
      %p149 = por %p147, %p148
      %p151 = scmp.ne.s32.totalorder %s136, %s150
      %p152 = scmp.eq.s32.totalorder %s23, 0
      %p153 = por %p151, %p152
      %s155 = sadd.s32 %s154, 1
      %p158 = scmp.eq.s32.totalorder %s17, 3
      %p159 = scmp.ne.s32.totalorder %s154, %s156
      %p160 = scmp.eq.s32.totalorder %s17, 0
      %p161 = por %p159, %p160
      %p162 = scmp.ne.s32.totalorder %s154, %s156
      %p163 = scmp.eq.s32.totalorder %s22, 3
      %p164 = por %p162, %p163
      %p165 = scmp.ne.s32.totalorder %s156, %s157
      %p166 = scmp.eq.s32.totalorder %s22, 0
      %p167 = por %p165, %p166
      %p168 = scmp.ne.s32.totalorder %s156, %s157
      %p169 = scmp.eq.s32.totalorder %s23, 3
      %p170 = por %p168, %p169
      %p172 = scmp.ne.s32.totalorder %s157, %s171
      %p173 = scmp.eq.s32.totalorder %s23, 0
      %p174 = por %p172, %p173
      %s176 = sadd.s32 %s175, 1
      %p179 = scmp.eq.s32.totalorder %s17, 3
      %p180 = scmp.ne.s32.totalorder %s175, %s177
      %p181 = scmp.eq.s32.totalorder %s17, 0
      %p182 = por %p180, %p181
      %p183 = scmp.ne.s32.totalorder %s175, %s177
      %p184 = scmp.eq.s32.totalorder %s22, 3
      %p185 = por %p183, %p184
      %p186 = scmp.ne.s32.totalorder %s177, %s178
      %p187 = scmp.eq.s32.totalorder %s22, 0
      %p188 = por %p186, %p187
      %p189 = scmp.ne.s32.totalorder %s177, %s178
      %p190 = scmp.eq.s32.totalorder %s23, 3
      %p191 = por %p189, %p190
      %p193 = scmp.ne.s32.totalorder %s178, %s192
      %p194 = scmp.eq.s32.totalorder %s23, 0
      %p195 = por %p193, %p194
      %s196 = ssub.s32 %s24, %s36
      %p197 = scmp.eq.s32.totalorder %s196, 0
      %s199 = sadd.s32 %s198, 1
      %s200 = scalar_select %p197, %s198, %s199
      %p203 = pneg %p197
      %p204 = scmp.eq.s32.totalorder %s17, 3
      %p205 = por %p203, %p204
      %p206 = scmp.ne.s32.totalorder %s198, %s201
      %p207 = scmp.eq.s32.totalorder %s17, 0
      %p208 = por %p206, %p207
      %p209 = scmp.ne.s32.totalorder %s198, %s201
      %p210 = scmp.eq.s32.totalorder %s22, 3
      %p211 = por %p209, %p210
      %p212 = scmp.ne.s32.totalorder %s201, %s202
      %p213 = scmp.eq.s32.totalorder %s22, 0
      %p214 = por %p212, %p213
      %p215 = scmp.ne.s32.totalorder %s201, %s202
      %p216 = scmp.eq.s32.totalorder %s23, 3
      %p217 = por %p215, %p216
      %p219 = scmp.ne.s32.totalorder %s202, %s218
      %p220 = scmp.eq.s32.totalorder %s23, 0
      %p221 = por %p219, %p220
      %p222 = scmp.le.s32.totalorder 1, %s17
      %p223 = scmp.lt.s32.totalorder %s17, 5
      %p224 = pnand %p222, %p223
      %p225 = pneg %p224
      // Predicated region
      $region9: #{forward.1} parent=5 // pred_check
        _
      $region10: #{forward.1} parent=5 // pred_check_branch
        %227 = sbr.rel (%p224) target = $region12
      $region11: #{forward.1} parent=5 // pred_region
        %s228 = ssub.s32 %s17, 1
        // Predicated region
        $region13: #{forward.1} parent=11 // pred_check
          %p229 = pneg %p104
        $region14: #{forward.1} parent=11 // pred_check_branch
          %231 = sbr.rel (%p229) target = $region16
        $region15: #{forward.1} parent=11 // pred_region
          _
        $region16: #{forward.1} parent=11 // pred_fallthru
          _
        // Predicated region
        $region17: #{forward.1} parent=11 // pred_check
          %p232 = pneg %p125
        $region18: #{forward.1} parent=11 // pred_check_branch
          %234 = sbr.rel (%p232) target = $region20
        $region19: #{forward.1} parent=11 // pred_region
          _
        $region20: #{forward.1} parent=11 // pred_fallthru
          _
        // Predicated region
        $region21: #{forward.1} parent=11 // pred_check
          %p235 = pneg %p146
        $region22: #{forward.1} parent=11 // pred_check_branch
          %237 = sbr.rel (%p235) target = $region24
        $region23: #{forward.1} parent=11 // pred_region
          %239 = vsyncadd [#allocation7], 0
          %s241 = sshll.u32 %s4, 4
          %s242 = int_to_ptr.hbm [resolvable:$true] %s241
          %s243 = sshll.u32 [#allocation6], 4
          %s244 = int_to_ptr.vmem [resolvable:$true] %s243
          %246 = dma.hbm_to_vmem [thread:$0]  %s242, 128, %s244, [#allocation7]
        $region24: #{forward.1} parent=11 // pred_fallthru
          _
        // Predicated region
        $region25: #{forward.1} parent=11 // pred_check
          %p247 = pneg %p167
        $region26: #{forward.1} parent=11 // pred_check_branch
          %249 = sbr.rel (%p247) target = $region28
        $region27: #{forward.1} parent=11 // pred_region
          _
        $region28: #{forward.1} parent=11 // pred_fallthru
          _
        // Predicated region
        $region29: #{forward.1} parent=11 // pred_check
          %p250 = pneg %p188
        $region30: #{forward.1} parent=11 // pred_check_branch
          %252 = sbr.rel (%p250) target = $region32
        $region31: #{forward.1} parent=11 // pred_region
          %254 = vsyncadd [#allocation7], 0
          %s256 = sshll.u32 %s6, 4
          %s257 = int_to_ptr.hbm [resolvable:$true] %s256
          %s258 = sshll.u32 [#allocation8], 4
          %s259 = int_to_ptr.vmem [resolvable:$true] %s258
          %261 = dma.hbm_to_vmem [thread:$0]  %s257, 16, %s259, [#allocation7]
        $region32: #{forward.1} parent=11 // pred_fallthru
          _
      $region12: #{forward.1} parent=5 // pred_fallthru
        _
      %p262 = scmp.lt.s32.totalorder %s17, 4
      // Predicated region
      $region33: #{forward.1} parent=5 // pred_check
        %p263 = pneg %p262
      $region34: #{forward.1} parent=5 // pred_check_branch
        %265 = sbr.rel (%p263) target = $region36
      $region35: #{forward.1} parent=5 // pred_region
        // Predicated region
        $region37: #{forward.1} parent=35 // pred_check
          %p266 = pneg %p51
        $region38: #{forward.1} parent=35 // pred_check_branch
          %268 = sbr.rel (%p266) target = $region40
        $region39: #{forward.1} parent=35 // pred_region
          %s269 = sand.u32 %s41, 1
          %s270 = sand.u32 %s41, 1
          %s271 = smul.addr %s270, 128
          %s272 = scalar_lea.vmem [#allocation3], %s271
          %s273 = smul.u32 16, %s24
          %s274 = smul.u32 2, %s25
          %s275 = smul.addr %s273, 4
          %s276 = sadd.s32 %s274, %s275
          %s277 = smul.addr %s276, 4
          %s278 = scalar_lea.vmem %s0, %s277
          // Predicated region
          $region41: #{forward.1} parent=39 // pred_check
            _
          $region42: #{forward.1} parent=39 // pred_check_branch
            %280 = sbr.rel (0) target = $region44
          $region43: #{forward.1} parent=39 // pred_region
            // Predicated region
            $region45: #{forward.1} parent=43 // pred_check
              _
            $region46: #{forward.1} parent=43 // pred_check_branch
              %282 = sbr.rel (0) target = $region48
            $region47: #{forward.1} parent=43 // pred_region
              // Predicated region
              $region60: #{forward.1} parent=47 // pred_check
                _
              $region61: #{forward.1} parent=47 // pred_check_branch
                %328 = sbr.rel (0) target = $region63
              $region62: #{forward.1} parent=47 // pred_region
                loop: start=0, step=1, limit=1
                $region64: #{forward.1} parent=62 // loop_pre_header
                  _
                $region65: #{forward.1} parent=62 // loop_header
                  %s330 = sphi 0, %s334
                  %p331 = scmp.ge.s32.totalorder %s330, 1
                  %s335 = sphi %s278, %s278
                  %s336 = sphi %s272, %s272
                $region66: #{forward.1} parent=62 // loop_header_branch
                  %333 = sbr.rel (%p331) target = $region70
                $region67: #{forward.1} parent=62 // loop_body
                  %v337 = vld [vmem:[%s335] sm:$0xff]
                  %338 = vst [vmem:[%s336] sm:$0xff] %v337
                  %v339 = vld [vmem:[%s335 + $0x10] sm:$0xff]
                  %340 = vst [vmem:[%s336 + $0x8] sm:$0xff] %v339
                  %v341 = vld [vmem:[%s335 + $0x20] sm:$0xff]
                  %342 = vst [vmem:[%s336 + $0x10] sm:$0xff] %v341
                  %v343 = vld [vmem:[%s335 + $0x30] sm:$0xff]
                  %344 = vst [vmem:[%s336 + $0x18] sm:$0xff] %v343
                  %v345 = vld [vmem:[%s335 + $0x40] sm:$0xff]
                  %346 = vst [vmem:[%s336 + $0x20] sm:$0xff] %v345
                  %v347 = vld [vmem:[%s335 + $0x50] sm:$0xff]
                  %348 = vst [vmem:[%s336 + $0x28] sm:$0xff] %v347
                  %v349 = vld [vmem:[%s335 + $0x60] sm:$0xff]
                  %350 = vst [vmem:[%s336 + $0x30] sm:$0xff] %v349
                  %v351 = vld [vmem:[%s335 + $0x70] sm:$0xff]
                  %352 = vst [vmem:[%s336 + $0x38] sm:$0xff] %v351
                  %v353 = vld [vmem:[%s335 + $0x80] sm:$0xff]
                  %354 = vst [vmem:[%s336 + $0x40] sm:$0xff] %v353
                  %v355 = vld [vmem:[%s335 + $0x90] sm:$0xff]
                  %356 = vst [vmem:[%s336 + $0x48] sm:$0xff] %v355
                  %v357 = vld [vmem:[%s335 + $0xa0] sm:$0xff]
                  %358 = vst [vmem:[%s336 + $0x50] sm:$0xff] %v357
                  %v359 = vld [vmem:[%s335 + $0xb0] sm:$0xff]
                  %360 = vst [vmem:[%s336 + $0x58] sm:$0xff] %v359
                  %v361 = vld [vmem:[%s335 + $0xc0] sm:$0xff]
                  %362 = vst [vmem:[%s336 + $0x60] sm:$0xff] %v361
                  %v363 = vld [vmem:[%s335 + $0xd0] sm:$0xff]
                  %364 = vst [vmem:[%s336 + $0x68] sm:$0xff] %v363
                  %v365 = vld [vmem:[%s335 + $0xe0] sm:$0xff]
                  %366 = vst [vmem:[%s336 + $0x70] sm:$0xff] %v365
                  %v367 = vld [vmem:[%s335 + $0xf0] sm:$0xff]
                  %368 = vst [vmem:[%s336 + $0x78] sm:$0xff] %v367
                $region68: #{forward.1} parent=62 // loop_footer
                  %s334 = sadd.s32 1, %s330
                $region69: #{forward.1} parent=62 // loop_footer_branch
                  %329 = sbr.rel target = $region65
                $region70: #{forward.1} parent=62 // loop_exit
                  _
              $region63: #{forward.1} parent=47 // pred_fallthru
                _
              // Predicated region
              $region71: #{forward.1} parent=47 // pred_check
                _
              $region72: #{forward.1} parent=47 // pred_check_branch
                %370 = sbr.rel target = $region74
              $region73: #{forward.1} parent=47 // pred_region
                _
              $region74: #{forward.1} parent=47 // pred_fallthru
                _
            $region48: #{forward.1} parent=43 // pred_fallthru
              _
            // Predicated region
            $region49: #{forward.1} parent=43 // pred_check
              _
            $region50: #{forward.1} parent=43 // pred_check_branch
              %284 = sbr.rel target = $region52
            $region51: #{forward.1} parent=43 // pred_region
              %s286 = ssub.s32 256, 1
              loop: start=0, step=1, limit=1
              $region53: #{forward.1} parent=51 // loop_pre_header
                _
              $region54: #{forward.1} parent=51 // loop_header
                %s288 = sphi 0, %s292
                %p289 = scmp.ge.s32.totalorder %s288, 1
                %s293 = sphi %s278, %s278
                %s294 = sphi %s272, %s272
              $region55: #{forward.1} parent=51 // loop_header_branch
                %291 = sbr.rel (%p289) target = $region59
              $region56: #{forward.1} parent=51 // loop_body
                %v295 = vld [vmem:[%s293] sm:%s286]
                %296 = vst [vmem:[%s294] sm:%s286] %v295
                %v297 = vld [vmem:[%s293 + $0x10] sm:%s286]
                %298 = vst [vmem:[%s294 + $0x8] sm:%s286] %v297
                %v299 = vld [vmem:[%s293 + $0x20] sm:%s286]
                %300 = vst [vmem:[%s294 + $0x10] sm:%s286] %v299
                %v301 = vld [vmem:[%s293 + $0x30] sm:%s286]
                %302 = vst [vmem:[%s294 + $0x18] sm:%s286] %v301
                %v303 = vld [vmem:[%s293 + $0x40] sm:%s286]
                %304 = vst [vmem:[%s294 + $0x20] sm:%s286] %v303
                %v305 = vld [vmem:[%s293 + $0x50] sm:%s286]
                %306 = vst [vmem:[%s294 + $0x28] sm:%s286] %v305
                %v307 = vld [vmem:[%s293 + $0x60] sm:%s286]
                %308 = vst [vmem:[%s294 + $0x30] sm:%s286] %v307
                %v309 = vld [vmem:[%s293 + $0x70] sm:%s286]
                %310 = vst [vmem:[%s294 + $0x38] sm:%s286] %v309
                %v311 = vld [vmem:[%s293 + $0x80] sm:%s286]
                %312 = vst [vmem:[%s294 + $0x40] sm:%s286] %v311
                %v313 = vld [vmem:[%s293 + $0x90] sm:%s286]
                %314 = vst [vmem:[%s294 + $0x48] sm:%s286] %v313
                %v315 = vld [vmem:[%s293 + $0xa0] sm:%s286]
                %316 = vst [vmem:[%s294 + $0x50] sm:%s286] %v315
                %v317 = vld [vmem:[%s293 + $0xb0] sm:%s286]
                %318 = vst [vmem:[%s294 + $0x58] sm:%s286] %v317
                %v319 = vld [vmem:[%s293 + $0xc0] sm:%s286]
                %320 = vst [vmem:[%s294 + $0x60] sm:%s286] %v319
                %v321 = vld [vmem:[%s293 + $0xd0] sm:%s286]
                %322 = vst [vmem:[%s294 + $0x68] sm:%s286] %v321
                %v323 = vld [vmem:[%s293 + $0xe0] sm:%s286]
                %324 = vst [vmem:[%s294 + $0x70] sm:%s286] %v323
                %v325 = vld [vmem:[%s293 + $0xf0] sm:%s286]
                %326 = vst [vmem:[%s294 + $0x78] sm:%s286] %v325
              $region57: #{forward.1} parent=51 // loop_footer
                %s292 = sadd.s32 1, %s288
              $region58: #{forward.1} parent=51 // loop_footer_branch
                %287 = sbr.rel target = $region54
              $region59: #{forward.1} parent=51 // loop_exit
                _
            $region52: #{forward.1} parent=43 // pred_fallthru
              _
          $region44: #{forward.1} parent=39 // pred_fallthru
            _
          %371 = vnop
        $region40: #{forward.1} parent=35 // pred_fallthru
          _
        // Predicated region
        $region75: #{forward.1} parent=35 // pred_check
          %p372 = pneg %p77
        $region76: #{forward.1} parent=35 // pred_check_branch
          %374 = sbr.rel (%p372) target = $region78
        $region77: #{forward.1} parent=35 // pred_region
          %s375 = sand.u32 %s67, 1
          %s376 = scalar_lea.sflag [#allocation5], %s375
          %s377 = sand.u32 %s67, 1
          %s378 = smul.addr %s377, 256
          %s379 = scalar_lea.vmem [#allocation4], %s378
          %s380 = smul.u32 32, %s25
          %382 = vsyncadd %s376, 0
          %s383 = smul.addr %s380, 2
          %s384 = smul.addr %s383, 4
          %s385 = scalar_lea.hbm %s1, %s384
          %s386 = sshll.u32 %s385, 4
          %s387 = int_to_ptr.hbm [resolvable:$true] %s386
          %s388 = sshll.u32 %s379, 4
          %s389 = int_to_ptr.vmem [resolvable:$true] %s388
          %394 = dma.hbm_to_vmem [thread:$0]  %s387, 4096, %s389, %s376, 128, 128, 8
        $region78: #{forward.1} parent=35 // pred_fallthru
          _
      $region36: #{forward.1} parent=5 // pred_fallthru
        _
      %p395 = scmp.le.s32.totalorder 1, %s17
      %p396 = scmp.lt.s32.totalorder %s17, 5
      %p397 = pnand %p395, %p396
      %p398 = pneg %p397
      // Predicated region
      $region79: #{forward.1} parent=5 // pred_check
        _
      $region80: #{forward.1} parent=5 // pred_check_branch
        %400 = sbr.rel (%p397) target = $region82
      $region81: #{forward.1} parent=5 // pred_region
        %s401 = ssub.s32 %s17, 1
        %s402 = sand.u32 %s44, 1
        %s403 = sand.u32 %s44, 1
        %s404 = smul.addr %s403, 128
        %s405 = scalar_lea.vmem [#allocation3], %s404
        // Predicated region
        $region83: #{forward.1} parent=81 // pred_check
          %p406 = pneg %p57
        $region84: #{forward.1} parent=81 // pred_check_branch
          %408 = sbr.rel (%p406) target = $region86
        $region85: #{forward.1} parent=81 // pred_region
          _
        $region86: #{forward.1} parent=81 // pred_fallthru
          _
        %s409 = sand.u32 %s70, 1
        %s410 = scalar_lea.sflag [#allocation5], %s409
        %s411 = sand.u32 %s70, 1
        %s412 = smul.addr %s411, 256
        %s413 = scalar_lea.vmem [#allocation4], %s412
        // Predicated region
        $region87: #{forward.1} parent=81 // pred_check
          %p414 = pneg %p83
        $region88: #{forward.1} parent=81 // pred_check_branch
          %416 = sbr.rel (%p414) target = $region90
        $region89: #{forward.1} parent=81 // pred_region
          %418 = dma.done %s410, 4096
        $region90: #{forward.1} parent=81 // pred_fallthru
          _
        // Predicated region
        $region91: #{forward.1} parent=81 // pred_check
          %p419 = pneg %p146
        $region92: #{forward.1} parent=81 // pred_check_branch
          %421 = sbr.rel (%p419) target = $region94
        $region93: #{forward.1} parent=81 // pred_region
          %423 = dma.done [#allocation7], 128
        $region94: #{forward.1} parent=81 // pred_fallthru
          _
        // Predicated region
        $region95: #{forward.1} parent=81 // pred_check
          %p424 = pneg %p188
        $region96: #{forward.1} parent=81 // pred_check_branch
          %426 = sbr.rel (%p424) target = $region98
        $region97: #{forward.1} parent=81 // pred_region
          %428 = dma.done [#allocation7], 16
        $region98: #{forward.1} parent=81 // pred_fallthru
          _
        %s429 = sand.u32 %s44, 1
        %s430 = sand.u32 %s44, 1
        %s431 = smul.addr %s430, 128
        %s432 = scalar_lea.vmem [#allocation3], %s431
        %p433 = pneg %p57
        %p434 = pneg %p54
        %s435 = sand.u32 %s70, 1
        %s436 = scalar_lea.sflag [#allocation5], %s435
        %s437 = sand.u32 %s70, 1
        %s438 = smul.addr %s437, 256
        %s439 = scalar_lea.vmem [#allocation4], %s438
        %p440 = pneg %p83
        %p441 = pneg %p80
        %p442 = pneg %p104
        %p443 = pneg %p101
        %p444 = pneg %p125
        %p445 = pneg %p122
        %p446 = pneg %p146
        %p447 = pneg %p143
        %p448 = pneg %p167
        %p449 = pneg %p164
        %p450 = pneg %p188
        %p451 = pneg %p185
        %p452 = pneg %p214
        %p453 = pneg %p211
        %s454 = smul.u32 16, %s26
        %p455 = scmp.lt.s32.totalorder %s454, 31
        %s456 = scalar_select %p455, %s454, 31
        %s457 = smul.addr %s456, 8
        %s458 = scalar_lea.vmem %s7, %s457
        %s459 = smul.u32 16, %s26
        %s460 = smul.u32 2, %s27
        %s461 = smul.u32 32, %s27
        %s462 = smul.u32 16, %s26
        %p463 = scmp.lt.s32.totalorder %s462, 31
        %s464 = scalar_select %p463, %s462, 31
        %s465 = smul.addr %s464, 8
        %s466 = scalar_lea.vmem %s7, %s465
        %s467 = smul.u32 16, %s26
        %p468 = scmp.eq.s32.totalorder %s27, 0
        // Predicated region
        $region99: #{forward.1} parent=81 // pred_check
          %p469 = pneg %p468
        $region100: #{forward.1} parent=81 // pred_check_branch
          %471 = sbr.rel (%p469) target = $region102
        $region101: #{forward.1} parent=81 // pred_region
          %472 = vst [vmem:[#allocation2] sm:$0xff] 0.0
          %473 = vst [vmem:[#allocation2 + $0x8] sm:$0xff] 0.0
          %474 = vst [vmem:[#allocation2 + $0x10] sm:$0xff] 0.0
          %475 = vst [vmem:[#allocation2 + $0x18] sm:$0xff] 0.0
          %476 = vst [vmem:[#allocation2 + $0x20] sm:$0xff] 0.0
          %477 = vst [vmem:[#allocation2 + $0x28] sm:$0xff] 0.0
          %478 = vst [vmem:[#allocation2 + $0x30] sm:$0xff] 0.0
          %479 = vst [vmem:[#allocation2 + $0x38] sm:$0xff] 0.0
          %480 = vst [vmem:[#allocation2 + $0x40] sm:$0xff] 0.0
          %481 = vst [vmem:[#allocation2 + $0x48] sm:$0xff] 0.0
          %482 = vst [vmem:[#allocation2 + $0x50] sm:$0xff] 0.0
          %483 = vst [vmem:[#allocation2 + $0x58] sm:$0xff] 0.0
          %484 = vst [vmem:[#allocation2 + $0x60] sm:$0xff] 0.0
          %485 = vst [vmem:[#allocation2 + $0x68] sm:$0xff] 0.0
          %486 = vst [vmem:[#allocation2 + $0x70] sm:$0xff] 0.0
          %487 = vst [vmem:[#allocation2 + $0x78] sm:$0xff] 0.0
          %488 = vst [vmem:[#allocation2 + $0x80] sm:$0xff] 0.0
          %489 = vst [vmem:[#allocation2 + $0x88] sm:$0xff] 0.0
          %490 = vst [vmem:[#allocation2 + $0x90] sm:$0xff] 0.0
          %491 = vst [vmem:[#allocation2 + $0x98] sm:$0xff] 0.0
          %492 = vst [vmem:[#allocation2 + $0xa0] sm:$0xff] 0.0
          %493 = vst [vmem:[#allocation2 + $0xa8] sm:$0xff] 0.0
          %494 = vst [vmem:[#allocation2 + $0xb0] sm:$0xff] 0.0
          %495 = vst [vmem:[#allocation2 + $0xb8] sm:$0xff] 0.0
          %496 = vst [vmem:[#allocation2 + $0xc0] sm:$0xff] 0.0
          %497 = vst [vmem:[#allocation2 + $0xc8] sm:$0xff] 0.0
          %498 = vst [vmem:[#allocation2 + $0xd0] sm:$0xff] 0.0
          %499 = vst [vmem:[#allocation2 + $0xd8] sm:$0xff] 0.0
          %500 = vst [vmem:[#allocation2 + $0xe0] sm:$0xff] 0.0
          %501 = vst [vmem:[#allocation2 + $0xe8] sm:$0xff] 0.0
          %502 = vst [vmem:[#allocation2 + $0xf0] sm:$0xff] 0.0
          %503 = vst [vmem:[#allocation2 + $0xf8] sm:$0xff] 0.0
        $region102: #{forward.1} parent=81 // pred_fallthru
          _
        %v504 = vld [vmem:[#allocation2] sm:$0xff]
        %v505 = vld [vmem:[#allocation2 + $0x8] sm:$0xff]
        %v506 = vld [vmem:[#allocation2 + $0x10] sm:$0xff]
        %v507 = vld [vmem:[#allocation2 + $0x18] sm:$0xff]
        %v508 = vld [vmem:[#allocation2 + $0x20] sm:$0xff]
        %v509 = vld [vmem:[#allocation2 + $0x28] sm:$0xff]
        %v510 = vld [vmem:[#allocation2 + $0x30] sm:$0xff]
        %v511 = vld [vmem:[#allocation2 + $0x38] sm:$0xff]
        %v512 = vld [vmem:[#allocation2 + $0x40] sm:$0xff]
        %v513 = vld [vmem:[#allocation2 + $0x48] sm:$0xff]
        %v514 = vld [vmem:[#allocation2 + $0x50] sm:$0xff]
        %v515 = vld [vmem:[#allocation2 + $0x58] sm:$0xff]
        %v516 = vld [vmem:[#allocation2 + $0x60] sm:$0xff]
        %v517 = vld [vmem:[#allocation2 + $0x68] sm:$0xff]
        %v518 = vld [vmem:[#allocation2 + $0x70] sm:$0xff]
        %v519 = vld [vmem:[#allocation2 + $0x78] sm:$0xff]
        %v520 = vld [vmem:[#allocation2 + $0x80] sm:$0xff]
        %v521 = vld [vmem:[#allocation2 + $0x88] sm:$0xff]
        %v522 = vld [vmem:[#allocation2 + $0x90] sm:$0xff]
        %v523 = vld [vmem:[#allocation2 + $0x98] sm:$0xff]
        %v524 = vld [vmem:[#allocation2 + $0xa0] sm:$0xff]
        %v525 = vld [vmem:[#allocation2 + $0xa8] sm:$0xff]
        %v526 = vld [vmem:[#allocation2 + $0xb0] sm:$0xff]
        %v527 = vld [vmem:[#allocation2 + $0xb8] sm:$0xff]
        %v528 = vld [vmem:[#allocation2 + $0xc0] sm:$0xff]
        %v529 = vld [vmem:[#allocation2 + $0xc8] sm:$0xff]
        %v530 = vld [vmem:[#allocation2 + $0xd0] sm:$0xff]
        %v531 = vld [vmem:[#allocation2 + $0xd8] sm:$0xff]
        %v532 = vld [vmem:[#allocation2 + $0xe0] sm:$0xff]
        %v533 = vld [vmem:[#allocation2 + $0xe8] sm:$0xff]
        %v534 = vld [vmem:[#allocation2 + $0xf0] sm:$0xff]
        %v535 = vld [vmem:[#allocation2 + $0xf8] sm:$0xff]
        %v536 = vld [vmem:[%s405] sm:$0xff]
        %v537 = vld [vmem:[%s405 + $0x8] sm:$0xff]
        %v538 = vld [vmem:[%s405 + $0x10] sm:$0xff]
        %v539 = vld [vmem:[%s405 + $0x18] sm:$0xff]
        %v540 = vld [vmem:[%s405 + $0x20] sm:$0xff]
        %v541 = vld [vmem:[%s405 + $0x28] sm:$0xff]
        %v542 = vld [vmem:[%s405 + $0x30] sm:$0xff]
        %v543 = vld [vmem:[%s405 + $0x38] sm:$0xff]
        %v544 = vld [vmem:[%s405 + $0x40] sm:$0xff]
        %v545 = vld [vmem:[%s405 + $0x48] sm:$0xff]
        %v546 = vld [vmem:[%s405 + $0x50] sm:$0xff]
        %v547 = vld [vmem:[%s405 + $0x58] sm:$0xff]
        %v548 = vld [vmem:[%s405 + $0x60] sm:$0xff]
        %v549 = vld [vmem:[%s405 + $0x68] sm:$0xff]
        %v550 = vld [vmem:[%s405 + $0x70] sm:$0xff]
        %v551 = vld [vmem:[%s405 + $0x78] sm:$0xff]
        %v552 = vld [vmem:[%s413] sm:$0xff]
        %v553 = vld [vmem:[%s413 + $0x8] sm:$0xff]
        %v554 = vld [vmem:[%s413 + $0x10] sm:$0xff]
        %v555 = vld [vmem:[%s413 + $0x18] sm:$0xff]
        %v556 = vld [vmem:[%s413 + $0x20] sm:$0xff]
        %v557 = vld [vmem:[%s413 + $0x28] sm:$0xff]
        %v558 = vld [vmem:[%s413 + $0x30] sm:$0xff]
        %v559 = vld [vmem:[%s413 + $0x38] sm:$0xff]
        %v560 = vld [vmem:[%s413 + $0x40] sm:$0xff]
        %v561 = vld [vmem:[%s413 + $0x48] sm:$0xff]
        %v562 = vld [vmem:[%s413 + $0x50] sm:$0xff]
        %v563 = vld [vmem:[%s413 + $0x58] sm:$0xff]
        %v564 = vld [vmem:[%s413 + $0x60] sm:$0xff]
        %v565 = vld [vmem:[%s413 + $0x68] sm:$0xff]
        %v566 = vld [vmem:[%s413 + $0x70] sm:$0xff]
        %v567 = vld [vmem:[%s413 + $0x78] sm:$0xff]
        %v568 = vld [vmem:[%s413 + $0x80] sm:$0xff]
        %v569 = vld [vmem:[%s413 + $0x88] sm:$0xff]
        %v570 = vld [vmem:[%s413 + $0x90] sm:$0xff]
        %v571 = vld [vmem:[%s413 + $0x98] sm:$0xff]
        %v572 = vld [vmem:[%s413 + $0xa0] sm:$0xff]
        %v573 = vld [vmem:[%s413 + $0xa8] sm:$0xff]
        %v574 = vld [vmem:[%s413 + $0xb0] sm:$0xff]
        %v575 = vld [vmem:[%s413 + $0xb8] sm:$0xff]
        %v576 = vld [vmem:[%s413 + $0xc0] sm:$0xff]
        %v577 = vld [vmem:[%s413 + $0xc8] sm:$0xff]
        %v578 = vld [vmem:[%s413 + $0xd0] sm:$0xff]
        %v579 = vld [vmem:[%s413 + $0xd8] sm:$0xff]
        %v580 = vld [vmem:[%s413 + $0xe0] sm:$0xff]
        %v581 = vld [vmem:[%s413 + $0xe8] sm:$0xff]
        %v582 = vld [vmem:[%s413 + $0xf0] sm:$0xff]
        %v583 = vld [vmem:[%s413 + $0xf8] sm:$0xff]
        %v600 = vunpack.c.l.b16 %v536
        %v601 = vunpack.c.h.b16 %v536
        %v602 = vunpack.c.l.b16 %v537
        %v603 = vunpack.c.h.b16 %v537
        %v604 = vunpack.c.l.b16 %v538
        %v605 = vunpack.c.h.b16 %v538
        %v606 = vunpack.c.l.b16 %v539
        %v607 = vunpack.c.h.b16 %v539
        %v608 = vunpack.c.l.b16 %v540
        %v609 = vunpack.c.h.b16 %v540
        %v610 = vunpack.c.l.b16 %v541
        %v611 = vunpack.c.h.b16 %v541
        %v612 = vunpack.c.l.b16 %v542
        %v613 = vunpack.c.h.b16 %v542
        %v614 = vunpack.c.l.b16 %v543
        %v615 = vunpack.c.h.b16 %v543
        %v616 = vunpack.c.l.b16 %v544
        %v617 = vunpack.c.h.b16 %v544
        %v618 = vunpack.c.l.b16 %v545
        %v619 = vunpack.c.h.b16 %v545
        %v620 = vunpack.c.l.b16 %v546
        %v621 = vunpack.c.h.b16 %v546
        %v622 = vunpack.c.l.b16 %v547
        %v623 = vunpack.c.h.b16 %v547
        %v624 = vunpack.c.l.b16 %v548
        %v625 = vunpack.c.h.b16 %v548
        %v626 = vunpack.c.l.b16 %v549
        %v627 = vunpack.c.h.b16 %v549
        %v628 = vunpack.c.l.b16 %v550
        %v629 = vunpack.c.h.b16 %v550
        %v630 = vunpack.c.l.b16 %v551
        %v631 = vunpack.c.h.b16 %v551
        %v632 = vpack.c.b16 %v602, %v600
        %v633 = vpack.c.b16 %v603, %v601
        %v634 = vpack.c.b16 %v606, %v604
        %v635 = vpack.c.b16 %v607, %v605
        %v636 = vpack.c.b16 %v610, %v608
        %v637 = vpack.c.b16 %v611, %v609
        %v638 = vpack.c.b16 %v614, %v612
        %v639 = vpack.c.b16 %v615, %v613
        %v640 = vpack.c.b16 %v618, %v616
        %v641 = vpack.c.b16 %v619, %v617
        %v642 = vpack.c.b16 %v622, %v620
        %v643 = vpack.c.b16 %v623, %v621
        %v644 = vpack.c.b16 %v626, %v624
        %v645 = vpack.c.b16 %v627, %v625
        %v646 = vpack.c.b16 %v630, %v628
        %v647 = vpack.c.b16 %v631, %v629
        %v696 = vunpack.c.l.b16 %v552
        %v697 = vunpack.c.h.b16 %v552
        %v698 = vunpack.c.l.b16 %v553
        %v699 = vunpack.c.h.b16 %v553
        %v700 = vunpack.c.l.b16 %v554
        %v701 = vunpack.c.h.b16 %v554
        %v702 = vunpack.c.l.b16 %v555
        %v703 = vunpack.c.h.b16 %v555
        %v704 = vunpack.c.l.b16 %v556
        %v705 = vunpack.c.h.b16 %v556
        %v706 = vunpack.c.l.b16 %v557
        %v707 = vunpack.c.h.b16 %v557
        %v708 = vunpack.c.l.b16 %v558
        %v709 = vunpack.c.h.b16 %v558
        %v710 = vunpack.c.l.b16 %v559
        %v711 = vunpack.c.h.b16 %v559
        %v712 = vunpack.c.l.b16 %v560
        %v713 = vunpack.c.h.b16 %v560
        %v714 = vunpack.c.l.b16 %v561
        %v715 = vunpack.c.h.b16 %v561
        %v716 = vunpack.c.l.b16 %v562
        %v717 = vunpack.c.h.b16 %v562
        %v718 = vunpack.c.l.b16 %v563
        %v719 = vunpack.c.h.b16 %v563
        %v720 = vunpack.c.l.b16 %v564
        %v721 = vunpack.c.h.b16 %v564
        %v722 = vunpack.c.l.b16 %v565
        %v723 = vunpack.c.h.b16 %v565
        %v724 = vunpack.c.l.b16 %v566
        %v725 = vunpack.c.h.b16 %v566
        %v726 = vunpack.c.l.b16 %v567
        %v727 = vunpack.c.h.b16 %v567
        %v728 = vunpack.c.l.b16 %v568
        %v729 = vunpack.c.h.b16 %v568
        %v730 = vunpack.c.l.b16 %v569
        %v731 = vunpack.c.h.b16 %v569
        %v732 = vunpack.c.l.b16 %v570
        %v733 = vunpack.c.h.b16 %v570
        %v734 = vunpack.c.l.b16 %v571
        %v735 = vunpack.c.h.b16 %v571
        %v736 = vunpack.c.l.b16 %v572
        %v737 = vunpack.c.h.b16 %v572
        %v738 = vunpack.c.l.b16 %v573
        %v739 = vunpack.c.h.b16 %v573
        %v740 = vunpack.c.l.b16 %v574
        %v741 = vunpack.c.h.b16 %v574
        %v742 = vunpack.c.l.b16 %v575
        %v743 = vunpack.c.h.b16 %v575
        %v744 = vunpack.c.l.b16 %v576
        %v745 = vunpack.c.h.b16 %v576
        %v746 = vunpack.c.l.b16 %v577
        %v747 = vunpack.c.h.b16 %v577
        %v748 = vunpack.c.l.b16 %v578
        %v749 = vunpack.c.h.b16 %v578
        %v750 = vunpack.c.l.b16 %v579
        %v751 = vunpack.c.h.b16 %v579
        %v752 = vunpack.c.l.b16 %v580
        %v753 = vunpack.c.h.b16 %v580
        %v754 = vunpack.c.l.b16 %v581
        %v755 = vunpack.c.h.b16 %v581
        %v756 = vunpack.c.l.b16 %v582
        %v757 = vunpack.c.h.b16 %v582
        %v758 = vunpack.c.l.b16 %v583
        %v759 = vunpack.c.h.b16 %v583
        %v760 = vpack.c.b16 %v698, %v696
        %v761 = vpack.c.b16 %v699, %v697
        %v762 = vpack.c.b16 %v702, %v700
        %v763 = vpack.c.b16 %v703, %v701
        %v764 = vpack.c.b16 %v706, %v704
        %v765 = vpack.c.b16 %v707, %v705
        %v766 = vpack.c.b16 %v710, %v708
        %v767 = vpack.c.b16 %v711, %v709
        %v768 = vpack.c.b16 %v714, %v712
        %v769 = vpack.c.b16 %v715, %v713
        %v770 = vpack.c.b16 %v718, %v716
        %v771 = vpack.c.b16 %v719, %v717
        %v772 = vpack.c.b16 %v722, %v720
        %v773 = vpack.c.b16 %v723, %v721
        %v774 = vpack.c.b16 %v726, %v724
        %v775 = vpack.c.b16 %v727, %v725
        %v776 = vpack.c.b16 %v730, %v728
        %v777 = vpack.c.b16 %v731, %v729
        %v778 = vpack.c.b16 %v734, %v732
        %v779 = vpack.c.b16 %v735, %v733
        %v780 = vpack.c.b16 %v738, %v736
        %v781 = vpack.c.b16 %v739, %v737
        %v782 = vpack.c.b16 %v742, %v740
        %v783 = vpack.c.b16 %v743, %v741
        %v784 = vpack.c.b16 %v746, %v744
        %v785 = vpack.c.b16 %v747, %v745
        %v786 = vpack.c.b16 %v750, %v748
        %v787 = vpack.c.b16 %v751, %v749
        %v788 = vpack.c.b16 %v754, %v752
        %v789 = vpack.c.b16 %v755, %v753
        %v790 = vpack.c.b16 %v758, %v756
        %v791 = vpack.c.b16 %v759, %v757
        %824 = vmatpush.bf16.msra.mxu0 %v774
        %825 = vmatpush.bf16.msra.mxu0 %v772
        %826 = vmatpush.bf16.msra.mxu0 %v770
        %827 = vmatpush.bf16.msra.mxu0 %v768
        %828 = vmatpush.bf16.msra.mxu0 %v766
        %829 = vmatpush.bf16.msra.mxu0 %v764
        %830 = vmatpush.bf16.msra.mxu0 %v762
        %831 = vmatpush.bf16.msra.mxu0 %v760
        %832 = vmatmul.bf16.gmra.mxu0 %v632
        %v833 = vpop.f32.mrf.mxu0
        %v834 = vadd.f32 0.0, %v833
        %v835 = vpop.f32.mrf.mxu0
        %v836 = vadd.f32 0.0, %v835
        %837 = vmatmul.bf16.gmra.mxu0 %v634
        %v838 = vpop.f32.mrf.mxu0
        %v839 = vadd.f32 0.0, %v838
        %v840 = vpop.f32.mrf.mxu0
        %v841 = vadd.f32 0.0, %v840
        %842 = vmatmul.bf16.gmra.mxu0 %v636
        %v843 = vpop.f32.mrf.mxu0
        %v844 = vadd.f32 0.0, %v843
        %v845 = vpop.f32.mrf.mxu0
        %v846 = vadd.f32 0.0, %v845
        %847 = vmatmul.bf16.gmra.mxu0 %v638
        %v848 = vpop.f32.mrf.mxu0
        %v849 = vadd.f32 0.0, %v848
        %v850 = vpop.f32.mrf.mxu0
        %v851 = vadd.f32 0.0, %v850
        %852 = vmatmul.bf16.gmra.mxu0 %v640
        %v853 = vpop.f32.mrf.mxu0
        %v854 = vadd.f32 0.0, %v853
        %v855 = vpop.f32.mrf.mxu0
        %v856 = vadd.f32 0.0, %v855
        %857 = vmatmul.bf16.gmra.mxu0 %v642
        %v858 = vpop.f32.mrf.mxu0
        %v859 = vadd.f32 0.0, %v858
        %v860 = vpop.f32.mrf.mxu0
        %v861 = vadd.f32 0.0, %v860
        %862 = vmatmul.bf16.gmra.mxu0 %v644
        %v863 = vpop.f32.mrf.mxu0
        %v864 = vadd.f32 0.0, %v863
        %v865 = vpop.f32.mrf.mxu0
        %v866 = vadd.f32 0.0, %v865
        %867 = vmatmul.bf16.gmra.mxu0 %v646
        %v868 = vpop.f32.mrf.mxu0
        %v869 = vadd.f32 0.0, %v868
        %v870 = vpop.f32.mrf.mxu0
        %v871 = vadd.f32 0.0, %v870
        %872 = vdwg.mxu0
        %873 = vmatpush.bf16.msra.mxu0 %v790
        %874 = vmatpush.bf16.msra.mxu0 %v788
        %875 = vmatpush.bf16.msra.mxu0 %v786
        %876 = vmatpush.bf16.msra.mxu0 %v784
        %877 = vmatpush.bf16.msra.mxu0 %v782
        %878 = vmatpush.bf16.msra.mxu0 %v780
        %879 = vmatpush.bf16.msra.mxu0 %v778
        %880 = vmatpush.bf16.msra.mxu0 %v776
        %881 = vmatmul.bf16.gmra.mxu0 %v633
        %v882 = vpop.f32.mrf.mxu0
        %v883 = vadd.f32 %v834, %v882
        %v884 = vpop.f32.mrf.mxu0
        %v885 = vadd.f32 %v836, %v884
        %886 = vmatmul.bf16.gmra.mxu0 %v635
        %v887 = vpop.f32.mrf.mxu0
        %v888 = vadd.f32 %v839, %v887
        %v889 = vpop.f32.mrf.mxu0
        %v890 = vadd.f32 %v841, %v889
        %891 = vmatmul.bf16.gmra.mxu0 %v637
        %v892 = vpop.f32.mrf.mxu0
        %v893 = vadd.f32 %v844, %v892
        %v894 = vpop.f32.mrf.mxu0
        %v895 = vadd.f32 %v846, %v894
        %896 = vmatmul.bf16.gmra.mxu0 %v639
        %v897 = vpop.f32.mrf.mxu0
        %v898 = vadd.f32 %v849, %v897
        %v899 = vpop.f32.mrf.mxu0
        %v900 = vadd.f32 %v851, %v899
        %901 = vmatmul.bf16.gmra.mxu0 %v641
        %v902 = vpop.f32.mrf.mxu0
        %v903 = vadd.f32 %v854, %v902
        %v904 = vpop.f32.mrf.mxu0
        %v905 = vadd.f32 %v856, %v904
        %906 = vmatmul.bf16.gmra.mxu0 %v643
        %v907 = vpop.f32.mrf.mxu0
        %v908 = vadd.f32 %v859, %v907
        %v909 = vpop.f32.mrf.mxu0
        %v910 = vadd.f32 %v861, %v909
        %911 = vmatmul.bf16.gmra.mxu0 %v645
        %v912 = vpop.f32.mrf.mxu0
        %v913 = vadd.f32 %v864, %v912
        %v914 = vpop.f32.mrf.mxu0
        %v915 = vadd.f32 %v866, %v914
        %916 = vmatmul.bf16.gmra.mxu0 %v647
        %v917 = vpop.f32.mrf.mxu0
        %v918 = vadd.f32 %v869, %v917
        %v919 = vpop.f32.mrf.mxu0
        %v920 = vadd.f32 %v871, %v919
        %921 = vdwg.mxu0
        %922 = vmatpush.bf16.msra.mxu0 %v775
        %923 = vmatpush.bf16.msra.mxu0 %v773
        %924 = vmatpush.bf16.msra.mxu0 %v771
        %925 = vmatpush.bf16.msra.mxu0 %v769
        %926 = vmatpush.bf16.msra.mxu0 %v767
        %927 = vmatpush.bf16.msra.mxu0 %v765
        %928 = vmatpush.bf16.msra.mxu0 %v763
        %929 = vmatpush.bf16.msra.mxu0 %v761
        %930 = vmatmul.bf16.gmra.mxu0 %v632
        %v931 = vpop.f32.mrf.mxu0
        %v932 = vadd.f32 0.0, %v931
        %v933 = vpop.f32.mrf.mxu0
        %v934 = vadd.f32 0.0, %v933
        %935 = vmatmul.bf16.gmra.mxu0 %v634
        %v936 = vpop.f32.mrf.mxu0
        %v937 = vadd.f32 0.0, %v936
        %v938 = vpop.f32.mrf.mxu0
        %v939 = vadd.f32 0.0, %v938
        %940 = vmatmul.bf16.gmra.mxu0 %v636
        %v941 = vpop.f32.mrf.mxu0
        %v942 = vadd.f32 0.0, %v941
        %v943 = vpop.f32.mrf.mxu0
        %v944 = vadd.f32 0.0, %v943
        %945 = vmatmul.bf16.gmra.mxu0 %v638
        %v946 = vpop.f32.mrf.mxu0
        %v947 = vadd.f32 0.0, %v946
        %v948 = vpop.f32.mrf.mxu0
        %v949 = vadd.f32 0.0, %v948
        %950 = vmatmul.bf16.gmra.mxu0 %v640
        %v951 = vpop.f32.mrf.mxu0
        %v952 = vadd.f32 0.0, %v951
        %v953 = vpop.f32.mrf.mxu0
        %v954 = vadd.f32 0.0, %v953
        %955 = vmatmul.bf16.gmra.mxu0 %v642
        %v956 = vpop.f32.mrf.mxu0
        %v957 = vadd.f32 0.0, %v956
        %v958 = vpop.f32.mrf.mxu0
        %v959 = vadd.f32 0.0, %v958
        %960 = vmatmul.bf16.gmra.mxu0 %v644
        %v961 = vpop.f32.mrf.mxu0
        %v962 = vadd.f32 0.0, %v961
        %v963 = vpop.f32.mrf.mxu0
        %v964 = vadd.f32 0.0, %v963
        %965 = vmatmul.bf16.gmra.mxu0 %v646
        %v966 = vpop.f32.mrf.mxu0
        %v967 = vadd.f32 0.0, %v966
        %v968 = vpop.f32.mrf.mxu0
        %v969 = vadd.f32 0.0, %v968
        %970 = vdwg.mxu0
        %971 = vmatpush.bf16.msra.mxu0 %v791
        %972 = vmatpush.bf16.msra.mxu0 %v789
        %973 = vmatpush.bf16.msra.mxu0 %v787
        %974 = vmatpush.bf16.msra.mxu0 %v785
        %975 = vmatpush.bf16.msra.mxu0 %v783
        %976 = vmatpush.bf16.msra.mxu0 %v781
        %977 = vmatpush.bf16.msra.mxu0 %v779
        %978 = vmatpush.bf16.msra.mxu0 %v777
        %979 = vmatmul.bf16.gmra.mxu0 %v633
        %v980 = vpop.f32.mrf.mxu0
        %v981 = vadd.f32 %v932, %v980
        %v982 = vpop.f32.mrf.mxu0
        %v983 = vadd.f32 %v934, %v982
        %984 = vmatmul.bf16.gmra.mxu0 %v635
        %v985 = vpop.f32.mrf.mxu0
        %v986 = vadd.f32 %v937, %v985
        %v987 = vpop.f32.mrf.mxu0
        %v988 = vadd.f32 %v939, %v987
        %989 = vmatmul.bf16.gmra.mxu0 %v637
        %v990 = vpop.f32.mrf.mxu0
        %v991 = vadd.f32 %v942, %v990
        %v992 = vpop.f32.mrf.mxu0
        %v993 = vadd.f32 %v944, %v992
        %994 = vmatmul.bf16.gmra.mxu0 %v639
        %v995 = vpop.f32.mrf.mxu0
        %v996 = vadd.f32 %v947, %v995
        %v997 = vpop.f32.mrf.mxu0
        %v998 = vadd.f32 %v949, %v997
        %999 = vmatmul.bf16.gmra.mxu0 %v641
        %v1000 = vpop.f32.mrf.mxu0
        %v1001 = vadd.f32 %v952, %v1000
        %v1002 = vpop.f32.mrf.mxu0
        %v1003 = vadd.f32 %v954, %v1002
        %1004 = vmatmul.bf16.gmra.mxu0 %v643
        %v1005 = vpop.f32.mrf.mxu0
        %v1006 = vadd.f32 %v957, %v1005
        %v1007 = vpop.f32.mrf.mxu0
        %v1008 = vadd.f32 %v959, %v1007
        %1009 = vmatmul.bf16.gmra.mxu0 %v645
        %v1010 = vpop.f32.mrf.mxu0
        %v1011 = vadd.f32 %v962, %v1010
        %v1012 = vpop.f32.mrf.mxu0
        %v1013 = vadd.f32 %v964, %v1012
        %1014 = vmatmul.bf16.gmra.mxu0 %v647
        %v1015 = vpop.f32.mrf.mxu0
        %v1016 = vadd.f32 %v967, %v1015
        %v1017 = vpop.f32.mrf.mxu0
        %v1018 = vadd.f32 %v969, %v1017
        %1019 = vdwg.mxu0
        %v1020 = vadd.f32 %v504, %v883
        %v1021 = vadd.f32 %v505, %v981
        %v1022 = vadd.f32 %v506, %v885
        %v1023 = vadd.f32 %v507, %v983
        %v1024 = vadd.f32 %v508, %v888
        %v1025 = vadd.f32 %v509, %v986
        %v1026 = vadd.f32 %v510, %v890
        %v1027 = vadd.f32 %v511, %v988
        %v1028 = vadd.f32 %v512, %v893
        %v1029 = vadd.f32 %v513, %v991
        %v1030 = vadd.f32 %v514, %v895
        %v1031 = vadd.f32 %v515, %v993
        %v1032 = vadd.f32 %v516, %v898
        %v1033 = vadd.f32 %v517, %v996
        %v1034 = vadd.f32 %v518, %v900
        %v1035 = vadd.f32 %v519, %v998
        %v1036 = vadd.f32 %v520, %v903
        %v1037 = vadd.f32 %v521, %v1001
        %v1038 = vadd.f32 %v522, %v905
        %v1039 = vadd.f32 %v523, %v1003
        %v1040 = vadd.f32 %v524, %v908
        %v1041 = vadd.f32 %v525, %v1006
        %v1042 = vadd.f32 %v526, %v910
        %v1043 = vadd.f32 %v527, %v1008
        %v1044 = vadd.f32 %v528, %v913
        %v1045 = vadd.f32 %v529, %v1011
        %v1046 = vadd.f32 %v530, %v915
        %v1047 = vadd.f32 %v531, %v1013
        %v1048 = vadd.f32 %v532, %v918
        %v1049 = vadd.f32 %v533, %v1016
        %v1050 = vadd.f32 %v534, %v920
        %v1051 = vadd.f32 %v535, %v1018
        %1052 = vst [vmem:[#allocation2] sm:$0xff] %v1020
        %1053 = vst [vmem:[#allocation2 + $0x8] sm:$0xff] %v1021
        %1054 = vst [vmem:[#allocation2 + $0x10] sm:$0xff] %v1022
        %1055 = vst [vmem:[#allocation2 + $0x18] sm:$0xff] %v1023
        %1056 = vst [vmem:[#allocation2 + $0x20] sm:$0xff] %v1024
        %1057 = vst [vmem:[#allocation2 + $0x28] sm:$0xff] %v1025
        %1058 = vst [vmem:[#allocation2 + $0x30] sm:$0xff] %v1026
        %1059 = vst [vmem:[#allocation2 + $0x38] sm:$0xff] %v1027
        %1060 = vst [vmem:[#allocation2 + $0x40] sm:$0xff] %v1028
        %1061 = vst [vmem:[#allocation2 + $0x48] sm:$0xff] %v1029
        %1062 = vst [vmem:[#allocation2 + $0x50] sm:$0xff] %v1030
        %1063 = vst [vmem:[#allocation2 + $0x58] sm:$0xff] %v1031
        %1064 = vst [vmem:[#allocation2 + $0x60] sm:$0xff] %v1032
        %1065 = vst [vmem:[#allocation2 + $0x68] sm:$0xff] %v1033
        %1066 = vst [vmem:[#allocation2 + $0x70] sm:$0xff] %v1034
        %1067 = vst [vmem:[#allocation2 + $0x78] sm:$0xff] %v1035
        %1068 = vst [vmem:[#allocation2 + $0x80] sm:$0xff] %v1036
        %1069 = vst [vmem:[#allocation2 + $0x88] sm:$0xff] %v1037
        %1070 = vst [vmem:[#allocation2 + $0x90] sm:$0xff] %v1038
        %1071 = vst [vmem:[#allocation2 + $0x98] sm:$0xff] %v1039
        %1072 = vst [vmem:[#allocation2 + $0xa0] sm:$0xff] %v1040
        %1073 = vst [vmem:[#allocation2 + $0xa8] sm:$0xff] %v1041
        %1074 = vst [vmem:[#allocation2 + $0xb0] sm:$0xff] %v1042
        %1075 = vst [vmem:[#allocation2 + $0xb8] sm:$0xff] %v1043
        %1076 = vst [vmem:[#allocation2 + $0xc0] sm:$0xff] %v1044
        %1077 = vst [vmem:[#allocation2 + $0xc8] sm:$0xff] %v1045
        %1078 = vst [vmem:[#allocation2 + $0xd0] sm:$0xff] %v1046
        %1079 = vst [vmem:[#allocation2 + $0xd8] sm:$0xff] %v1047
        %1080 = vst [vmem:[#allocation2 + $0xe0] sm:$0xff] %v1048
        %1081 = vst [vmem:[#allocation2 + $0xe8] sm:$0xff] %v1049
        %1082 = vst [vmem:[#allocation2 + $0xf0] sm:$0xff] %v1050
        %1083 = vst [vmem:[#allocation2 + $0xf8] sm:$0xff] %v1051
        %p1084 = scmp.eq.s32.totalorder %s27, 1
        // Predicated region
        $region103: #{forward.1} parent=81 // pred_check
          %p1085 = pneg %p1084
        $region104: #{forward.1} parent=81 // pred_check_branch
          %1087 = sbr.rel (%p1085) target = $region106
        $region105: #{forward.1} parent=81 // pred_region
          %v1088 = vld [vmem:[#allocation2] sm:$0xff]
          %v1089 = vld [vmem:[#allocation2 + $0x8] sm:$0xff]
          %v1090 = vld [vmem:[#allocation2 + $0x10] sm:$0xff]
          %v1091 = vld [vmem:[#allocation2 + $0x18] sm:$0xff]
          %v1092 = vld [vmem:[#allocation2 + $0x20] sm:$0xff]
          %v1093 = vld [vmem:[#allocation2 + $0x28] sm:$0xff]
          %v1094 = vld [vmem:[#allocation2 + $0x30] sm:$0xff]
          %v1095 = vld [vmem:[#allocation2 + $0x38] sm:$0xff]
          %v1096 = vld [vmem:[#allocation2 + $0x40] sm:$0xff]
          %v1097 = vld [vmem:[#allocation2 + $0x48] sm:$0xff]
          %v1098 = vld [vmem:[#allocation2 + $0x50] sm:$0xff]
          %v1099 = vld [vmem:[#allocation2 + $0x58] sm:$0xff]
          %v1100 = vld [vmem:[#allocation2 + $0x60] sm:$0xff]
          %v1101 = vld [vmem:[#allocation2 + $0x68] sm:$0xff]
          %v1102 = vld [vmem:[#allocation2 + $0x70] sm:$0xff]
          %v1103 = vld [vmem:[#allocation2 + $0x78] sm:$0xff]
          %v1104 = vld [vmem:[#allocation2 + $0x80] sm:$0xff]
          %v1105 = vld [vmem:[#allocation2 + $0x88] sm:$0xff]
          %v1106 = vld [vmem:[#allocation2 + $0x90] sm:$0xff]
          %v1107 = vld [vmem:[#allocation2 + $0x98] sm:$0xff]
          %v1108 = vld [vmem:[#allocation2 + $0xa0] sm:$0xff]
          %v1109 = vld [vmem:[#allocation2 + $0xa8] sm:$0xff]
          %v1110 = vld [vmem:[#allocation2 + $0xb0] sm:$0xff]
          %v1111 = vld [vmem:[#allocation2 + $0xb8] sm:$0xff]
          %v1112 = vld [vmem:[#allocation2 + $0xc0] sm:$0xff]
          %v1113 = vld [vmem:[#allocation2 + $0xc8] sm:$0xff]
          %v1114 = vld [vmem:[#allocation2 + $0xd0] sm:$0xff]
          %v1115 = vld [vmem:[#allocation2 + $0xd8] sm:$0xff]
          %v1116 = vld [vmem:[#allocation2 + $0xe0] sm:$0xff]
          %v1117 = vld [vmem:[#allocation2 + $0xe8] sm:$0xff]
          %v1118 = vld [vmem:[#allocation2 + $0xf0] sm:$0xff]
          %v1119 = vld [vmem:[#allocation2 + $0xf8] sm:$0xff]
          %v1120 = vld [vmem:[%s2] sm:$0x3]
          %v1122 = vperm.slane %v1120, 0
          %v1123 = vperm.slane %v1120, 1
          %v1126 = vadd.f32 %v1088, %v1122
          %v1127 = vadd.f32 %v1089, %v1123
          %v1128 = vadd.f32 %v1090, %v1122
          %v1129 = vadd.f32 %v1091, %v1123
          %v1130 = vadd.f32 %v1092, %v1122
          %v1131 = vadd.f32 %v1093, %v1123
          %v1132 = vadd.f32 %v1094, %v1122
          %v1133 = vadd.f32 %v1095, %v1123
          %v1134 = vadd.f32 %v1096, %v1122
          %v1135 = vadd.f32 %v1097, %v1123
          %v1136 = vadd.f32 %v1098, %v1122
          %v1137 = vadd.f32 %v1099, %v1123
          %v1138 = vadd.f32 %v1100, %v1122
          %v1139 = vadd.f32 %v1101, %v1123
          %v1140 = vadd.f32 %v1102, %v1122
          %v1141 = vadd.f32 %v1103, %v1123
          %v1142 = vadd.f32 %v1104, %v1122
          %v1143 = vadd.f32 %v1105, %v1123
          %v1144 = vadd.f32 %v1106, %v1122
          %v1145 = vadd.f32 %v1107, %v1123
          %v1146 = vadd.f32 %v1108, %v1122
          %v1147 = vadd.f32 %v1109, %v1123
          %v1148 = vadd.f32 %v1110, %v1122
          %v1149 = vadd.f32 %v1111, %v1123
          %v1150 = vadd.f32 %v1112, %v1122
          %v1151 = vadd.f32 %v1113, %v1123
          %v1152 = vadd.f32 %v1114, %v1122
          %v1153 = vadd.f32 %v1115, %v1123
          %v1154 = vadd.f32 %v1116, %v1122
          %v1155 = vadd.f32 %v1117, %v1123
          %v1156 = vadd.f32 %v1118, %v1122
          %v1157 = vadd.f32 %v1119, %v1123
          %v1158 = vmax.f32 %v1126, 0.0
          %v1159 = vmax.f32 %v1127, 0.0
          %v1160 = vmax.f32 %v1128, 0.0
          %v1161 = vmax.f32 %v1129, 0.0
          %v1162 = vmax.f32 %v1130, 0.0
          %v1163 = vmax.f32 %v1131, 0.0
          %v1164 = vmax.f32 %v1132, 0.0
          %v1165 = vmax.f32 %v1133, 0.0
          %v1166 = vmax.f32 %v1134, 0.0
          %v1167 = vmax.f32 %v1135, 0.0
          %v1168 = vmax.f32 %v1136, 0.0
          %v1169 = vmax.f32 %v1137, 0.0
          %v1170 = vmax.f32 %v1138, 0.0
          %v1171 = vmax.f32 %v1139, 0.0
          %v1172 = vmax.f32 %v1140, 0.0
          %v1173 = vmax.f32 %v1141, 0.0
          %v1174 = vmax.f32 %v1142, 0.0
          %v1175 = vmax.f32 %v1143, 0.0
          %v1176 = vmax.f32 %v1144, 0.0
          %v1177 = vmax.f32 %v1145, 0.0
          %v1178 = vmax.f32 %v1146, 0.0
          %v1179 = vmax.f32 %v1147, 0.0
          %v1180 = vmax.f32 %v1148, 0.0
          %v1181 = vmax.f32 %v1149, 0.0
          %v1182 = vmax.f32 %v1150, 0.0
          %v1183 = vmax.f32 %v1151, 0.0
          %v1184 = vmax.f32 %v1152, 0.0
          %v1185 = vmax.f32 %v1153, 0.0
          %v1186 = vmax.f32 %v1154, 0.0
          %v1187 = vmax.f32 %v1155, 0.0
          %v1188 = vmax.f32 %v1156, 0.0
          %v1189 = vmax.f32 %v1157, 0.0
          %v1190 = vpack.c.bf16 %v1160, %v1158
          %v1191 = vpack.c.bf16 %v1161, %v1159
          %v1192 = vpack.c.bf16 %v1164, %v1162
          %v1193 = vpack.c.bf16 %v1165, %v1163
          %v1194 = vpack.c.bf16 %v1168, %v1166
          %v1195 = vpack.c.bf16 %v1169, %v1167
          %v1196 = vpack.c.bf16 %v1172, %v1170
          %v1197 = vpack.c.bf16 %v1173, %v1171
          %v1198 = vpack.c.bf16 %v1176, %v1174
          %v1199 = vpack.c.bf16 %v1177, %v1175
          %v1200 = vpack.c.bf16 %v1180, %v1178
          %v1201 = vpack.c.bf16 %v1181, %v1179
          %v1202 = vpack.c.bf16 %v1184, %v1182
          %v1203 = vpack.c.bf16 %v1185, %v1183
          %v1204 = vpack.c.bf16 %v1188, %v1186
          %v1205 = vpack.c.bf16 %v1189, %v1187
          %v1206 = vld [vmem:[%s3] sm:$0xff]
          %v1207 = vld [vmem:[%s3 + $0x8] sm:$0xff]
          %v1208 = vld [vmem:[%s3 + $0x10] sm:$0xff]
          %v1209 = vld [vmem:[%s3 + $0x18] sm:$0xff]
          %v1210 = vld [vmem:[%s3 + $0x20] sm:$0xff]
          %v1211 = vld [vmem:[%s3 + $0x28] sm:$0xff]
          %v1212 = vld [vmem:[%s3 + $0x30] sm:$0xff]
          %v1213 = vld [vmem:[%s3 + $0x38] sm:$0xff]
          %v1214 = vld [vmem:[%s3 + $0x40] sm:$0xff]
          %v1215 = vld [vmem:[%s3 + $0x48] sm:$0xff]
          %v1216 = vld [vmem:[%s3 + $0x50] sm:$0xff]
          %v1217 = vld [vmem:[%s3 + $0x58] sm:$0xff]
          %v1218 = vld [vmem:[%s3 + $0x60] sm:$0xff]
          %v1219 = vld [vmem:[%s3 + $0x68] sm:$0xff]
          %v1220 = vld [vmem:[%s3 + $0x70] sm:$0xff]
          %v1221 = vld [vmem:[%s3 + $0x78] sm:$0xff]
          %v1222 = vld [vmem:[%s3 + $0x80] sm:$0xff]
          %v1223 = vld [vmem:[%s3 + $0x88] sm:$0xff]
          %v1224 = vld [vmem:[%s3 + $0x90] sm:$0xff]
          %v1225 = vld [vmem:[%s3 + $0x98] sm:$0xff]
          %v1226 = vld [vmem:[%s3 + $0xa0] sm:$0xff]
          %v1227 = vld [vmem:[%s3 + $0xa8] sm:$0xff]
          %v1228 = vld [vmem:[%s3 + $0xb0] sm:$0xff]
          %v1229 = vld [vmem:[%s3 + $0xb8] sm:$0xff]
          %v1230 = vld [vmem:[%s3 + $0xc0] sm:$0xff]
          %v1231 = vld [vmem:[%s3 + $0xc8] sm:$0xff]
          %v1232 = vld [vmem:[%s3 + $0xd0] sm:$0xff]
          %v1233 = vld [vmem:[%s3 + $0xd8] sm:$0xff]
          %v1234 = vld [vmem:[%s3 + $0xe0] sm:$0xff]
          %v1235 = vld [vmem:[%s3 + $0xe8] sm:$0xff]
          %v1236 = vld [vmem:[%s3 + $0xf0] sm:$0xff]
          %v1237 = vld [vmem:[%s3 + $0xf8] sm:$0xff]
          %v1238 = vld [vmem:[%s3 + $0x100] sm:$0xff]
          %v1239 = vld [vmem:[%s3 + $0x108] sm:$0xff]
          %v1240 = vld [vmem:[%s3 + $0x110] sm:$0xff]
          %v1241 = vld [vmem:[%s3 + $0x118] sm:$0xff]
          %v1242 = vld [vmem:[%s3 + $0x120] sm:$0xff]
          %v1243 = vld [vmem:[%s3 + $0x128] sm:$0xff]
          %v1244 = vld [vmem:[%s3 + $0x130] sm:$0xff]
          %v1245 = vld [vmem:[%s3 + $0x138] sm:$0xff]
          %v1246 = vld [vmem:[%s3 + $0x140] sm:$0xff]
          %v1247 = vld [vmem:[%s3 + $0x148] sm:$0xff]
          %v1248 = vld [vmem:[%s3 + $0x150] sm:$0xff]
          %v1249 = vld [vmem:[%s3 + $0x158] sm:$0xff]
          %v1250 = vld [vmem:[%s3 + $0x160] sm:$0xff]
          %v1251 = vld [vmem:[%s3 + $0x168] sm:$0xff]
          %v1252 = vld [vmem:[%s3 + $0x170] sm:$0xff]
          %v1253 = vld [vmem:[%s3 + $0x178] sm:$0xff]
          %v1254 = vld [vmem:[%s3 + $0x180] sm:$0xff]
          %v1255 = vld [vmem:[%s3 + $0x188] sm:$0xff]
          %v1256 = vld [vmem:[%s3 + $0x190] sm:$0xff]
          %v1257 = vld [vmem:[%s3 + $0x198] sm:$0xff]
          %v1258 = vld [vmem:[%s3 + $0x1a0] sm:$0xff]
          %v1259 = vld [vmem:[%s3 + $0x1a8] sm:$0xff]
          %v1260 = vld [vmem:[%s3 + $0x1b0] sm:$0xff]
          %v1261 = vld [vmem:[%s3 + $0x1b8] sm:$0xff]
          %v1262 = vld [vmem:[%s3 + $0x1c0] sm:$0xff]
          %v1263 = vld [vmem:[%s3 + $0x1c8] sm:$0xff]
          %v1264 = vld [vmem:[%s3 + $0x1d0] sm:$0xff]
          %v1265 = vld [vmem:[%s3 + $0x1d8] sm:$0xff]
          %v1266 = vld [vmem:[%s3 + $0x1e0] sm:$0xff]
          %v1267 = vld [vmem:[%s3 + $0x1e8] sm:$0xff]
          %v1268 = vld [vmem:[%s3 + $0x1f0] sm:$0xff]
          %v1269 = vld [vmem:[%s3 + $0x1f8] sm:$0xff]
          %v1270 = vld [vmem:[%s3 + $0x200] sm:$0xff]
          %v1271 = vld [vmem:[%s3 + $0x208] sm:$0xff]
          %v1272 = vld [vmem:[%s3 + $0x210] sm:$0xff]
          %v1273 = vld [vmem:[%s3 + $0x218] sm:$0xff]
          %v1274 = vld [vmem:[%s3 + $0x220] sm:$0xff]
          %v1275 = vld [vmem:[%s3 + $0x228] sm:$0xff]
          %v1276 = vld [vmem:[%s3 + $0x230] sm:$0xff]
          %v1277 = vld [vmem:[%s3 + $0x238] sm:$0xff]
          %v1278 = vld [vmem:[%s3 + $0x240] sm:$0xff]
          %v1279 = vld [vmem:[%s3 + $0x248] sm:$0xff]
          %v1280 = vld [vmem:[%s3 + $0x250] sm:$0xff]
          %v1281 = vld [vmem:[%s3 + $0x258] sm:$0xff]
          %v1282 = vld [vmem:[%s3 + $0x260] sm:$0xff]
          %v1283 = vld [vmem:[%s3 + $0x268] sm:$0xff]
          %v1284 = vld [vmem:[%s3 + $0x270] sm:$0xff]
          %v1285 = vld [vmem:[%s3 + $0x278] sm:$0xff]
          %v1286 = vld [vmem:[%s3 + $0x280] sm:$0xff]
          %v1287 = vld [vmem:[%s3 + $0x288] sm:$0xff]
          %v1288 = vld [vmem:[%s3 + $0x290] sm:$0xff]
          %v1289 = vld [vmem:[%s3 + $0x298] sm:$0xff]
          %v1290 = vld [vmem:[%s3 + $0x2a0] sm:$0xff]
          %v1291 = vld [vmem:[%s3 + $0x2a8] sm:$0xff]
          %v1292 = vld [vmem:[%s3 + $0x2b0] sm:$0xff]
          %v1293 = vld [vmem:[%s3 + $0x2b8] sm:$0xff]
          %v1294 = vld [vmem:[%s3 + $0x2c0] sm:$0xff]
          %v1295 = vld [vmem:[%s3 + $0x2c8] sm:$0xff]
          %v1296 = vld [vmem:[%s3 + $0x2d0] sm:$0xff]
          %v1297 = vld [vmem:[%s3 + $0x2d8] sm:$0xff]
          %v1298 = vld [vmem:[%s3 + $0x2e0] sm:$0xff]
          %v1299 = vld [vmem:[%s3 + $0x2e8] sm:$0xff]
          %v1300 = vld [vmem:[%s3 + $0x2f0] sm:$0xff]
          %v1301 = vld [vmem:[%s3 + $0x2f8] sm:$0xff]
          %v1302 = vld [vmem:[%s3 + $0x300] sm:$0xff]
          %v1303 = vld [vmem:[%s3 + $0x308] sm:$0xff]
          %v1304 = vld [vmem:[%s3 + $0x310] sm:$0xff]
          %v1305 = vld [vmem:[%s3 + $0x318] sm:$0xff]
          %v1306 = vld [vmem:[%s3 + $0x320] sm:$0xff]
          %v1307 = vld [vmem:[%s3 + $0x328] sm:$0xff]
          %v1308 = vld [vmem:[%s3 + $0x330] sm:$0xff]
          %v1309 = vld [vmem:[%s3 + $0x338] sm:$0xff]
          %v1310 = vld [vmem:[%s3 + $0x340] sm:$0xff]
          %v1311 = vld [vmem:[%s3 + $0x348] sm:$0xff]
          %v1312 = vld [vmem:[%s3 + $0x350] sm:$0xff]
          %v1313 = vld [vmem:[%s3 + $0x358] sm:$0xff]
          %v1314 = vld [vmem:[%s3 + $0x360] sm:$0xff]
          %v1315 = vld [vmem:[%s3 + $0x368] sm:$0xff]
          %v1316 = vld [vmem:[%s3 + $0x370] sm:$0xff]
          %v1317 = vld [vmem:[%s3 + $0x378] sm:$0xff]
          %v1318 = vld [vmem:[%s3 + $0x380] sm:$0xff]
          %v1319 = vld [vmem:[%s3 + $0x388] sm:$0xff]
          %v1320 = vld [vmem:[%s3 + $0x390] sm:$0xff]
          %v1321 = vld [vmem:[%s3 + $0x398] sm:$0xff]
          %v1322 = vld [vmem:[%s3 + $0x3a0] sm:$0xff]
          %v1323 = vld [vmem:[%s3 + $0x3a8] sm:$0xff]
          %v1324 = vld [vmem:[%s3 + $0x3b0] sm:$0xff]
          %v1325 = vld [vmem:[%s3 + $0x3b8] sm:$0xff]
          %v1326 = vld [vmem:[%s3 + $0x3c0] sm:$0xff]
          %v1327 = vld [vmem:[%s3 + $0x3c8] sm:$0xff]
          %v1328 = vld [vmem:[%s3 + $0x3d0] sm:$0xff]
          %v1329 = vld [vmem:[%s3 + $0x3d8] sm:$0xff]
          %v1330 = vld [vmem:[%s3 + $0x3e0] sm:$0xff]
          %v1331 = vld [vmem:[%s3 + $0x3e8] sm:$0xff]
          %v1332 = vld [vmem:[%s3 + $0x3f0] sm:$0xff]
          %v1333 = vld [vmem:[%s3 + $0x3f8] sm:$0xff]
          %v1334 = vld [vmem:[#allocation6] sm:$0xff]
          %v1336 = vperm.slane %v1334, 0
          %v1337 = vperm.slane %v1334, 1
          %v1338 = vperm.slane %v1334, 2
          %v1339 = vperm.slane %v1334, 3
          %v1340 = vperm.slane %v1334, 4
          %v1341 = vperm.slane %v1334, 5
          %v1342 = vperm.slane %v1334, 6
          %v1343 = vperm.slane %v1334, 7
          %v1480 = vunpack.c.l.b16 %v1206
          %v1481 = vunpack.c.h.b16 %v1206
          %v1482 = vunpack.c.l.b16 %v1207
          %v1483 = vunpack.c.h.b16 %v1207
          %v1484 = vunpack.c.l.b16 %v1208
          %v1485 = vunpack.c.h.b16 %v1208
          %v1486 = vunpack.c.l.b16 %v1209
          %v1487 = vunpack.c.h.b16 %v1209
          %v1488 = vunpack.c.l.b16 %v1210
          %v1489 = vunpack.c.h.b16 %v1210
          %v1490 = vunpack.c.l.b16 %v1211
          %v1491 = vunpack.c.h.b16 %v1211
          %v1492 = vunpack.c.l.b16 %v1212
          %v1493 = vunpack.c.h.b16 %v1212
          %v1494 = vunpack.c.l.b16 %v1213
          %v1495 = vunpack.c.h.b16 %v1213
          %v1496 = vunpack.c.l.b16 %v1214
          %v1497 = vunpack.c.h.b16 %v1214
          %v1498 = vunpack.c.l.b16 %v1215
          %v1499 = vunpack.c.h.b16 %v1215
          %v1500 = vunpack.c.l.b16 %v1216
          %v1501 = vunpack.c.h.b16 %v1216
          %v1502 = vunpack.c.l.b16 %v1217
          %v1503 = vunpack.c.h.b16 %v1217
          %v1504 = vunpack.c.l.b16 %v1218
          %v1505 = vunpack.c.h.b16 %v1218
          %v1506 = vunpack.c.l.b16 %v1219
          %v1507 = vunpack.c.h.b16 %v1219
          %v1508 = vunpack.c.l.b16 %v1220
          %v1509 = vunpack.c.h.b16 %v1220
          %v1510 = vunpack.c.l.b16 %v1221
          %v1511 = vunpack.c.h.b16 %v1221
          %v1512 = vunpack.c.l.b16 %v1222
          %v1513 = vunpack.c.h.b16 %v1222
          %v1514 = vunpack.c.l.b16 %v1223
          %v1515 = vunpack.c.h.b16 %v1223
          %v1516 = vunpack.c.l.b16 %v1224
          %v1517 = vunpack.c.h.b16 %v1224
          %v1518 = vunpack.c.l.b16 %v1225
          %v1519 = vunpack.c.h.b16 %v1225
          %v1520 = vunpack.c.l.b16 %v1226
          %v1521 = vunpack.c.h.b16 %v1226
          %v1522 = vunpack.c.l.b16 %v1227
          %v1523 = vunpack.c.h.b16 %v1227
          %v1524 = vunpack.c.l.b16 %v1228
          %v1525 = vunpack.c.h.b16 %v1228
          %v1526 = vunpack.c.l.b16 %v1229
          %v1527 = vunpack.c.h.b16 %v1229
          %v1528 = vunpack.c.l.b16 %v1230
          %v1529 = vunpack.c.h.b16 %v1230
          %v1530 = vunpack.c.l.b16 %v1231
          %v1531 = vunpack.c.h.b16 %v1231
          %v1532 = vunpack.c.l.b16 %v1232
          %v1533 = vunpack.c.h.b16 %v1232
          %v1534 = vunpack.c.l.b16 %v1233
          %v1535 = vunpack.c.h.b16 %v1233
          %v1536 = vunpack.c.l.b16 %v1234
          %v1537 = vunpack.c.h.b16 %v1234
          %v1538 = vunpack.c.l.b16 %v1235
          %v1539 = vunpack.c.h.b16 %v1235
          %v1540 = vunpack.c.l.b16 %v1236
          %v1541 = vunpack.c.h.b16 %v1236
          %v1542 = vunpack.c.l.b16 %v1237
          %v1543 = vunpack.c.h.b16 %v1237
          %v1544 = vunpack.c.l.b16 %v1238
          %v1545 = vunpack.c.h.b16 %v1238
          %v1546 = vunpack.c.l.b16 %v1239
          %v1547 = vunpack.c.h.b16 %v1239
          %v1548 = vunpack.c.l.b16 %v1240
          %v1549 = vunpack.c.h.b16 %v1240
          %v1550 = vunpack.c.l.b16 %v1241
          %v1551 = vunpack.c.h.b16 %v1241
          %v1552 = vunpack.c.l.b16 %v1242
          %v1553 = vunpack.c.h.b16 %v1242
          %v1554 = vunpack.c.l.b16 %v1243
          %v1555 = vunpack.c.h.b16 %v1243
          %v1556 = vunpack.c.l.b16 %v1244
          %v1557 = vunpack.c.h.b16 %v1244
          %v1558 = vunpack.c.l.b16 %v1245
          %v1559 = vunpack.c.h.b16 %v1245
          %v1560 = vunpack.c.l.b16 %v1246
          %v1561 = vunpack.c.h.b16 %v1246
          %v1562 = vunpack.c.l.b16 %v1247
          %v1563 = vunpack.c.h.b16 %v1247
          %v1564 = vunpack.c.l.b16 %v1248
          %v1565 = vunpack.c.h.b16 %v1248
          %v1566 = vunpack.c.l.b16 %v1249
          %v1567 = vunpack.c.h.b16 %v1249
          %v1568 = vunpack.c.l.b16 %v1250
          %v1569 = vunpack.c.h.b16 %v1250
          %v1570 = vunpack.c.l.b16 %v1251
          %v1571 = vunpack.c.h.b16 %v1251
          %v1572 = vunpack.c.l.b16 %v1252
          %v1573 = vunpack.c.h.b16 %v1252
          %v1574 = vunpack.c.l.b16 %v1253
          %v1575 = vunpack.c.h.b16 %v1253
          %v1576 = vunpack.c.l.b16 %v1254
          %v1577 = vunpack.c.h.b16 %v1254
          %v1578 = vunpack.c.l.b16 %v1255
          %v1579 = vunpack.c.h.b16 %v1255
          %v1580 = vunpack.c.l.b16 %v1256
          %v1581 = vunpack.c.h.b16 %v1256
          %v1582 = vunpack.c.l.b16 %v1257
          %v1583 = vunpack.c.h.b16 %v1257
          %v1584 = vunpack.c.l.b16 %v1258
          %v1585 = vunpack.c.h.b16 %v1258
          %v1586 = vunpack.c.l.b16 %v1259
          %v1587 = vunpack.c.h.b16 %v1259
          %v1588 = vunpack.c.l.b16 %v1260
          %v1589 = vunpack.c.h.b16 %v1260
          %v1590 = vunpack.c.l.b16 %v1261
          %v1591 = vunpack.c.h.b16 %v1261
          %v1592 = vunpack.c.l.b16 %v1262
          %v1593 = vunpack.c.h.b16 %v1262
          %v1594 = vunpack.c.l.b16 %v1263
          %v1595 = vunpack.c.h.b16 %v1263
          %v1596 = vunpack.c.l.b16 %v1264
          %v1597 = vunpack.c.h.b16 %v1264
          %v1598 = vunpack.c.l.b16 %v1265
          %v1599 = vunpack.c.h.b16 %v1265
          %v1600 = vunpack.c.l.b16 %v1266
          %v1601 = vunpack.c.h.b16 %v1266
          %v1602 = vunpack.c.l.b16 %v1267
          %v1603 = vunpack.c.h.b16 %v1267
          %v1604 = vunpack.c.l.b16 %v1268
          %v1605 = vunpack.c.h.b16 %v1268
          %v1606 = vunpack.c.l.b16 %v1269
          %v1607 = vunpack.c.h.b16 %v1269
          %v1608 = vunpack.c.l.b16 %v1270
          %v1609 = vunpack.c.h.b16 %v1270
          %v1610 = vunpack.c.l.b16 %v1271
          %v1611 = vunpack.c.h.b16 %v1271
          %v1612 = vunpack.c.l.b16 %v1272
          %v1613 = vunpack.c.h.b16 %v1272
          %v1614 = vunpack.c.l.b16 %v1273
          %v1615 = vunpack.c.h.b16 %v1273
          %v1616 = vunpack.c.l.b16 %v1274
          %v1617 = vunpack.c.h.b16 %v1274
          %v1618 = vunpack.c.l.b16 %v1275
          %v1619 = vunpack.c.h.b16 %v1275
          %v1620 = vunpack.c.l.b16 %v1276
          %v1621 = vunpack.c.h.b16 %v1276
          %v1622 = vunpack.c.l.b16 %v1277
          %v1623 = vunpack.c.h.b16 %v1277
          %v1624 = vunpack.c.l.b16 %v1278
          %v1625 = vunpack.c.h.b16 %v1278
          %v1626 = vunpack.c.l.b16 %v1279
          %v1627 = vunpack.c.h.b16 %v1279
          %v1628 = vunpack.c.l.b16 %v1280
          %v1629 = vunpack.c.h.b16 %v1280
          %v1630 = vunpack.c.l.b16 %v1281
          %v1631 = vunpack.c.h.b16 %v1281
          %v1632 = vunpack.c.l.b16 %v1282
          %v1633 = vunpack.c.h.b16 %v1282
          %v1634 = vunpack.c.l.b16 %v1283
          %v1635 = vunpack.c.h.b16 %v1283
          %v1636 = vunpack.c.l.b16 %v1284
          %v1637 = vunpack.c.h.b16 %v1284
          %v1638 = vunpack.c.l.b16 %v1285
          %v1639 = vunpack.c.h.b16 %v1285
          %v1640 = vunpack.c.l.b16 %v1286
          %v1641 = vunpack.c.h.b16 %v1286
          %v1642 = vunpack.c.l.b16 %v1287
          %v1643 = vunpack.c.h.b16 %v1287
          %v1644 = vunpack.c.l.b16 %v1288
          %v1645 = vunpack.c.h.b16 %v1288
          %v1646 = vunpack.c.l.b16 %v1289
          %v1647 = vunpack.c.h.b16 %v1289
          %v1648 = vunpack.c.l.b16 %v1290
          %v1649 = vunpack.c.h.b16 %v1290
          %v1650 = vunpack.c.l.b16 %v1291
          %v1651 = vunpack.c.h.b16 %v1291
          %v1652 = vunpack.c.l.b16 %v1292
          %v1653 = vunpack.c.h.b16 %v1292
          %v1654 = vunpack.c.l.b16 %v1293
          %v1655 = vunpack.c.h.b16 %v1293
          %v1656 = vunpack.c.l.b16 %v1294
          %v1657 = vunpack.c.h.b16 %v1294
          %v1658 = vunpack.c.l.b16 %v1295
          %v1659 = vunpack.c.h.b16 %v1295
          %v1660 = vunpack.c.l.b16 %v1296
          %v1661 = vunpack.c.h.b16 %v1296
          %v1662 = vunpack.c.l.b16 %v1297
          %v1663 = vunpack.c.h.b16 %v1297
          %v1664 = vunpack.c.l.b16 %v1298
          %v1665 = vunpack.c.h.b16 %v1298
          %v1666 = vunpack.c.l.b16 %v1299
          %v1667 = vunpack.c.h.b16 %v1299
          %v1668 = vunpack.c.l.b16 %v1300
          %v1669 = vunpack.c.h.b16 %v1300
          %v1670 = vunpack.c.l.b16 %v1301
          %v1671 = vunpack.c.h.b16 %v1301
          %v1672 = vunpack.c.l.b16 %v1302
          %v1673 = vunpack.c.h.b16 %v1302
          %v1674 = vunpack.c.l.b16 %v1303
          %v1675 = vunpack.c.h.b16 %v1303
          %v1676 = vunpack.c.l.b16 %v1304
          %v1677 = vunpack.c.h.b16 %v1304
          %v1678 = vunpack.c.l.b16 %v1305
          %v1679 = vunpack.c.h.b16 %v1305
          %v1680 = vunpack.c.l.b16 %v1306
          %v1681 = vunpack.c.h.b16 %v1306
          %v1682 = vunpack.c.l.b16 %v1307
          %v1683 = vunpack.c.h.b16 %v1307
          %v1684 = vunpack.c.l.b16 %v1308
          %v1685 = vunpack.c.h.b16 %v1308
          %v1686 = vunpack.c.l.b16 %v1309
          %v1687 = vunpack.c.h.b16 %v1309
          %v1688 = vunpack.c.l.b16 %v1310
          %v1689 = vunpack.c.h.b16 %v1310
          %v1690 = vunpack.c.l.b16 %v1311
          %v1691 = vunpack.c.h.b16 %v1311
          %v1692 = vunpack.c.l.b16 %v1312
          %v1693 = vunpack.c.h.b16 %v1312
          %v1694 = vunpack.c.l.b16 %v1313
          %v1695 = vunpack.c.h.b16 %v1313
          %v1696 = vunpack.c.l.b16 %v1314
          %v1697 = vunpack.c.h.b16 %v1314
          %v1698 = vunpack.c.l.b16 %v1315
          %v1699 = vunpack.c.h.b16 %v1315
          %v1700 = vunpack.c.l.b16 %v1316
          %v1701 = vunpack.c.h.b16 %v1316
          %v1702 = vunpack.c.l.b16 %v1317
          %v1703 = vunpack.c.h.b16 %v1317
          %v1704 = vunpack.c.l.b16 %v1318
          %v1705 = vunpack.c.h.b16 %v1318
          %v1706 = vunpack.c.l.b16 %v1319
          %v1707 = vunpack.c.h.b16 %v1319
          %v1708 = vunpack.c.l.b16 %v1320
          %v1709 = vunpack.c.h.b16 %v1320
          %v1710 = vunpack.c.l.b16 %v1321
          %v1711 = vunpack.c.h.b16 %v1321
          %v1712 = vunpack.c.l.b16 %v1322
          %v1713 = vunpack.c.h.b16 %v1322
          %v1714 = vunpack.c.l.b16 %v1323
          %v1715 = vunpack.c.h.b16 %v1323
          %v1716 = vunpack.c.l.b16 %v1324
          %v1717 = vunpack.c.h.b16 %v1324
          %v1718 = vunpack.c.l.b16 %v1325
          %v1719 = vunpack.c.h.b16 %v1325
          %v1720 = vunpack.c.l.b16 %v1326
          %v1721 = vunpack.c.h.b16 %v1326
          %v1722 = vunpack.c.l.b16 %v1327
          %v1723 = vunpack.c.h.b16 %v1327
          %v1724 = vunpack.c.l.b16 %v1328
          %v1725 = vunpack.c.h.b16 %v1328
          %v1726 = vunpack.c.l.b16 %v1329
          %v1727 = vunpack.c.h.b16 %v1329
          %v1728 = vunpack.c.l.b16 %v1330
          %v1729 = vunpack.c.h.b16 %v1330
          %v1730 = vunpack.c.l.b16 %v1331
          %v1731 = vunpack.c.h.b16 %v1331
          %v1732 = vunpack.c.l.b16 %v1332
          %v1733 = vunpack.c.h.b16 %v1332
          %v1734 = vunpack.c.l.b16 %v1333
          %v1735 = vunpack.c.h.b16 %v1333
          %v1736 = vpack.c.b16 %v1488, %v1480
          %v1737 = vpack.c.b16 %v1489, %v1481
          %v1738 = vpack.c.b16 %v1490, %v1482
          %v1739 = vpack.c.b16 %v1491, %v1483
          %v1740 = vpack.c.b16 %v1492, %v1484
          %v1741 = vpack.c.b16 %v1493, %v1485
          %v1742 = vpack.c.b16 %v1494, %v1486
          %v1743 = vpack.c.b16 %v1495, %v1487
          %v1744 = vpack.c.b16 %v1504, %v1496
          %v1745 = vpack.c.b16 %v1505, %v1497
          %v1746 = vpack.c.b16 %v1506, %v1498
          %v1747 = vpack.c.b16 %v1507, %v1499
          %v1748 = vpack.c.b16 %v1508, %v1500
          %v1749 = vpack.c.b16 %v1509, %v1501
          %v1750 = vpack.c.b16 %v1510, %v1502
          %v1751 = vpack.c.b16 %v1511, %v1503
          %v1752 = vpack.c.b16 %v1520, %v1512
          %v1753 = vpack.c.b16 %v1521, %v1513
          %v1754 = vpack.c.b16 %v1522, %v1514
          %v1755 = vpack.c.b16 %v1523, %v1515
          %v1756 = vpack.c.b16 %v1524, %v1516
          %v1757 = vpack.c.b16 %v1525, %v1517
          %v1758 = vpack.c.b16 %v1526, %v1518
          %v1759 = vpack.c.b16 %v1527, %v1519
          %v1760 = vpack.c.b16 %v1536, %v1528
          %v1761 = vpack.c.b16 %v1537, %v1529
          %v1762 = vpack.c.b16 %v1538, %v1530
          %v1763 = vpack.c.b16 %v1539, %v1531
          %v1764 = vpack.c.b16 %v1540, %v1532
          %v1765 = vpack.c.b16 %v1541, %v1533
          %v1766 = vpack.c.b16 %v1542, %v1534
          %v1767 = vpack.c.b16 %v1543, %v1535
          %v1768 = vpack.c.b16 %v1552, %v1544
          %v1769 = vpack.c.b16 %v1553, %v1545
          %v1770 = vpack.c.b16 %v1554, %v1546
          %v1771 = vpack.c.b16 %v1555, %v1547
          %v1772 = vpack.c.b16 %v1556, %v1548
          %v1773 = vpack.c.b16 %v1557, %v1549
          %v1774 = vpack.c.b16 %v1558, %v1550
          %v1775 = vpack.c.b16 %v1559, %v1551
          %v1776 = vpack.c.b16 %v1568, %v1560
          %v1777 = vpack.c.b16 %v1569, %v1561
          %v1778 = vpack.c.b16 %v1570, %v1562
          %v1779 = vpack.c.b16 %v1571, %v1563
          %v1780 = vpack.c.b16 %v1572, %v1564
          %v1781 = vpack.c.b16 %v1573, %v1565
          %v1782 = vpack.c.b16 %v1574, %v1566
          %v1783 = vpack.c.b16 %v1575, %v1567
          %v1784 = vpack.c.b16 %v1584, %v1576
          %v1785 = vpack.c.b16 %v1585, %v1577
          %v1786 = vpack.c.b16 %v1586, %v1578
          %v1787 = vpack.c.b16 %v1587, %v1579
          %v1788 = vpack.c.b16 %v1588, %v1580
          %v1789 = vpack.c.b16 %v1589, %v1581
          %v1790 = vpack.c.b16 %v1590, %v1582
          %v1791 = vpack.c.b16 %v1591, %v1583
          %v1792 = vpack.c.b16 %v1600, %v1592
          %v1793 = vpack.c.b16 %v1601, %v1593
          %v1794 = vpack.c.b16 %v1602, %v1594
          %v1795 = vpack.c.b16 %v1603, %v1595
          %v1796 = vpack.c.b16 %v1604, %v1596
          %v1797 = vpack.c.b16 %v1605, %v1597
          %v1798 = vpack.c.b16 %v1606, %v1598
          %v1799 = vpack.c.b16 %v1607, %v1599
          %v1800 = vpack.c.b16 %v1616, %v1608
          %v1801 = vpack.c.b16 %v1617, %v1609
          %v1802 = vpack.c.b16 %v1618, %v1610
          %v1803 = vpack.c.b16 %v1619, %v1611
          %v1804 = vpack.c.b16 %v1620, %v1612
          %v1805 = vpack.c.b16 %v1621, %v1613
          %v1806 = vpack.c.b16 %v1622, %v1614
          %v1807 = vpack.c.b16 %v1623, %v1615
          %v1808 = vpack.c.b16 %v1632, %v1624
          %v1809 = vpack.c.b16 %v1633, %v1625
          %v1810 = vpack.c.b16 %v1634, %v1626
          %v1811 = vpack.c.b16 %v1635, %v1627
          %v1812 = vpack.c.b16 %v1636, %v1628
          %v1813 = vpack.c.b16 %v1637, %v1629
          %v1814 = vpack.c.b16 %v1638, %v1630
          %v1815 = vpack.c.b16 %v1639, %v1631
          %v1816 = vpack.c.b16 %v1648, %v1640
          %v1817 = vpack.c.b16 %v1649, %v1641
          %v1818 = vpack.c.b16 %v1650, %v1642
          %v1819 = vpack.c.b16 %v1651, %v1643
          %v1820 = vpack.c.b16 %v1652, %v1644
          %v1821 = vpack.c.b16 %v1653, %v1645
          %v1822 = vpack.c.b16 %v1654, %v1646
          %v1823 = vpack.c.b16 %v1655, %v1647
          %v1824 = vpack.c.b16 %v1664, %v1656
          %v1825 = vpack.c.b16 %v1665, %v1657
          %v1826 = vpack.c.b16 %v1666, %v1658
          %v1827 = vpack.c.b16 %v1667, %v1659
          %v1828 = vpack.c.b16 %v1668, %v1660
          %v1829 = vpack.c.b16 %v1669, %v1661
          %v1830 = vpack.c.b16 %v1670, %v1662
          %v1831 = vpack.c.b16 %v1671, %v1663
          %v1832 = vpack.c.b16 %v1680, %v1672
          %v1833 = vpack.c.b16 %v1681, %v1673
          %v1834 = vpack.c.b16 %v1682, %v1674
          %v1835 = vpack.c.b16 %v1683, %v1675
          %v1836 = vpack.c.b16 %v1684, %v1676
          %v1837 = vpack.c.b16 %v1685, %v1677
          %v1838 = vpack.c.b16 %v1686, %v1678
          %v1839 = vpack.c.b16 %v1687, %v1679
          %v1840 = vpack.c.b16 %v1696, %v1688
          %v1841 = vpack.c.b16 %v1697, %v1689
          %v1842 = vpack.c.b16 %v1698, %v1690
          %v1843 = vpack.c.b16 %v1699, %v1691
          %v1844 = vpack.c.b16 %v1700, %v1692
          %v1845 = vpack.c.b16 %v1701, %v1693
          %v1846 = vpack.c.b16 %v1702, %v1694
          %v1847 = vpack.c.b16 %v1703, %v1695
          %v1848 = vpack.c.b16 %v1712, %v1704
          %v1849 = vpack.c.b16 %v1713, %v1705
          %v1850 = vpack.c.b16 %v1714, %v1706
          %v1851 = vpack.c.b16 %v1715, %v1707
          %v1852 = vpack.c.b16 %v1716, %v1708
          %v1853 = vpack.c.b16 %v1717, %v1709
          %v1854 = vpack.c.b16 %v1718, %v1710
          %v1855 = vpack.c.b16 %v1719, %v1711
          %v1856 = vpack.c.b16 %v1728, %v1720
          %v1857 = vpack.c.b16 %v1729, %v1721
          %v1858 = vpack.c.b16 %v1730, %v1722
          %v1859 = vpack.c.b16 %v1731, %v1723
          %v1860 = vpack.c.b16 %v1732, %v1724
          %v1861 = vpack.c.b16 %v1733, %v1725
          %v1862 = vpack.c.b16 %v1734, %v1726
          %v1863 = vpack.c.b16 %v1735, %v1727
          %1992 = vmatpush.bf16.msra.mxu0 %v1792
          %1993 = vmatpush.bf16.msra.mxu0 %v1784
          %1994 = vmatpush.bf16.msra.mxu0 %v1776
          %1995 = vmatpush.bf16.msra.mxu0 %v1768
          %1996 = vmatpush.bf16.msra.mxu0 %v1760
          %1997 = vmatpush.bf16.msra.mxu0 %v1752
          %1998 = vmatpush.bf16.msra.mxu0 %v1744
          %1999 = vmatpush.bf16.msra.mxu0 %v1736
          %2000 = vmatmul.bf16.gmra.mxu0 %v1190
          %v2001 = vpop.f32.mrf.mxu0
          %v2002 = vadd.f32 %v1336, %v2001
          %v2003 = vpop.f32.mrf.mxu0
          %v2004 = vadd.f32 %v1336, %v2003
          %2005 = vmatmul.bf16.gmra.mxu0 %v1192
          %v2006 = vpop.f32.mrf.mxu0
          %v2007 = vadd.f32 %v1336, %v2006
          %v2008 = vpop.f32.mrf.mxu0
          %v2009 = vadd.f32 %v1336, %v2008
          %2010 = vmatmul.bf16.gmra.mxu0 %v1194
          %v2011 = vpop.f32.mrf.mxu0
          %v2012 = vadd.f32 %v1336, %v2011
          %v2013 = vpop.f32.mrf.mxu0
          %v2014 = vadd.f32 %v1336, %v2013
          %2015 = vmatmul.bf16.gmra.mxu0 %v1196
          %v2016 = vpop.f32.mrf.mxu0
          %v2017 = vadd.f32 %v1336, %v2016
          %v2018 = vpop.f32.mrf.mxu0
          %v2019 = vadd.f32 %v1336, %v2018
          %2020 = vmatmul.bf16.gmra.mxu0 %v1198
          %v2021 = vpop.f32.mrf.mxu0
          %v2022 = vadd.f32 %v1336, %v2021
          %v2023 = vpop.f32.mrf.mxu0
          %v2024 = vadd.f32 %v1336, %v2023
          %2025 = vmatmul.bf16.gmra.mxu0 %v1200
          %v2026 = vpop.f32.mrf.mxu0
          %v2027 = vadd.f32 %v1336, %v2026
          %v2028 = vpop.f32.mrf.mxu0
          %v2029 = vadd.f32 %v1336, %v2028
          %2030 = vmatmul.bf16.gmra.mxu0 %v1202
          %v2031 = vpop.f32.mrf.mxu0
          %v2032 = vadd.f32 %v1336, %v2031
          %v2033 = vpop.f32.mrf.mxu0
          %v2034 = vadd.f32 %v1336, %v2033
          %2035 = vmatmul.bf16.gmra.mxu0 %v1204
          %v2036 = vpop.f32.mrf.mxu0
          %v2037 = vadd.f32 %v1336, %v2036
          %v2038 = vpop.f32.mrf.mxu0
          %v2039 = vadd.f32 %v1336, %v2038
          %2040 = vdwg.mxu0
          %2041 = vmatpush.bf16.msra.mxu0 %v1856
          %2042 = vmatpush.bf16.msra.mxu0 %v1848
          %2043 = vmatpush.bf16.msra.mxu0 %v1840
          %2044 = vmatpush.bf16.msra.mxu0 %v1832
          %2045 = vmatpush.bf16.msra.mxu0 %v1824
          %2046 = vmatpush.bf16.msra.mxu0 %v1816
          %2047 = vmatpush.bf16.msra.mxu0 %v1808
          %2048 = vmatpush.bf16.msra.mxu0 %v1800
          %2049 = vmatmul.bf16.gmra.mxu0 %v1191
          %v2050 = vpop.f32.mrf.mxu0
          %v2051 = vadd.f32 %v2002, %v2050
          %v2052 = vpop.f32.mrf.mxu0
          %v2053 = vadd.f32 %v2004, %v2052
          %2054 = vmatmul.bf16.gmra.mxu0 %v1193
          %v2055 = vpop.f32.mrf.mxu0
          %v2056 = vadd.f32 %v2007, %v2055
          %v2057 = vpop.f32.mrf.mxu0
          %v2058 = vadd.f32 %v2009, %v2057
          %2059 = vmatmul.bf16.gmra.mxu0 %v1195
          %v2060 = vpop.f32.mrf.mxu0
          %v2061 = vadd.f32 %v2012, %v2060
          %v2062 = vpop.f32.mrf.mxu0
          %v2063 = vadd.f32 %v2014, %v2062
          %2064 = vmatmul.bf16.gmra.mxu0 %v1197
          %v2065 = vpop.f32.mrf.mxu0
          %v2066 = vadd.f32 %v2017, %v2065
          %v2067 = vpop.f32.mrf.mxu0
          %v2068 = vadd.f32 %v2019, %v2067
          %2069 = vmatmul.bf16.gmra.mxu0 %v1199
          %v2070 = vpop.f32.mrf.mxu0
          %v2071 = vadd.f32 %v2022, %v2070
          %v2072 = vpop.f32.mrf.mxu0
          %v2073 = vadd.f32 %v2024, %v2072
          %2074 = vmatmul.bf16.gmra.mxu0 %v1201
          %v2075 = vpop.f32.mrf.mxu0
          %v2076 = vadd.f32 %v2027, %v2075
          %v2077 = vpop.f32.mrf.mxu0
          %v2078 = vadd.f32 %v2029, %v2077
          %2079 = vmatmul.bf16.gmra.mxu0 %v1203
          %v2080 = vpop.f32.mrf.mxu0
          %v2081 = vadd.f32 %v2032, %v2080
          %v2082 = vpop.f32.mrf.mxu0
          %v2083 = vadd.f32 %v2034, %v2082
          %2084 = vmatmul.bf16.gmra.mxu0 %v1205
          %v2085 = vpop.f32.mrf.mxu0
          %v2086 = vadd.f32 %v2037, %v2085
          %v2087 = vpop.f32.mrf.mxu0
          %v2088 = vadd.f32 %v2039, %v2087
          %2089 = vdwg.mxu0
          %2090 = vmatpush.bf16.msra.mxu0 %v1793
          %2091 = vmatpush.bf16.msra.mxu0 %v1785
          %2092 = vmatpush.bf16.msra.mxu0 %v1777
          %2093 = vmatpush.bf16.msra.mxu0 %v1769
          %2094 = vmatpush.bf16.msra.mxu0 %v1761
          %2095 = vmatpush.bf16.msra.mxu0 %v1753
          %2096 = vmatpush.bf16.msra.mxu0 %v1745
          %2097 = vmatpush.bf16.msra.mxu0 %v1737
          %2098 = vmatmul.bf16.gmra.mxu0 %v1190
          %v2099 = vpop.f32.mrf.mxu0
          %v2100 = vadd.f32 %v1337, %v2099
          %v2101 = vpop.f32.mrf.mxu0
          %v2102 = vadd.f32 %v1337, %v2101
          %2103 = vmatmul.bf16.gmra.mxu0 %v1192
          %v2104 = vpop.f32.mrf.mxu0
          %v2105 = vadd.f32 %v1337, %v2104
          %v2106 = vpop.f32.mrf.mxu0
          %v2107 = vadd.f32 %v1337, %v2106
          %2108 = vmatmul.bf16.gmra.mxu0 %v1194
          %v2109 = vpop.f32.mrf.mxu0
          %v2110 = vadd.f32 %v1337, %v2109
          %v2111 = vpop.f32.mrf.mxu0
          %v2112 = vadd.f32 %v1337, %v2111
          %2113 = vmatmul.bf16.gmra.mxu0 %v1196
          %v2114 = vpop.f32.mrf.mxu0
          %v2115 = vadd.f32 %v1337, %v2114
          %v2116 = vpop.f32.mrf.mxu0
          %v2117 = vadd.f32 %v1337, %v2116
          %2118 = vmatmul.bf16.gmra.mxu0 %v1198
          %v2119 = vpop.f32.mrf.mxu0
          %v2120 = vadd.f32 %v1337, %v2119
          %v2121 = vpop.f32.mrf.mxu0
          %v2122 = vadd.f32 %v1337, %v2121
          %2123 = vmatmul.bf16.gmra.mxu0 %v1200
          %v2124 = vpop.f32.mrf.mxu0
          %v2125 = vadd.f32 %v1337, %v2124
          %v2126 = vpop.f32.mrf.mxu0
          %v2127 = vadd.f32 %v1337, %v2126
          %2128 = vmatmul.bf16.gmra.mxu0 %v1202
          %v2129 = vpop.f32.mrf.mxu0
          %v2130 = vadd.f32 %v1337, %v2129
          %v2131 = vpop.f32.mrf.mxu0
          %v2132 = vadd.f32 %v1337, %v2131
          %2133 = vmatmul.bf16.gmra.mxu0 %v1204
          %v2134 = vpop.f32.mrf.mxu0
          %v2135 = vadd.f32 %v1337, %v2134
          %v2136 = vpop.f32.mrf.mxu0
          %v2137 = vadd.f32 %v1337, %v2136
          %2138 = vdwg.mxu0
          %2139 = vmatpush.bf16.msra.mxu0 %v1857
          %2140 = vmatpush.bf16.msra.mxu0 %v1849
          %2141 = vmatpush.bf16.msra.mxu0 %v1841
          %2142 = vmatpush.bf16.msra.mxu0 %v1833
          %2143 = vmatpush.bf16.msra.mxu0 %v1825
          %2144 = vmatpush.bf16.msra.mxu0 %v1817
          %2145 = vmatpush.bf16.msra.mxu0 %v1809
          %2146 = vmatpush.bf16.msra.mxu0 %v1801
          %2147 = vmatmul.bf16.gmra.mxu0 %v1191
          %v2148 = vpop.f32.mrf.mxu0
          %v2149 = vadd.f32 %v2100, %v2148
          %v2150 = vpop.f32.mrf.mxu0
          %v2151 = vadd.f32 %v2102, %v2150
          %2152 = vmatmul.bf16.gmra.mxu0 %v1193
          %v2153 = vpop.f32.mrf.mxu0
          %v2154 = vadd.f32 %v2105, %v2153
          %v2155 = vpop.f32.mrf.mxu0
          %v2156 = vadd.f32 %v2107, %v2155
          %2157 = vmatmul.bf16.gmra.mxu0 %v1195
          %v2158 = vpop.f32.mrf.mxu0
          %v2159 = vadd.f32 %v2110, %v2158
          %v2160 = vpop.f32.mrf.mxu0
          %v2161 = vadd.f32 %v2112, %v2160
          %2162 = vmatmul.bf16.gmra.mxu0 %v1197
          %v2163 = vpop.f32.mrf.mxu0
          %v2164 = vadd.f32 %v2115, %v2163
          %v2165 = vpop.f32.mrf.mxu0
          %v2166 = vadd.f32 %v2117, %v2165
          %2167 = vmatmul.bf16.gmra.mxu0 %v1199
          %v2168 = vpop.f32.mrf.mxu0
          %v2169 = vadd.f32 %v2120, %v2168
          %v2170 = vpop.f32.mrf.mxu0
          %v2171 = vadd.f32 %v2122, %v2170
          %2172 = vmatmul.bf16.gmra.mxu0 %v1201
          %v2173 = vpop.f32.mrf.mxu0
          %v2174 = vadd.f32 %v2125, %v2173
          %v2175 = vpop.f32.mrf.mxu0
          %v2176 = vadd.f32 %v2127, %v2175
          %2177 = vmatmul.bf16.gmra.mxu0 %v1203
          %v2178 = vpop.f32.mrf.mxu0
          %v2179 = vadd.f32 %v2130, %v2178
          %v2180 = vpop.f32.mrf.mxu0
          %v2181 = vadd.f32 %v2132, %v2180
          %2182 = vmatmul.bf16.gmra.mxu0 %v1205
          %v2183 = vpop.f32.mrf.mxu0
          %v2184 = vadd.f32 %v2135, %v2183
          %v2185 = vpop.f32.mrf.mxu0
          %v2186 = vadd.f32 %v2137, %v2185
          %2187 = vdwg.mxu0
          %2188 = vmatpush.bf16.msra.mxu0 %v1794
          %2189 = vmatpush.bf16.msra.mxu0 %v1786
          %2190 = vmatpush.bf16.msra.mxu0 %v1778
          %2191 = vmatpush.bf16.msra.mxu0 %v1770
          %2192 = vmatpush.bf16.msra.mxu0 %v1762
          %2193 = vmatpush.bf16.msra.mxu0 %v1754
          %2194 = vmatpush.bf16.msra.mxu0 %v1746
          %2195 = vmatpush.bf16.msra.mxu0 %v1738
          %2196 = vmatmul.bf16.gmra.mxu0 %v1190
          %v2197 = vpop.f32.mrf.mxu0
          %v2198 = vadd.f32 %v1338, %v2197
          %v2199 = vpop.f32.mrf.mxu0
          %v2200 = vadd.f32 %v1338, %v2199
          %2201 = vmatmul.bf16.gmra.mxu0 %v1192
          %v2202 = vpop.f32.mrf.mxu0
          %v2203 = vadd.f32 %v1338, %v2202
          %v2204 = vpop.f32.mrf.mxu0
          %v2205 = vadd.f32 %v1338, %v2204
          %2206 = vmatmul.bf16.gmra.mxu0 %v1194
          %v2207 = vpop.f32.mrf.mxu0
          %v2208 = vadd.f32 %v1338, %v2207
          %v2209 = vpop.f32.mrf.mxu0
          %v2210 = vadd.f32 %v1338, %v2209
          %2211 = vmatmul.bf16.gmra.mxu0 %v1196
          %v2212 = vpop.f32.mrf.mxu0
          %v2213 = vadd.f32 %v1338, %v2212
          %v2214 = vpop.f32.mrf.mxu0
          %v2215 = vadd.f32 %v1338, %v2214
          %2216 = vmatmul.bf16.gmra.mxu0 %v1198
          %v2217 = vpop.f32.mrf.mxu0
          %v2218 = vadd.f32 %v1338, %v2217
          %v2219 = vpop.f32.mrf.mxu0
          %v2220 = vadd.f32 %v1338, %v2219
          %2221 = vmatmul.bf16.gmra.mxu0 %v1200
          %v2222 = vpop.f32.mrf.mxu0
          %v2223 = vadd.f32 %v1338, %v2222
          %v2224 = vpop.f32.mrf.mxu0
          %v2225 = vadd.f32 %v1338, %v2224
          %2226 = vmatmul.bf16.gmra.mxu0 %v1202
          %v2227 = vpop.f32.mrf.mxu0
          %v2228 = vadd.f32 %v1338, %v2227
          %v2229 = vpop.f32.mrf.mxu0
          %v2230 = vadd.f32 %v1338, %v2229
          %2231 = vmatmul.bf16.gmra.mxu0 %v1204
          %v2232 = vpop.f32.mrf.mxu0
          %v2233 = vadd.f32 %v1338, %v2232
          %v2234 = vpop.f32.mrf.mxu0
          %v2235 = vadd.f32 %v1338, %v2234
          %2236 = vdwg.mxu0
          %2237 = vmatpush.bf16.msra.mxu0 %v1858
          %2238 = vmatpush.bf16.msra.mxu0 %v1850
          %2239 = vmatpush.bf16.msra.mxu0 %v1842
          %2240 = vmatpush.bf16.msra.mxu0 %v1834
          %2241 = vmatpush.bf16.msra.mxu0 %v1826
          %2242 = vmatpush.bf16.msra.mxu0 %v1818
          %2243 = vmatpush.bf16.msra.mxu0 %v1810
          %2244 = vmatpush.bf16.msra.mxu0 %v1802
          %2245 = vmatmul.bf16.gmra.mxu0 %v1191
          %v2246 = vpop.f32.mrf.mxu0
          %v2247 = vadd.f32 %v2198, %v2246
          %v2248 = vpop.f32.mrf.mxu0
          %v2249 = vadd.f32 %v2200, %v2248
          %2250 = vmatmul.bf16.gmra.mxu0 %v1193
          %v2251 = vpop.f32.mrf.mxu0
          %v2252 = vadd.f32 %v2203, %v2251
          %v2253 = vpop.f32.mrf.mxu0
          %v2254 = vadd.f32 %v2205, %v2253
          %2255 = vmatmul.bf16.gmra.mxu0 %v1195
          %v2256 = vpop.f32.mrf.mxu0
          %v2257 = vadd.f32 %v2208, %v2256
          %v2258 = vpop.f32.mrf.mxu0
          %v2259 = vadd.f32 %v2210, %v2258
          %2260 = vmatmul.bf16.gmra.mxu0 %v1197
          %v2261 = vpop.f32.mrf.mxu0
          %v2262 = vadd.f32 %v2213, %v2261
          %v2263 = vpop.f32.mrf.mxu0
          %v2264 = vadd.f32 %v2215, %v2263
          %2265 = vmatmul.bf16.gmra.mxu0 %v1199
          %v2266 = vpop.f32.mrf.mxu0
          %v2267 = vadd.f32 %v2218, %v2266
          %v2268 = vpop.f32.mrf.mxu0
          %v2269 = vadd.f32 %v2220, %v2268
          %2270 = vmatmul.bf16.gmra.mxu0 %v1201
          %v2271 = vpop.f32.mrf.mxu0
          %v2272 = vadd.f32 %v2223, %v2271
          %v2273 = vpop.f32.mrf.mxu0
          %v2274 = vadd.f32 %v2225, %v2273
          %2275 = vmatmul.bf16.gmra.mxu0 %v1203
          %v2276 = vpop.f32.mrf.mxu0
          %v2277 = vadd.f32 %v2228, %v2276
          %v2278 = vpop.f32.mrf.mxu0
          %v2279 = vadd.f32 %v2230, %v2278
          %2280 = vmatmul.bf16.gmra.mxu0 %v1205
          %v2281 = vpop.f32.mrf.mxu0
          %v2282 = vadd.f32 %v2233, %v2281
          %v2283 = vpop.f32.mrf.mxu0
          %v2284 = vadd.f32 %v2235, %v2283
          %2285 = vdwg.mxu0
          %2286 = vmatpush.bf16.msra.mxu0 %v1795
          %2287 = vmatpush.bf16.msra.mxu0 %v1787
          %2288 = vmatpush.bf16.msra.mxu0 %v1779
          %2289 = vmatpush.bf16.msra.mxu0 %v1771
          %2290 = vmatpush.bf16.msra.mxu0 %v1763
          %2291 = vmatpush.bf16.msra.mxu0 %v1755
          %2292 = vmatpush.bf16.msra.mxu0 %v1747
          %2293 = vmatpush.bf16.msra.mxu0 %v1739
          %2294 = vmatmul.bf16.gmra.mxu0 %v1190
          %v2295 = vpop.f32.mrf.mxu0
          %v2296 = vadd.f32 %v1339, %v2295
          %v2297 = vpop.f32.mrf.mxu0
          %v2298 = vadd.f32 %v1339, %v2297
          %2299 = vmatmul.bf16.gmra.mxu0 %v1192
          %v2300 = vpop.f32.mrf.mxu0
          %v2301 = vadd.f32 %v1339, %v2300
          %v2302 = vpop.f32.mrf.mxu0
          %v2303 = vadd.f32 %v1339, %v2302
          %2304 = vmatmul.bf16.gmra.mxu0 %v1194
          %v2305 = vpop.f32.mrf.mxu0
          %v2306 = vadd.f32 %v1339, %v2305
          %v2307 = vpop.f32.mrf.mxu0
          %v2308 = vadd.f32 %v1339, %v2307
          %2309 = vmatmul.bf16.gmra.mxu0 %v1196
          %v2310 = vpop.f32.mrf.mxu0
          %v2311 = vadd.f32 %v1339, %v2310
          %v2312 = vpop.f32.mrf.mxu0
          %v2313 = vadd.f32 %v1339, %v2312
          %2314 = vmatmul.bf16.gmra.mxu0 %v1198
          %v2315 = vpop.f32.mrf.mxu0
          %v2316 = vadd.f32 %v1339, %v2315
          %v2317 = vpop.f32.mrf.mxu0
          %v2318 = vadd.f32 %v1339, %v2317
          %2319 = vmatmul.bf16.gmra.mxu0 %v1200
          %v2320 = vpop.f32.mrf.mxu0
          %v2321 = vadd.f32 %v1339, %v2320
          %v2322 = vpop.f32.mrf.mxu0
          %v2323 = vadd.f32 %v1339, %v2322
          %2324 = vmatmul.bf16.gmra.mxu0 %v1202
          %v2325 = vpop.f32.mrf.mxu0
          %v2326 = vadd.f32 %v1339, %v2325
          %v2327 = vpop.f32.mrf.mxu0
          %v2328 = vadd.f32 %v1339, %v2327
          %2329 = vmatmul.bf16.gmra.mxu0 %v1204
          %v2330 = vpop.f32.mrf.mxu0
          %v2331 = vadd.f32 %v1339, %v2330
          %v2332 = vpop.f32.mrf.mxu0
          %v2333 = vadd.f32 %v1339, %v2332
          %2334 = vdwg.mxu0
          %2335 = vmatpush.bf16.msra.mxu0 %v1859
          %2336 = vmatpush.bf16.msra.mxu0 %v1851
          %2337 = vmatpush.bf16.msra.mxu0 %v1843
          %2338 = vmatpush.bf16.msra.mxu0 %v1835
          %2339 = vmatpush.bf16.msra.mxu0 %v1827
          %2340 = vmatpush.bf16.msra.mxu0 %v1819
          %2341 = vmatpush.bf16.msra.mxu0 %v1811
          %2342 = vmatpush.bf16.msra.mxu0 %v1803
          %2343 = vmatmul.bf16.gmra.mxu0 %v1191
          %v2344 = vpop.f32.mrf.mxu0
          %v2345 = vadd.f32 %v2296, %v2344
          %v2346 = vpop.f32.mrf.mxu0
          %v2347 = vadd.f32 %v2298, %v2346
          %2348 = vmatmul.bf16.gmra.mxu0 %v1193
          %v2349 = vpop.f32.mrf.mxu0
          %v2350 = vadd.f32 %v2301, %v2349
          %v2351 = vpop.f32.mrf.mxu0
          %v2352 = vadd.f32 %v2303, %v2351
          %2353 = vmatmul.bf16.gmra.mxu0 %v1195
          %v2354 = vpop.f32.mrf.mxu0
          %v2355 = vadd.f32 %v2306, %v2354
          %v2356 = vpop.f32.mrf.mxu0
          %v2357 = vadd.f32 %v2308, %v2356
          %2358 = vmatmul.bf16.gmra.mxu0 %v1197
          %v2359 = vpop.f32.mrf.mxu0
          %v2360 = vadd.f32 %v2311, %v2359
          %v2361 = vpop.f32.mrf.mxu0
          %v2362 = vadd.f32 %v2313, %v2361
          %2363 = vmatmul.bf16.gmra.mxu0 %v1199
          %v2364 = vpop.f32.mrf.mxu0
          %v2365 = vadd.f32 %v2316, %v2364
          %v2366 = vpop.f32.mrf.mxu0
          %v2367 = vadd.f32 %v2318, %v2366
          %2368 = vmatmul.bf16.gmra.mxu0 %v1201
          %v2369 = vpop.f32.mrf.mxu0
          %v2370 = vadd.f32 %v2321, %v2369
          %v2371 = vpop.f32.mrf.mxu0
          %v2372 = vadd.f32 %v2323, %v2371
          %2373 = vmatmul.bf16.gmra.mxu0 %v1203
          %v2374 = vpop.f32.mrf.mxu0
          %v2375 = vadd.f32 %v2326, %v2374
          %v2376 = vpop.f32.mrf.mxu0
          %v2377 = vadd.f32 %v2328, %v2376
          %2378 = vmatmul.bf16.gmra.mxu0 %v1205
          %v2379 = vpop.f32.mrf.mxu0
          %v2380 = vadd.f32 %v2331, %v2379
          %v2381 = vpop.f32.mrf.mxu0
          %v2382 = vadd.f32 %v2333, %v2381
          %2383 = vdwg.mxu0
          %2384 = vmatpush.bf16.msra.mxu0 %v1796
          %2385 = vmatpush.bf16.msra.mxu0 %v1788
          %2386 = vmatpush.bf16.msra.mxu0 %v1780
          %2387 = vmatpush.bf16.msra.mxu0 %v1772
          %2388 = vmatpush.bf16.msra.mxu0 %v1764
          %2389 = vmatpush.bf16.msra.mxu0 %v1756
          %2390 = vmatpush.bf16.msra.mxu0 %v1748
          %2391 = vmatpush.bf16.msra.mxu0 %v1740
          %2392 = vmatmul.bf16.gmra.mxu0 %v1190
          %v2393 = vpop.f32.mrf.mxu0
          %v2394 = vadd.f32 %v1340, %v2393
          %v2395 = vpop.f32.mrf.mxu0
          %v2396 = vadd.f32 %v1340, %v2395
          %2397 = vmatmul.bf16.gmra.mxu0 %v1192
          %v2398 = vpop.f32.mrf.mxu0
          %v2399 = vadd.f32 %v1340, %v2398
          %v2400 = vpop.f32.mrf.mxu0
          %v2401 = vadd.f32 %v1340, %v2400
          %2402 = vmatmul.bf16.gmra.mxu0 %v1194
          %v2403 = vpop.f32.mrf.mxu0
          %v2404 = vadd.f32 %v1340, %v2403
          %v2405 = vpop.f32.mrf.mxu0
          %v2406 = vadd.f32 %v1340, %v2405
          %2407 = vmatmul.bf16.gmra.mxu0 %v1196
          %v2408 = vpop.f32.mrf.mxu0
          %v2409 = vadd.f32 %v1340, %v2408
          %v2410 = vpop.f32.mrf.mxu0
          %v2411 = vadd.f32 %v1340, %v2410
          %2412 = vmatmul.bf16.gmra.mxu0 %v1198
          %v2413 = vpop.f32.mrf.mxu0
          %v2414 = vadd.f32 %v1340, %v2413
          %v2415 = vpop.f32.mrf.mxu0
          %v2416 = vadd.f32 %v1340, %v2415
          %2417 = vmatmul.bf16.gmra.mxu0 %v1200
          %v2418 = vpop.f32.mrf.mxu0
          %v2419 = vadd.f32 %v1340, %v2418
          %v2420 = vpop.f32.mrf.mxu0
          %v2421 = vadd.f32 %v1340, %v2420
          %2422 = vmatmul.bf16.gmra.mxu0 %v1202
          %v2423 = vpop.f32.mrf.mxu0
          %v2424 = vadd.f32 %v1340, %v2423
          %v2425 = vpop.f32.mrf.mxu0
          %v2426 = vadd.f32 %v1340, %v2425
          %2427 = vmatmul.bf16.gmra.mxu0 %v1204
          %v2428 = vpop.f32.mrf.mxu0
          %v2429 = vadd.f32 %v1340, %v2428
          %v2430 = vpop.f32.mrf.mxu0
          %v2431 = vadd.f32 %v1340, %v2430
          %2432 = vdwg.mxu0
          %2433 = vmatpush.bf16.msra.mxu0 %v1860
          %2434 = vmatpush.bf16.msra.mxu0 %v1852
          %2435 = vmatpush.bf16.msra.mxu0 %v1844
          %2436 = vmatpush.bf16.msra.mxu0 %v1836
          %2437 = vmatpush.bf16.msra.mxu0 %v1828
          %2438 = vmatpush.bf16.msra.mxu0 %v1820
          %2439 = vmatpush.bf16.msra.mxu0 %v1812
          %2440 = vmatpush.bf16.msra.mxu0 %v1804
          %2441 = vmatmul.bf16.gmra.mxu0 %v1191
          %v2442 = vpop.f32.mrf.mxu0
          %v2443 = vadd.f32 %v2394, %v2442
          %v2444 = vpop.f32.mrf.mxu0
          %v2445 = vadd.f32 %v2396, %v2444
          %2446 = vmatmul.bf16.gmra.mxu0 %v1193
          %v2447 = vpop.f32.mrf.mxu0
          %v2448 = vadd.f32 %v2399, %v2447
          %v2449 = vpop.f32.mrf.mxu0
          %v2450 = vadd.f32 %v2401, %v2449
          %2451 = vmatmul.bf16.gmra.mxu0 %v1195
          %v2452 = vpop.f32.mrf.mxu0
          %v2453 = vadd.f32 %v2404, %v2452
          %v2454 = vpop.f32.mrf.mxu0
          %v2455 = vadd.f32 %v2406, %v2454
          %2456 = vmatmul.bf16.gmra.mxu0 %v1197
          %v2457 = vpop.f32.mrf.mxu0
          %v2458 = vadd.f32 %v2409, %v2457
          %v2459 = vpop.f32.mrf.mxu0
          %v2460 = vadd.f32 %v2411, %v2459
          %2461 = vmatmul.bf16.gmra.mxu0 %v1199
          %v2462 = vpop.f32.mrf.mxu0
          %v2463 = vadd.f32 %v2414, %v2462
          %v2464 = vpop.f32.mrf.mxu0
          %v2465 = vadd.f32 %v2416, %v2464
          %2466 = vmatmul.bf16.gmra.mxu0 %v1201
          %v2467 = vpop.f32.mrf.mxu0
          %v2468 = vadd.f32 %v2419, %v2467
          %v2469 = vpop.f32.mrf.mxu0
          %v2470 = vadd.f32 %v2421, %v2469
          %2471 = vmatmul.bf16.gmra.mxu0 %v1203
          %v2472 = vpop.f32.mrf.mxu0
          %v2473 = vadd.f32 %v2424, %v2472
          %v2474 = vpop.f32.mrf.mxu0
          %v2475 = vadd.f32 %v2426, %v2474
          %2476 = vmatmul.bf16.gmra.mxu0 %v1205
          %v2477 = vpop.f32.mrf.mxu0
          %v2478 = vadd.f32 %v2429, %v2477
          %v2479 = vpop.f32.mrf.mxu0
          %v2480 = vadd.f32 %v2431, %v2479
          %2481 = vdwg.mxu0
          %2482 = vmatpush.bf16.msra.mxu0 %v1797
          %2483 = vmatpush.bf16.msra.mxu0 %v1789
          %2484 = vmatpush.bf16.msra.mxu0 %v1781
          %2485 = vmatpush.bf16.msra.mxu0 %v1773
          %2486 = vmatpush.bf16.msra.mxu0 %v1765
          %2487 = vmatpush.bf16.msra.mxu0 %v1757
          %2488 = vmatpush.bf16.msra.mxu0 %v1749
          %2489 = vmatpush.bf16.msra.mxu0 %v1741
          %2490 = vmatmul.bf16.gmra.mxu0 %v1190
          %v2491 = vpop.f32.mrf.mxu0
          %v2492 = vadd.f32 %v1341, %v2491
          %v2493 = vpop.f32.mrf.mxu0
          %v2494 = vadd.f32 %v1341, %v2493
          %2495 = vmatmul.bf16.gmra.mxu0 %v1192
          %v2496 = vpop.f32.mrf.mxu0
          %v2497 = vadd.f32 %v1341, %v2496
          %v2498 = vpop.f32.mrf.mxu0
          %v2499 = vadd.f32 %v1341, %v2498
          %2500 = vmatmul.bf16.gmra.mxu0 %v1194
          %v2501 = vpop.f32.mrf.mxu0
          %v2502 = vadd.f32 %v1341, %v2501
          %v2503 = vpop.f32.mrf.mxu0
          %v2504 = vadd.f32 %v1341, %v2503
          %2505 = vmatmul.bf16.gmra.mxu0 %v1196
          %v2506 = vpop.f32.mrf.mxu0
          %v2507 = vadd.f32 %v1341, %v2506
          %v2508 = vpop.f32.mrf.mxu0
          %v2509 = vadd.f32 %v1341, %v2508
          %2510 = vmatmul.bf16.gmra.mxu0 %v1198
          %v2511 = vpop.f32.mrf.mxu0
          %v2512 = vadd.f32 %v1341, %v2511
          %v2513 = vpop.f32.mrf.mxu0
          %v2514 = vadd.f32 %v1341, %v2513
          %2515 = vmatmul.bf16.gmra.mxu0 %v1200
          %v2516 = vpop.f32.mrf.mxu0
          %v2517 = vadd.f32 %v1341, %v2516
          %v2518 = vpop.f32.mrf.mxu0
          %v2519 = vadd.f32 %v1341, %v2518
          %2520 = vmatmul.bf16.gmra.mxu0 %v1202
          %v2521 = vpop.f32.mrf.mxu0
          %v2522 = vadd.f32 %v1341, %v2521
          %v2523 = vpop.f32.mrf.mxu0
          %v2524 = vadd.f32 %v1341, %v2523
          %2525 = vmatmul.bf16.gmra.mxu0 %v1204
          %v2526 = vpop.f32.mrf.mxu0
          %v2527 = vadd.f32 %v1341, %v2526
          %v2528 = vpop.f32.mrf.mxu0
          %v2529 = vadd.f32 %v1341, %v2528
          %2530 = vdwg.mxu0
          %2531 = vmatpush.bf16.msra.mxu0 %v1861
          %2532 = vmatpush.bf16.msra.mxu0 %v1853
          %2533 = vmatpush.bf16.msra.mxu0 %v1845
          %2534 = vmatpush.bf16.msra.mxu0 %v1837
          %2535 = vmatpush.bf16.msra.mxu0 %v1829
          %2536 = vmatpush.bf16.msra.mxu0 %v1821
          %2537 = vmatpush.bf16.msra.mxu0 %v1813
          %2538 = vmatpush.bf16.msra.mxu0 %v1805
          %2539 = vmatmul.bf16.gmra.mxu0 %v1191
          %v2540 = vpop.f32.mrf.mxu0
          %v2541 = vadd.f32 %v2492, %v2540
          %v2542 = vpop.f32.mrf.mxu0
          %v2543 = vadd.f32 %v2494, %v2542
          %2544 = vmatmul.bf16.gmra.mxu0 %v1193
          %v2545 = vpop.f32.mrf.mxu0
          %v2546 = vadd.f32 %v2497, %v2545
          %v2547 = vpop.f32.mrf.mxu0
          %v2548 = vadd.f32 %v2499, %v2547
          %2549 = vmatmul.bf16.gmra.mxu0 %v1195
          %v2550 = vpop.f32.mrf.mxu0
          %v2551 = vadd.f32 %v2502, %v2550
          %v2552 = vpop.f32.mrf.mxu0
          %v2553 = vadd.f32 %v2504, %v2552
          %2554 = vmatmul.bf16.gmra.mxu0 %v1197
          %v2555 = vpop.f32.mrf.mxu0
          %v2556 = vadd.f32 %v2507, %v2555
          %v2557 = vpop.f32.mrf.mxu0
          %v2558 = vadd.f32 %v2509, %v2557
          %2559 = vmatmul.bf16.gmra.mxu0 %v1199
          %v2560 = vpop.f32.mrf.mxu0
          %v2561 = vadd.f32 %v2512, %v2560
          %v2562 = vpop.f32.mrf.mxu0
          %v2563 = vadd.f32 %v2514, %v2562
          %2564 = vmatmul.bf16.gmra.mxu0 %v1201
          %v2565 = vpop.f32.mrf.mxu0
          %v2566 = vadd.f32 %v2517, %v2565
          %v2567 = vpop.f32.mrf.mxu0
          %v2568 = vadd.f32 %v2519, %v2567
          %2569 = vmatmul.bf16.gmra.mxu0 %v1203
          %v2570 = vpop.f32.mrf.mxu0
          %v2571 = vadd.f32 %v2522, %v2570
          %v2572 = vpop.f32.mrf.mxu0
          %v2573 = vadd.f32 %v2524, %v2572
          %2574 = vmatmul.bf16.gmra.mxu0 %v1205
          %v2575 = vpop.f32.mrf.mxu0
          %v2576 = vadd.f32 %v2527, %v2575
          %v2577 = vpop.f32.mrf.mxu0
          %v2578 = vadd.f32 %v2529, %v2577
          %2579 = vdwg.mxu0
          %2580 = vmatpush.bf16.msra.mxu0 %v1798
          %2581 = vmatpush.bf16.msra.mxu0 %v1790
          %2582 = vmatpush.bf16.msra.mxu0 %v1782
          %2583 = vmatpush.bf16.msra.mxu0 %v1774
          %2584 = vmatpush.bf16.msra.mxu0 %v1766
          %2585 = vmatpush.bf16.msra.mxu0 %v1758
          %2586 = vmatpush.bf16.msra.mxu0 %v1750
          %2587 = vmatpush.bf16.msra.mxu0 %v1742
          %2588 = vmatmul.bf16.gmra.mxu0 %v1190
          %v2589 = vpop.f32.mrf.mxu0
          %v2590 = vadd.f32 %v1342, %v2589
          %v2591 = vpop.f32.mrf.mxu0
          %v2592 = vadd.f32 %v1342, %v2591
          %2593 = vmatmul.bf16.gmra.mxu0 %v1192
          %v2594 = vpop.f32.mrf.mxu0
          %v2595 = vadd.f32 %v1342, %v2594
          %v2596 = vpop.f32.mrf.mxu0
          %v2597 = vadd.f32 %v1342, %v2596
          %2598 = vmatmul.bf16.gmra.mxu0 %v1194
          %v2599 = vpop.f32.mrf.mxu0
          %v2600 = vadd.f32 %v1342, %v2599
          %v2601 = vpop.f32.mrf.mxu0
          %v2602 = vadd.f32 %v1342, %v2601
          %2603 = vmatmul.bf16.gmra.mxu0 %v1196
          %v2604 = vpop.f32.mrf.mxu0
          %v2605 = vadd.f32 %v1342, %v2604
          %v2606 = vpop.f32.mrf.mxu0
          %v2607 = vadd.f32 %v1342, %v2606
          %2608 = vmatmul.bf16.gmra.mxu0 %v1198
          %v2609 = vpop.f32.mrf.mxu0
          %v2610 = vadd.f32 %v1342, %v2609
          %v2611 = vpop.f32.mrf.mxu0
          %v2612 = vadd.f32 %v1342, %v2611
          %2613 = vmatmul.bf16.gmra.mxu0 %v1200
          %v2614 = vpop.f32.mrf.mxu0
          %v2615 = vadd.f32 %v1342, %v2614
          %v2616 = vpop.f32.mrf.mxu0
          %v2617 = vadd.f32 %v1342, %v2616
          %2618 = vmatmul.bf16.gmra.mxu0 %v1202
          %v2619 = vpop.f32.mrf.mxu0
          %v2620 = vadd.f32 %v1342, %v2619
          %v2621 = vpop.f32.mrf.mxu0
          %v2622 = vadd.f32 %v1342, %v2621
          %2623 = vmatmul.bf16.gmra.mxu0 %v1204
          %v2624 = vpop.f32.mrf.mxu0
          %v2625 = vadd.f32 %v1342, %v2624
          %v2626 = vpop.f32.mrf.mxu0
          %v2627 = vadd.f32 %v1342, %v2626
          %2628 = vdwg.mxu0
          %2629 = vmatpush.bf16.msra.mxu0 %v1862
          %2630 = vmatpush.bf16.msra.mxu0 %v1854
          %2631 = vmatpush.bf16.msra.mxu0 %v1846
          %2632 = vmatpush.bf16.msra.mxu0 %v1838
          %2633 = vmatpush.bf16.msra.mxu0 %v1830
          %2634 = vmatpush.bf16.msra.mxu0 %v1822
          %2635 = vmatpush.bf16.msra.mxu0 %v1814
          %2636 = vmatpush.bf16.msra.mxu0 %v1806
          %2637 = vmatmul.bf16.gmra.mxu0 %v1191
          %v2638 = vpop.f32.mrf.mxu0
          %v2639 = vadd.f32 %v2590, %v2638
          %v2640 = vpop.f32.mrf.mxu0
          %v2641 = vadd.f32 %v2592, %v2640
          %2642 = vmatmul.bf16.gmra.mxu0 %v1193
          %v2643 = vpop.f32.mrf.mxu0
          %v2644 = vadd.f32 %v2595, %v2643
          %v2645 = vpop.f32.mrf.mxu0
          %v2646 = vadd.f32 %v2597, %v2645
          %2647 = vmatmul.bf16.gmra.mxu0 %v1195
          %v2648 = vpop.f32.mrf.mxu0
          %v2649 = vadd.f32 %v2600, %v2648
          %v2650 = vpop.f32.mrf.mxu0
          %v2651 = vadd.f32 %v2602, %v2650
          %2652 = vmatmul.bf16.gmra.mxu0 %v1197
          %v2653 = vpop.f32.mrf.mxu0
          %v2654 = vadd.f32 %v2605, %v2653
          %v2655 = vpop.f32.mrf.mxu0
          %v2656 = vadd.f32 %v2607, %v2655
          %2657 = vmatmul.bf16.gmra.mxu0 %v1199
          %v2658 = vpop.f32.mrf.mxu0
          %v2659 = vadd.f32 %v2610, %v2658
          %v2660 = vpop.f32.mrf.mxu0
          %v2661 = vadd.f32 %v2612, %v2660
          %2662 = vmatmul.bf16.gmra.mxu0 %v1201
          %v2663 = vpop.f32.mrf.mxu0
          %v2664 = vadd.f32 %v2615, %v2663
          %v2665 = vpop.f32.mrf.mxu0
          %v2666 = vadd.f32 %v2617, %v2665
          %2667 = vmatmul.bf16.gmra.mxu0 %v1203
          %v2668 = vpop.f32.mrf.mxu0
          %v2669 = vadd.f32 %v2620, %v2668
          %v2670 = vpop.f32.mrf.mxu0
          %v2671 = vadd.f32 %v2622, %v2670
          %2672 = vmatmul.bf16.gmra.mxu0 %v1205
          %v2673 = vpop.f32.mrf.mxu0
          %v2674 = vadd.f32 %v2625, %v2673
          %v2675 = vpop.f32.mrf.mxu0
          %v2676 = vadd.f32 %v2627, %v2675
          %2677 = vdwg.mxu0
          %2678 = vmatpush.bf16.msra.mxu0 %v1799
          %2679 = vmatpush.bf16.msra.mxu0 %v1791
          %2680 = vmatpush.bf16.msra.mxu0 %v1783
          %2681 = vmatpush.bf16.msra.mxu0 %v1775
          %2682 = vmatpush.bf16.msra.mxu0 %v1767
          %2683 = vmatpush.bf16.msra.mxu0 %v1759
          %2684 = vmatpush.bf16.msra.mxu0 %v1751
          %2685 = vmatpush.bf16.msra.mxu0 %v1743
          %2686 = vmatmul.bf16.gmra.mxu0 %v1190
          %v2687 = vpop.f32.mrf.mxu0
          %v2688 = vadd.f32 %v1343, %v2687
          %v2689 = vpop.f32.mrf.mxu0
          %v2690 = vadd.f32 %v1343, %v2689
          %2691 = vmatmul.bf16.gmra.mxu0 %v1192
          %v2692 = vpop.f32.mrf.mxu0
          %v2693 = vadd.f32 %v1343, %v2692
          %v2694 = vpop.f32.mrf.mxu0
          %v2695 = vadd.f32 %v1343, %v2694
          %2696 = vmatmul.bf16.gmra.mxu0 %v1194
          %v2697 = vpop.f32.mrf.mxu0
          %v2698 = vadd.f32 %v1343, %v2697
          %v2699 = vpop.f32.mrf.mxu0
          %v2700 = vadd.f32 %v1343, %v2699
          %2701 = vmatmul.bf16.gmra.mxu0 %v1196
          %v2702 = vpop.f32.mrf.mxu0
          %v2703 = vadd.f32 %v1343, %v2702
          %v2704 = vpop.f32.mrf.mxu0
          %v2705 = vadd.f32 %v1343, %v2704
          %2706 = vmatmul.bf16.gmra.mxu0 %v1198
          %v2707 = vpop.f32.mrf.mxu0
          %v2708 = vadd.f32 %v1343, %v2707
          %v2709 = vpop.f32.mrf.mxu0
          %v2710 = vadd.f32 %v1343, %v2709
          %2711 = vmatmul.bf16.gmra.mxu0 %v1200
          %v2712 = vpop.f32.mrf.mxu0
          %v2713 = vadd.f32 %v1343, %v2712
          %v2714 = vpop.f32.mrf.mxu0
          %v2715 = vadd.f32 %v1343, %v2714
          %2716 = vmatmul.bf16.gmra.mxu0 %v1202
          %v2717 = vpop.f32.mrf.mxu0
          %v2718 = vadd.f32 %v1343, %v2717
          %v2719 = vpop.f32.mrf.mxu0
          %v2720 = vadd.f32 %v1343, %v2719
          %2721 = vmatmul.bf16.gmra.mxu0 %v1204
          %v2722 = vpop.f32.mrf.mxu0
          %v2723 = vadd.f32 %v1343, %v2722
          %v2724 = vpop.f32.mrf.mxu0
          %v2725 = vadd.f32 %v1343, %v2724
          %2726 = vdwg.mxu0
          %2727 = vmatpush.bf16.msra.mxu0 %v1863
          %2728 = vmatpush.bf16.msra.mxu0 %v1855
          %2729 = vmatpush.bf16.msra.mxu0 %v1847
          %2730 = vmatpush.bf16.msra.mxu0 %v1839
          %2731 = vmatpush.bf16.msra.mxu0 %v1831
          %2732 = vmatpush.bf16.msra.mxu0 %v1823
          %2733 = vmatpush.bf16.msra.mxu0 %v1815
          %2734 = vmatpush.bf16.msra.mxu0 %v1807
          %2735 = vmatmul.bf16.gmra.mxu0 %v1191
          %v2736 = vpop.f32.mrf.mxu0
          %v2737 = vadd.f32 %v2688, %v2736
          %v2738 = vpop.f32.mrf.mxu0
          %v2739 = vadd.f32 %v2690, %v2738
          %2740 = vmatmul.bf16.gmra.mxu0 %v1193
          %v2741 = vpop.f32.mrf.mxu0
          %v2742 = vadd.f32 %v2693, %v2741
          %v2743 = vpop.f32.mrf.mxu0
          %v2744 = vadd.f32 %v2695, %v2743
          %2745 = vmatmul.bf16.gmra.mxu0 %v1195
          %v2746 = vpop.f32.mrf.mxu0
          %v2747 = vadd.f32 %v2698, %v2746
          %v2748 = vpop.f32.mrf.mxu0
          %v2749 = vadd.f32 %v2700, %v2748
          %2750 = vmatmul.bf16.gmra.mxu0 %v1197
          %v2751 = vpop.f32.mrf.mxu0
          %v2752 = vadd.f32 %v2703, %v2751
          %v2753 = vpop.f32.mrf.mxu0
          %v2754 = vadd.f32 %v2705, %v2753
          %2755 = vmatmul.bf16.gmra.mxu0 %v1199
          %v2756 = vpop.f32.mrf.mxu0
          %v2757 = vadd.f32 %v2708, %v2756
          %v2758 = vpop.f32.mrf.mxu0
          %v2759 = vadd.f32 %v2710, %v2758
          %2760 = vmatmul.bf16.gmra.mxu0 %v1201
          %v2761 = vpop.f32.mrf.mxu0
          %v2762 = vadd.f32 %v2713, %v2761
          %v2763 = vpop.f32.mrf.mxu0
          %v2764 = vadd.f32 %v2715, %v2763
          %2765 = vmatmul.bf16.gmra.mxu0 %v1203
          %v2766 = vpop.f32.mrf.mxu0
          %v2767 = vadd.f32 %v2718, %v2766
          %v2768 = vpop.f32.mrf.mxu0
          %v2769 = vadd.f32 %v2720, %v2768
          %2770 = vmatmul.bf16.gmra.mxu0 %v1205
          %v2771 = vpop.f32.mrf.mxu0
          %v2772 = vadd.f32 %v2723, %v2771
          %v2773 = vpop.f32.mrf.mxu0
          %v2774 = vadd.f32 %v2725, %v2773
          %2775 = vdwg.mxu0
          %v2776 = vmax.f32 %v2051, 0.0
          %v2777 = vmax.f32 %v2149, 0.0
          %v2778 = vmax.f32 %v2247, 0.0
          %v2779 = vmax.f32 %v2345, 0.0
          %v2780 = vmax.f32 %v2443, 0.0
          %v2781 = vmax.f32 %v2541, 0.0
          %v2782 = vmax.f32 %v2639, 0.0
          %v2783 = vmax.f32 %v2737, 0.0
          %v2784 = vmax.f32 %v2053, 0.0
          %v2785 = vmax.f32 %v2151, 0.0
          %v2786 = vmax.f32 %v2249, 0.0
          %v2787 = vmax.f32 %v2347, 0.0
          %v2788 = vmax.f32 %v2445, 0.0
          %v2789 = vmax.f32 %v2543, 0.0
          %v2790 = vmax.f32 %v2641, 0.0
          %v2791 = vmax.f32 %v2739, 0.0
          %v2792 = vmax.f32 %v2056, 0.0
          %v2793 = vmax.f32 %v2154, 0.0
          %v2794 = vmax.f32 %v2252, 0.0
          %v2795 = vmax.f32 %v2350, 0.0
          %v2796 = vmax.f32 %v2448, 0.0
          %v2797 = vmax.f32 %v2546, 0.0
          %v2798 = vmax.f32 %v2644, 0.0
          %v2799 = vmax.f32 %v2742, 0.0
          %v2800 = vmax.f32 %v2058, 0.0
          %v2801 = vmax.f32 %v2156, 0.0
          %v2802 = vmax.f32 %v2254, 0.0
          %v2803 = vmax.f32 %v2352, 0.0
          %v2804 = vmax.f32 %v2450, 0.0
          %v2805 = vmax.f32 %v2548, 0.0
          %v2806 = vmax.f32 %v2646, 0.0
          %v2807 = vmax.f32 %v2744, 0.0
          %v2808 = vmax.f32 %v2061, 0.0
          %v2809 = vmax.f32 %v2159, 0.0
          %v2810 = vmax.f32 %v2257, 0.0
          %v2811 = vmax.f32 %v2355, 0.0
          %v2812 = vmax.f32 %v2453, 0.0
          %v2813 = vmax.f32 %v2551, 0.0
          %v2814 = vmax.f32 %v2649, 0.0
          %v2815 = vmax.f32 %v2747, 0.0
          %v2816 = vmax.f32 %v2063, 0.0
          %v2817 = vmax.f32 %v2161, 0.0
          %v2818 = vmax.f32 %v2259, 0.0
          %v2819 = vmax.f32 %v2357, 0.0
          %v2820 = vmax.f32 %v2455, 0.0
          %v2821 = vmax.f32 %v2553, 0.0
          %v2822 = vmax.f32 %v2651, 0.0
          %v2823 = vmax.f32 %v2749, 0.0
          %v2824 = vmax.f32 %v2066, 0.0
          %v2825 = vmax.f32 %v2164, 0.0
          %v2826 = vmax.f32 %v2262, 0.0
          %v2827 = vmax.f32 %v2360, 0.0
          %v2828 = vmax.f32 %v2458, 0.0
          %v2829 = vmax.f32 %v2556, 0.0
          %v2830 = vmax.f32 %v2654, 0.0
          %v2831 = vmax.f32 %v2752, 0.0
          %v2832 = vmax.f32 %v2068, 0.0
          %v2833 = vmax.f32 %v2166, 0.0
          %v2834 = vmax.f32 %v2264, 0.0
          %v2835 = vmax.f32 %v2362, 0.0
          %v2836 = vmax.f32 %v2460, 0.0
          %v2837 = vmax.f32 %v2558, 0.0
          %v2838 = vmax.f32 %v2656, 0.0
          %v2839 = vmax.f32 %v2754, 0.0
          %v2840 = vmax.f32 %v2071, 0.0
          %v2841 = vmax.f32 %v2169, 0.0
          %v2842 = vmax.f32 %v2267, 0.0
          %v2843 = vmax.f32 %v2365, 0.0
          %v2844 = vmax.f32 %v2463, 0.0
          %v2845 = vmax.f32 %v2561, 0.0
          %v2846 = vmax.f32 %v2659, 0.0
          %v2847 = vmax.f32 %v2757, 0.0
          %v2848 = vmax.f32 %v2073, 0.0
          %v2849 = vmax.f32 %v2171, 0.0
          %v2850 = vmax.f32 %v2269, 0.0
          %v2851 = vmax.f32 %v2367, 0.0
          %v2852 = vmax.f32 %v2465, 0.0
          %v2853 = vmax.f32 %v2563, 0.0
          %v2854 = vmax.f32 %v2661, 0.0
          %v2855 = vmax.f32 %v2759, 0.0
          %v2856 = vmax.f32 %v2076, 0.0
          %v2857 = vmax.f32 %v2174, 0.0
          %v2858 = vmax.f32 %v2272, 0.0
          %v2859 = vmax.f32 %v2370, 0.0
          %v2860 = vmax.f32 %v2468, 0.0
          %v2861 = vmax.f32 %v2566, 0.0
          %v2862 = vmax.f32 %v2664, 0.0
          %v2863 = vmax.f32 %v2762, 0.0
          %v2864 = vmax.f32 %v2078, 0.0
          %v2865 = vmax.f32 %v2176, 0.0
          %v2866 = vmax.f32 %v2274, 0.0
          %v2867 = vmax.f32 %v2372, 0.0
          %v2868 = vmax.f32 %v2470, 0.0
          %v2869 = vmax.f32 %v2568, 0.0
          %v2870 = vmax.f32 %v2666, 0.0
          %v2871 = vmax.f32 %v2764, 0.0
          %v2872 = vmax.f32 %v2081, 0.0
          %v2873 = vmax.f32 %v2179, 0.0
          %v2874 = vmax.f32 %v2277, 0.0
          %v2875 = vmax.f32 %v2375, 0.0
          %v2876 = vmax.f32 %v2473, 0.0
          %v2877 = vmax.f32 %v2571, 0.0
          %v2878 = vmax.f32 %v2669, 0.0
          %v2879 = vmax.f32 %v2767, 0.0
          %v2880 = vmax.f32 %v2083, 0.0
          %v2881 = vmax.f32 %v2181, 0.0
          %v2882 = vmax.f32 %v2279, 0.0
          %v2883 = vmax.f32 %v2377, 0.0
          %v2884 = vmax.f32 %v2475, 0.0
          %v2885 = vmax.f32 %v2573, 0.0
          %v2886 = vmax.f32 %v2671, 0.0
          %v2887 = vmax.f32 %v2769, 0.0
          %v2888 = vmax.f32 %v2086, 0.0
          %v2889 = vmax.f32 %v2184, 0.0
          %v2890 = vmax.f32 %v2282, 0.0
          %v2891 = vmax.f32 %v2380, 0.0
          %v2892 = vmax.f32 %v2478, 0.0
          %v2893 = vmax.f32 %v2576, 0.0
          %v2894 = vmax.f32 %v2674, 0.0
          %v2895 = vmax.f32 %v2772, 0.0
          %v2896 = vmax.f32 %v2088, 0.0
          %v2897 = vmax.f32 %v2186, 0.0
          %v2898 = vmax.f32 %v2284, 0.0
          %v2899 = vmax.f32 %v2382, 0.0
          %v2900 = vmax.f32 %v2480, 0.0
          %v2901 = vmax.f32 %v2578, 0.0
          %v2902 = vmax.f32 %v2676, 0.0
          %v2903 = vmax.f32 %v2774, 0.0
          %v2904 = vpack.c.bf16 %v2784, %v2776
          %v2905 = vpack.c.bf16 %v2785, %v2777
          %v2906 = vpack.c.bf16 %v2786, %v2778
          %v2907 = vpack.c.bf16 %v2787, %v2779
          %v2908 = vpack.c.bf16 %v2788, %v2780
          %v2909 = vpack.c.bf16 %v2789, %v2781
          %v2910 = vpack.c.bf16 %v2790, %v2782
          %v2911 = vpack.c.bf16 %v2791, %v2783
          %v2912 = vpack.c.bf16 %v2800, %v2792
          %v2913 = vpack.c.bf16 %v2801, %v2793
          %v2914 = vpack.c.bf16 %v2802, %v2794
          %v2915 = vpack.c.bf16 %v2803, %v2795
          %v2916 = vpack.c.bf16 %v2804, %v2796
          %v2917 = vpack.c.bf16 %v2805, %v2797
          %v2918 = vpack.c.bf16 %v2806, %v2798
          %v2919 = vpack.c.bf16 %v2807, %v2799
          %v2920 = vpack.c.bf16 %v2816, %v2808
          %v2921 = vpack.c.bf16 %v2817, %v2809
          %v2922 = vpack.c.bf16 %v2818, %v2810
          %v2923 = vpack.c.bf16 %v2819, %v2811
          %v2924 = vpack.c.bf16 %v2820, %v2812
          %v2925 = vpack.c.bf16 %v2821, %v2813
          %v2926 = vpack.c.bf16 %v2822, %v2814
          %v2927 = vpack.c.bf16 %v2823, %v2815
          %v2928 = vpack.c.bf16 %v2832, %v2824
          %v2929 = vpack.c.bf16 %v2833, %v2825
          %v2930 = vpack.c.bf16 %v2834, %v2826
          %v2931 = vpack.c.bf16 %v2835, %v2827
          %v2932 = vpack.c.bf16 %v2836, %v2828
          %v2933 = vpack.c.bf16 %v2837, %v2829
          %v2934 = vpack.c.bf16 %v2838, %v2830
          %v2935 = vpack.c.bf16 %v2839, %v2831
          %v2936 = vpack.c.bf16 %v2848, %v2840
          %v2937 = vpack.c.bf16 %v2849, %v2841
          %v2938 = vpack.c.bf16 %v2850, %v2842
          %v2939 = vpack.c.bf16 %v2851, %v2843
          %v2940 = vpack.c.bf16 %v2852, %v2844
          %v2941 = vpack.c.bf16 %v2853, %v2845
          %v2942 = vpack.c.bf16 %v2854, %v2846
          %v2943 = vpack.c.bf16 %v2855, %v2847
          %v2944 = vpack.c.bf16 %v2864, %v2856
          %v2945 = vpack.c.bf16 %v2865, %v2857
          %v2946 = vpack.c.bf16 %v2866, %v2858
          %v2947 = vpack.c.bf16 %v2867, %v2859
          %v2948 = vpack.c.bf16 %v2868, %v2860
          %v2949 = vpack.c.bf16 %v2869, %v2861
          %v2950 = vpack.c.bf16 %v2870, %v2862
          %v2951 = vpack.c.bf16 %v2871, %v2863
          %v2952 = vpack.c.bf16 %v2880, %v2872
          %v2953 = vpack.c.bf16 %v2881, %v2873
          %v2954 = vpack.c.bf16 %v2882, %v2874
          %v2955 = vpack.c.bf16 %v2883, %v2875
          %v2956 = vpack.c.bf16 %v2884, %v2876
          %v2957 = vpack.c.bf16 %v2885, %v2877
          %v2958 = vpack.c.bf16 %v2886, %v2878
          %v2959 = vpack.c.bf16 %v2887, %v2879
          %v2960 = vpack.c.bf16 %v2896, %v2888
          %v2961 = vpack.c.bf16 %v2897, %v2889
          %v2962 = vpack.c.bf16 %v2898, %v2890
          %v2963 = vpack.c.bf16 %v2899, %v2891
          %v2964 = vpack.c.bf16 %v2900, %v2892
          %v2965 = vpack.c.bf16 %v2901, %v2893
          %v2966 = vpack.c.bf16 %v2902, %v2894
          %v2967 = vpack.c.bf16 %v2903, %v2895
          %v2968 = vld [vmem:[%s5] sm:$0xf]
          %v2969 = vld [vmem:[%s5 + $0x4] sm:$0xf]
          %v2970 = vld [vmem:[%s5 + $0x8] sm:$0xf]
          %v2971 = vld [vmem:[%s5 + $0xc] sm:$0xf]
          %v2972 = vld [vmem:[%s5 + $0x10] sm:$0xf]
          %v2973 = vld [vmem:[%s5 + $0x14] sm:$0xf]
          %v2974 = vld [vmem:[%s5 + $0x18] sm:$0xf]
          %v2975 = vld [vmem:[%s5 + $0x1c] sm:$0xf]
          %v2976 = vld [vmem:[%s5 + $0x20] sm:$0xf]
          %v2977 = vld [vmem:[%s5 + $0x24] sm:$0xf]
          %v2978 = vld [vmem:[%s5 + $0x28] sm:$0xf]
          %v2979 = vld [vmem:[%s5 + $0x2c] sm:$0xf]
          %v2980 = vld [vmem:[%s5 + $0x30] sm:$0xf]
          %v2981 = vld [vmem:[%s5 + $0x34] sm:$0xf]
          %v2982 = vld [vmem:[%s5 + $0x38] sm:$0xf]
          %v2983 = vld [vmem:[%s5 + $0x3c] sm:$0xf]
          %v2984 = vld [vmem:[%s5 + $0x40] sm:$0xf]
          %v2985 = vld [vmem:[%s5 + $0x44] sm:$0xf]
          %v2986 = vld [vmem:[%s5 + $0x48] sm:$0xf]
          %v2987 = vld [vmem:[%s5 + $0x4c] sm:$0xf]
          %v2988 = vld [vmem:[%s5 + $0x50] sm:$0xf]
          %v2989 = vld [vmem:[%s5 + $0x54] sm:$0xf]
          %v2990 = vld [vmem:[%s5 + $0x58] sm:$0xf]
          %v2991 = vld [vmem:[%s5 + $0x5c] sm:$0xf]
          %v2992 = vld [vmem:[%s5 + $0x60] sm:$0xf]
          %v2993 = vld [vmem:[%s5 + $0x64] sm:$0xf]
          %v2994 = vld [vmem:[%s5 + $0x68] sm:$0xf]
          %v2995 = vld [vmem:[%s5 + $0x6c] sm:$0xf]
          %v2996 = vld [vmem:[%s5 + $0x70] sm:$0xf]
          %v2997 = vld [vmem:[%s5 + $0x74] sm:$0xf]
          %v2998 = vld [vmem:[%s5 + $0x78] sm:$0xf]
          %v2999 = vld [vmem:[%s5 + $0x7c] sm:$0xf]
          %v3000 = vld [vmem:[%s5 + $0x80] sm:$0xf]
          %v3001 = vld [vmem:[%s5 + $0x84] sm:$0xf]
          %v3002 = vld [vmem:[%s5 + $0x88] sm:$0xf]
          %v3003 = vld [vmem:[%s5 + $0x8c] sm:$0xf]
          %v3004 = vld [vmem:[%s5 + $0x90] sm:$0xf]
          %v3005 = vld [vmem:[%s5 + $0x94] sm:$0xf]
          %v3006 = vld [vmem:[%s5 + $0x98] sm:$0xf]
          %v3007 = vld [vmem:[%s5 + $0x9c] sm:$0xf]
          %v3008 = vld [vmem:[%s5 + $0xa0] sm:$0xf]
          %v3009 = vld [vmem:[%s5 + $0xa4] sm:$0xf]
          %v3010 = vld [vmem:[%s5 + $0xa8] sm:$0xf]
          %v3011 = vld [vmem:[%s5 + $0xac] sm:$0xf]
          %v3012 = vld [vmem:[%s5 + $0xb0] sm:$0xf]
          %v3013 = vld [vmem:[%s5 + $0xb4] sm:$0xf]
          %v3014 = vld [vmem:[%s5 + $0xb8] sm:$0xf]
          %v3015 = vld [vmem:[%s5 + $0xbc] sm:$0xf]
          %v3016 = vld [vmem:[%s5 + $0xc0] sm:$0xf]
          %v3017 = vld [vmem:[%s5 + $0xc4] sm:$0xf]
          %v3018 = vld [vmem:[%s5 + $0xc8] sm:$0xf]
          %v3019 = vld [vmem:[%s5 + $0xcc] sm:$0xf]
          %v3020 = vld [vmem:[%s5 + $0xd0] sm:$0xf]
          %v3021 = vld [vmem:[%s5 + $0xd4] sm:$0xf]
          %v3022 = vld [vmem:[%s5 + $0xd8] sm:$0xf]
          %v3023 = vld [vmem:[%s5 + $0xdc] sm:$0xf]
          %v3024 = vld [vmem:[%s5 + $0xe0] sm:$0xf]
          %v3025 = vld [vmem:[%s5 + $0xe4] sm:$0xf]
          %v3026 = vld [vmem:[%s5 + $0xe8] sm:$0xf]
          %v3027 = vld [vmem:[%s5 + $0xec] sm:$0xf]
          %v3028 = vld [vmem:[%s5 + $0xf0] sm:$0xf]
          %v3029 = vld [vmem:[%s5 + $0xf4] sm:$0xf]
          %v3030 = vld [vmem:[%s5 + $0xf8] sm:$0xf]
          %v3031 = vld [vmem:[%s5 + $0xfc] sm:$0xf]
          %v3032 = vld [vmem:[%s5 + $0x100] sm:$0xf]
          %v3033 = vld [vmem:[%s5 + $0x104] sm:$0xf]
          %v3034 = vld [vmem:[%s5 + $0x108] sm:$0xf]
          %v3035 = vld [vmem:[%s5 + $0x10c] sm:$0xf]
          %v3036 = vld [vmem:[%s5 + $0x110] sm:$0xf]
          %v3037 = vld [vmem:[%s5 + $0x114] sm:$0xf]
          %v3038 = vld [vmem:[%s5 + $0x118] sm:$0xf]
          %v3039 = vld [vmem:[%s5 + $0x11c] sm:$0xf]
          %v3040 = vld [vmem:[%s5 + $0x120] sm:$0xf]
          %v3041 = vld [vmem:[%s5 + $0x124] sm:$0xf]
          %v3042 = vld [vmem:[%s5 + $0x128] sm:$0xf]
          %v3043 = vld [vmem:[%s5 + $0x12c] sm:$0xf]
          %v3044 = vld [vmem:[%s5 + $0x130] sm:$0xf]
          %v3045 = vld [vmem:[%s5 + $0x134] sm:$0xf]
          %v3046 = vld [vmem:[%s5 + $0x138] sm:$0xf]
          %v3047 = vld [vmem:[%s5 + $0x13c] sm:$0xf]
          %v3048 = vld [vmem:[%s5 + $0x140] sm:$0xf]
          %v3049 = vld [vmem:[%s5 + $0x144] sm:$0xf]
          %v3050 = vld [vmem:[%s5 + $0x148] sm:$0xf]
          %v3051 = vld [vmem:[%s5 + $0x14c] sm:$0xf]
          %v3052 = vld [vmem:[%s5 + $0x150] sm:$0xf]
          %v3053 = vld [vmem:[%s5 + $0x154] sm:$0xf]
          %v3054 = vld [vmem:[%s5 + $0x158] sm:$0xf]
          %v3055 = vld [vmem:[%s5 + $0x15c] sm:$0xf]
          %v3056 = vld [vmem:[%s5 + $0x160] sm:$0xf]
          %v3057 = vld [vmem:[%s5 + $0x164] sm:$0xf]
          %v3058 = vld [vmem:[%s5 + $0x168] sm:$0xf]
          %v3059 = vld [vmem:[%s5 + $0x16c] sm:$0xf]
          %v3060 = vld [vmem:[%s5 + $0x170] sm:$0xf]
          %v3061 = vld [vmem:[%s5 + $0x174] sm:$0xf]
          %v3062 = vld [vmem:[%s5 + $0x178] sm:$0xf]
          %v3063 = vld [vmem:[%s5 + $0x17c] sm:$0xf]
          %v3064 = vld [vmem:[%s5 + $0x180] sm:$0xf]
          %v3065 = vld [vmem:[%s5 + $0x184] sm:$0xf]
          %v3066 = vld [vmem:[%s5 + $0x188] sm:$0xf]
          %v3067 = vld [vmem:[%s5 + $0x18c] sm:$0xf]
          %v3068 = vld [vmem:[%s5 + $0x190] sm:$0xf]
          %v3069 = vld [vmem:[%s5 + $0x194] sm:$0xf]
          %v3070 = vld [vmem:[%s5 + $0x198] sm:$0xf]
          %v3071 = vld [vmem:[%s5 + $0x19c] sm:$0xf]
          %v3072 = vld [vmem:[%s5 + $0x1a0] sm:$0xf]
          %v3073 = vld [vmem:[%s5 + $0x1a4] sm:$0xf]
          %v3074 = vld [vmem:[%s5 + $0x1a8] sm:$0xf]
          %v3075 = vld [vmem:[%s5 + $0x1ac] sm:$0xf]
          %v3076 = vld [vmem:[%s5 + $0x1b0] sm:$0xf]
          %v3077 = vld [vmem:[%s5 + $0x1b4] sm:$0xf]
          %v3078 = vld [vmem:[%s5 + $0x1b8] sm:$0xf]
          %v3079 = vld [vmem:[%s5 + $0x1bc] sm:$0xf]
          %v3080 = vld [vmem:[%s5 + $0x1c0] sm:$0xf]
          %v3081 = vld [vmem:[%s5 + $0x1c4] sm:$0xf]
          %v3082 = vld [vmem:[%s5 + $0x1c8] sm:$0xf]
          %v3083 = vld [vmem:[%s5 + $0x1cc] sm:$0xf]
          %v3084 = vld [vmem:[%s5 + $0x1d0] sm:$0xf]
          %v3085 = vld [vmem:[%s5 + $0x1d4] sm:$0xf]
          %v3086 = vld [vmem:[%s5 + $0x1d8] sm:$0xf]
          %v3087 = vld [vmem:[%s5 + $0x1dc] sm:$0xf]
          %v3088 = vld [vmem:[%s5 + $0x1e0] sm:$0xf]
          %v3089 = vld [vmem:[%s5 + $0x1e4] sm:$0xf]
          %v3090 = vld [vmem:[%s5 + $0x1e8] sm:$0xf]
          %v3091 = vld [vmem:[%s5 + $0x1ec] sm:$0xf]
          %v3092 = vld [vmem:[%s5 + $0x1f0] sm:$0xf]
          %v3093 = vld [vmem:[%s5 + $0x1f4] sm:$0xf]
          %v3094 = vld [vmem:[%s5 + $0x1f8] sm:$0xf]
          %v3095 = vld [vmem:[%s5 + $0x1fc] sm:$0xf]
          %v3096 = vld [vmem:[#allocation8] sm:$0x1]
          %v3098 = vperm.slane %v3096, 0
          %v3228 = vunpack.c.l.b16 %v2968
          %v3229 = vunpack.c.l.b16 %v2969
          %v3230 = vunpack.c.l.b16 %v2970
          %v3231 = vunpack.c.l.b16 %v2971
          %v3232 = vunpack.c.l.b16 %v2972
          %v3233 = vunpack.c.l.b16 %v2973
          %v3234 = vunpack.c.l.b16 %v2974
          %v3235 = vunpack.c.l.b16 %v2975
          %v3236 = vunpack.c.l.b16 %v2976
          %v3237 = vunpack.c.l.b16 %v2977
          %v3238 = vunpack.c.l.b16 %v2978
          %v3239 = vunpack.c.l.b16 %v2979
          %v3240 = vunpack.c.l.b16 %v2980
          %v3241 = vunpack.c.l.b16 %v2981
          %v3242 = vunpack.c.l.b16 %v2982
          %v3243 = vunpack.c.l.b16 %v2983
          %v3244 = vunpack.c.l.b16 %v2984
          %v3245 = vunpack.c.l.b16 %v2985
          %v3246 = vunpack.c.l.b16 %v2986
          %v3247 = vunpack.c.l.b16 %v2987
          %v3248 = vunpack.c.l.b16 %v2988
          %v3249 = vunpack.c.l.b16 %v2989
          %v3250 = vunpack.c.l.b16 %v2990
          %v3251 = vunpack.c.l.b16 %v2991
          %v3252 = vunpack.c.l.b16 %v2992
          %v3253 = vunpack.c.l.b16 %v2993
          %v3254 = vunpack.c.l.b16 %v2994
          %v3255 = vunpack.c.l.b16 %v2995
          %v3256 = vunpack.c.l.b16 %v2996
          %v3257 = vunpack.c.l.b16 %v2997
          %v3258 = vunpack.c.l.b16 %v2998
          %v3259 = vunpack.c.l.b16 %v2999
          %v3260 = vunpack.c.l.b16 %v3000
          %v3261 = vunpack.c.l.b16 %v3001
          %v3262 = vunpack.c.l.b16 %v3002
          %v3263 = vunpack.c.l.b16 %v3003
          %v3264 = vunpack.c.l.b16 %v3004
          %v3265 = vunpack.c.l.b16 %v3005
          %v3266 = vunpack.c.l.b16 %v3006
          %v3267 = vunpack.c.l.b16 %v3007
          %v3268 = vunpack.c.l.b16 %v3008
          %v3269 = vunpack.c.l.b16 %v3009
          %v3270 = vunpack.c.l.b16 %v3010
          %v3271 = vunpack.c.l.b16 %v3011
          %v3272 = vunpack.c.l.b16 %v3012
          %v3273 = vunpack.c.l.b16 %v3013
          %v3274 = vunpack.c.l.b16 %v3014
          %v3275 = vunpack.c.l.b16 %v3015
          %v3276 = vunpack.c.l.b16 %v3016
          %v3277 = vunpack.c.l.b16 %v3017
          %v3278 = vunpack.c.l.b16 %v3018
          %v3279 = vunpack.c.l.b16 %v3019
          %v3280 = vunpack.c.l.b16 %v3020
          %v3281 = vunpack.c.l.b16 %v3021
          %v3282 = vunpack.c.l.b16 %v3022
          %v3283 = vunpack.c.l.b16 %v3023
          %v3284 = vunpack.c.l.b16 %v3024
          %v3285 = vunpack.c.l.b16 %v3025
          %v3286 = vunpack.c.l.b16 %v3026
          %v3287 = vunpack.c.l.b16 %v3027
          %v3288 = vunpack.c.l.b16 %v3028
          %v3289 = vunpack.c.l.b16 %v3029
          %v3290 = vunpack.c.l.b16 %v3030
          %v3291 = vunpack.c.l.b16 %v3031
          %v3292 = vunpack.c.l.b16 %v3032
          %v3293 = vunpack.c.l.b16 %v3033
          %v3294 = vunpack.c.l.b16 %v3034
          %v3295 = vunpack.c.l.b16 %v3035
          %v3296 = vunpack.c.l.b16 %v3036
          %v3297 = vunpack.c.l.b16 %v3037
          %v3298 = vunpack.c.l.b16 %v3038
          %v3299 = vunpack.c.l.b16 %v3039
          %v3300 = vunpack.c.l.b16 %v3040
          %v3301 = vunpack.c.l.b16 %v3041
          %v3302 = vunpack.c.l.b16 %v3042
          %v3303 = vunpack.c.l.b16 %v3043
          %v3304 = vunpack.c.l.b16 %v3044
          %v3305 = vunpack.c.l.b16 %v3045
          %v3306 = vunpack.c.l.b16 %v3046
          %v3307 = vunpack.c.l.b16 %v3047
          %v3308 = vunpack.c.l.b16 %v3048
          %v3309 = vunpack.c.l.b16 %v3049
          %v3310 = vunpack.c.l.b16 %v3050
          %v3311 = vunpack.c.l.b16 %v3051
          %v3312 = vunpack.c.l.b16 %v3052
          %v3313 = vunpack.c.l.b16 %v3053
          %v3314 = vunpack.c.l.b16 %v3054
          %v3315 = vunpack.c.l.b16 %v3055
          %v3316 = vunpack.c.l.b16 %v3056
          %v3317 = vunpack.c.l.b16 %v3057
          %v3318 = vunpack.c.l.b16 %v3058
          %v3319 = vunpack.c.l.b16 %v3059
          %v3320 = vunpack.c.l.b16 %v3060
          %v3321 = vunpack.c.l.b16 %v3061
          %v3322 = vunpack.c.l.b16 %v3062
          %v3323 = vunpack.c.l.b16 %v3063
          %v3324 = vunpack.c.l.b16 %v3064
          %v3325 = vunpack.c.l.b16 %v3065
          %v3326 = vunpack.c.l.b16 %v3066
          %v3327 = vunpack.c.l.b16 %v3067
          %v3328 = vunpack.c.l.b16 %v3068
          %v3329 = vunpack.c.l.b16 %v3069
          %v3330 = vunpack.c.l.b16 %v3070
          %v3331 = vunpack.c.l.b16 %v3071
          %v3332 = vunpack.c.l.b16 %v3072
          %v3333 = vunpack.c.l.b16 %v3073
          %v3334 = vunpack.c.l.b16 %v3074
          %v3335 = vunpack.c.l.b16 %v3075
          %v3336 = vunpack.c.l.b16 %v3076
          %v3337 = vunpack.c.l.b16 %v3077
          %v3338 = vunpack.c.l.b16 %v3078
          %v3339 = vunpack.c.l.b16 %v3079
          %v3340 = vunpack.c.l.b16 %v3080
          %v3341 = vunpack.c.l.b16 %v3081
          %v3342 = vunpack.c.l.b16 %v3082
          %v3343 = vunpack.c.l.b16 %v3083
          %v3344 = vunpack.c.l.b16 %v3084
          %v3345 = vunpack.c.l.b16 %v3085
          %v3346 = vunpack.c.l.b16 %v3086
          %v3347 = vunpack.c.l.b16 %v3087
          %v3348 = vunpack.c.l.b16 %v3088
          %v3349 = vunpack.c.l.b16 %v3089
          %v3350 = vunpack.c.l.b16 %v3090
          %v3351 = vunpack.c.l.b16 %v3091
          %v3352 = vunpack.c.l.b16 %v3092
          %v3353 = vunpack.c.l.b16 %v3093
          %v3354 = vunpack.c.l.b16 %v3094
          %v3355 = vunpack.c.l.b16 %v3095
          %v3356 = vpack.c.b16 %v3229, %v3228
          %v3357 = vpack.c.b16 %v3231, %v3230
          %v3358 = vpack.c.b16 %v3233, %v3232
          %v3359 = vpack.c.b16 %v3235, %v3234
          %v3360 = vpack.c.b16 %v3237, %v3236
          %v3361 = vpack.c.b16 %v3239, %v3238
          %v3362 = vpack.c.b16 %v3241, %v3240
          %v3363 = vpack.c.b16 %v3243, %v3242
          %v3364 = vpack.c.b16 %v3245, %v3244
          %v3365 = vpack.c.b16 %v3247, %v3246
          %v3366 = vpack.c.b16 %v3249, %v3248
          %v3367 = vpack.c.b16 %v3251, %v3250
          %v3368 = vpack.c.b16 %v3253, %v3252
          %v3369 = vpack.c.b16 %v3255, %v3254
          %v3370 = vpack.c.b16 %v3257, %v3256
          %v3371 = vpack.c.b16 %v3259, %v3258
          %v3372 = vpack.c.b16 %v3261, %v3260
          %v3373 = vpack.c.b16 %v3263, %v3262
          %v3374 = vpack.c.b16 %v3265, %v3264
          %v3375 = vpack.c.b16 %v3267, %v3266
          %v3376 = vpack.c.b16 %v3269, %v3268
          %v3377 = vpack.c.b16 %v3271, %v3270
          %v3378 = vpack.c.b16 %v3273, %v3272
          %v3379 = vpack.c.b16 %v3275, %v3274
          %v3380 = vpack.c.b16 %v3277, %v3276
          %v3381 = vpack.c.b16 %v3279, %v3278
          %v3382 = vpack.c.b16 %v3281, %v3280
          %v3383 = vpack.c.b16 %v3283, %v3282
          %v3384 = vpack.c.b16 %v3285, %v3284
          %v3385 = vpack.c.b16 %v3287, %v3286
          %v3386 = vpack.c.b16 %v3289, %v3288
          %v3387 = vpack.c.b16 %v3291, %v3290
          %v3388 = vpack.c.b16 %v3293, %v3292
          %v3389 = vpack.c.b16 %v3295, %v3294
          %v3390 = vpack.c.b16 %v3297, %v3296
          %v3391 = vpack.c.b16 %v3299, %v3298
          %v3392 = vpack.c.b16 %v3301, %v3300
          %v3393 = vpack.c.b16 %v3303, %v3302
          %v3394 = vpack.c.b16 %v3305, %v3304
          %v3395 = vpack.c.b16 %v3307, %v3306
          %v3396 = vpack.c.b16 %v3309, %v3308
          %v3397 = vpack.c.b16 %v3311, %v3310
          %v3398 = vpack.c.b16 %v3313, %v3312
          %v3399 = vpack.c.b16 %v3315, %v3314
          %v3400 = vpack.c.b16 %v3317, %v3316
          %v3401 = vpack.c.b16 %v3319, %v3318
          %v3402 = vpack.c.b16 %v3321, %v3320
          %v3403 = vpack.c.b16 %v3323, %v3322
          %v3404 = vpack.c.b16 %v3325, %v3324
          %v3405 = vpack.c.b16 %v3327, %v3326
          %v3406 = vpack.c.b16 %v3329, %v3328
          %v3407 = vpack.c.b16 %v3331, %v3330
          %v3408 = vpack.c.b16 %v3333, %v3332
          %v3409 = vpack.c.b16 %v3335, %v3334
          %v3410 = vpack.c.b16 %v3337, %v3336
          %v3411 = vpack.c.b16 %v3339, %v3338
          %v3412 = vpack.c.b16 %v3341, %v3340
          %v3413 = vpack.c.b16 %v3343, %v3342
          %v3414 = vpack.c.b16 %v3345, %v3344
          %v3415 = vpack.c.b16 %v3347, %v3346
          %v3416 = vpack.c.b16 %v3349, %v3348
          %v3417 = vpack.c.b16 %v3351, %v3350
          %v3418 = vpack.c.b16 %v3353, %v3352
          %v3419 = vpack.c.b16 %v3355, %v3354
          %3484 = vmatpush.bf16.msra.mxu0 %v3363
          %3485 = vmatpush.bf16.msra.mxu0 %v3362
          %3486 = vmatpush.bf16.msra.mxu0 %v3361
          %3487 = vmatpush.bf16.msra.mxu0 %v3360
          %3488 = vmatpush.bf16.msra.mxu0 %v3359
          %3489 = vmatpush.bf16.msra.mxu0 %v3358
          %3490 = vmatpush.bf16.msra.mxu0 %v3357
          %3491 = vmatpush.bf16.msra.mxu0 %v3356
          %3492 = vmatmul.bf16.gmra.mxu0 %v2904
          %v3493 = vpop.f32.mrf.mxu0
          %v3494 = vadd.f32 %v3098, %v3493
          %v3495 = vpop.f32.mrf.mxu0
          %v3496 = vadd.f32 %v3098, %v3495
          %3497 = vmatmul.bf16.gmra.mxu0 %v2912
          %v3498 = vpop.f32.mrf.mxu0
          %v3499 = vadd.f32 %v3098, %v3498
          %v3500 = vpop.f32.mrf.mxu0
          %v3501 = vadd.f32 %v3098, %v3500
          %3502 = vmatmul.bf16.gmra.mxu0 %v2920
          %v3503 = vpop.f32.mrf.mxu0
          %v3504 = vadd.f32 %v3098, %v3503
          %v3505 = vpop.f32.mrf.mxu0
          %v3506 = vadd.f32 %v3098, %v3505
          %3507 = vmatmul.bf16.gmra.mxu0 %v2928
          %v3508 = vpop.f32.mrf.mxu0
          %v3509 = vadd.f32 %v3098, %v3508
          %v3510 = vpop.f32.mrf.mxu0
          %v3511 = vadd.f32 %v3098, %v3510
          %3512 = vmatmul.bf16.gmra.mxu0 %v2936
          %v3513 = vpop.f32.mrf.mxu0
          %v3514 = vadd.f32 %v3098, %v3513
          %v3515 = vpop.f32.mrf.mxu0
          %v3516 = vadd.f32 %v3098, %v3515
          %3517 = vmatmul.bf16.gmra.mxu0 %v2944
          %v3518 = vpop.f32.mrf.mxu0
          %v3519 = vadd.f32 %v3098, %v3518
          %v3520 = vpop.f32.mrf.mxu0
          %v3521 = vadd.f32 %v3098, %v3520
          %3522 = vmatmul.bf16.gmra.mxu0 %v2952
          %v3523 = vpop.f32.mrf.mxu0
          %v3524 = vadd.f32 %v3098, %v3523
          %v3525 = vpop.f32.mrf.mxu0
          %v3526 = vadd.f32 %v3098, %v3525
          %3527 = vmatmul.bf16.gmra.mxu0 %v2960
          %v3528 = vpop.f32.mrf.mxu0
          %v3529 = vadd.f32 %v3098, %v3528
          %v3530 = vpop.f32.mrf.mxu0
          %v3531 = vadd.f32 %v3098, %v3530
          %3532 = vdwg.mxu0
          %3533 = vmatpush.bf16.msra.mxu0 %v3371
          %3534 = vmatpush.bf16.msra.mxu0 %v3370
          %3535 = vmatpush.bf16.msra.mxu0 %v3369
          %3536 = vmatpush.bf16.msra.mxu0 %v3368
          %3537 = vmatpush.bf16.msra.mxu0 %v3367
          %3538 = vmatpush.bf16.msra.mxu0 %v3366
          %3539 = vmatpush.bf16.msra.mxu0 %v3365
          %3540 = vmatpush.bf16.msra.mxu0 %v3364
          %3541 = vmatmul.bf16.gmra.mxu0 %v2905
          %v3542 = vpop.f32.mrf.mxu0
          %v3543 = vadd.f32 %v3494, %v3542
          %v3544 = vpop.f32.mrf.mxu0
          %v3545 = vadd.f32 %v3496, %v3544
          %3546 = vmatmul.bf16.gmra.mxu0 %v2913
          %v3547 = vpop.f32.mrf.mxu0
          %v3548 = vadd.f32 %v3499, %v3547
          %v3549 = vpop.f32.mrf.mxu0
          %v3550 = vadd.f32 %v3501, %v3549
          %3551 = vmatmul.bf16.gmra.mxu0 %v2921
          %v3552 = vpop.f32.mrf.mxu0
          %v3553 = vadd.f32 %v3504, %v3552
          %v3554 = vpop.f32.mrf.mxu0
          %v3555 = vadd.f32 %v3506, %v3554
          %3556 = vmatmul.bf16.gmra.mxu0 %v2929
          %v3557 = vpop.f32.mrf.mxu0
          %v3558 = vadd.f32 %v3509, %v3557
          %v3559 = vpop.f32.mrf.mxu0
          %v3560 = vadd.f32 %v3511, %v3559
          %3561 = vmatmul.bf16.gmra.mxu0 %v2937
          %v3562 = vpop.f32.mrf.mxu0
          %v3563 = vadd.f32 %v3514, %v3562
          %v3564 = vpop.f32.mrf.mxu0
          %v3565 = vadd.f32 %v3516, %v3564
          %3566 = vmatmul.bf16.gmra.mxu0 %v2945
          %v3567 = vpop.f32.mrf.mxu0
          %v3568 = vadd.f32 %v3519, %v3567
          %v3569 = vpop.f32.mrf.mxu0
          %v3570 = vadd.f32 %v3521, %v3569
          %3571 = vmatmul.bf16.gmra.mxu0 %v2953
          %v3572 = vpop.f32.mrf.mxu0
          %v3573 = vadd.f32 %v3524, %v3572
          %v3574 = vpop.f32.mrf.mxu0
          %v3575 = vadd.f32 %v3526, %v3574
          %3576 = vmatmul.bf16.gmra.mxu0 %v2961
          %v3577 = vpop.f32.mrf.mxu0
          %v3578 = vadd.f32 %v3529, %v3577
          %v3579 = vpop.f32.mrf.mxu0
          %v3580 = vadd.f32 %v3531, %v3579
          %3581 = vdwg.mxu0
          %3582 = vmatpush.bf16.msra.mxu0 %v3379
          %3583 = vmatpush.bf16.msra.mxu0 %v3378
          %3584 = vmatpush.bf16.msra.mxu0 %v3377
          %3585 = vmatpush.bf16.msra.mxu0 %v3376
          %3586 = vmatpush.bf16.msra.mxu0 %v3375
          %3587 = vmatpush.bf16.msra.mxu0 %v3374
          %3588 = vmatpush.bf16.msra.mxu0 %v3373
          %3589 = vmatpush.bf16.msra.mxu0 %v3372
          %3590 = vmatmul.bf16.gmra.mxu0 %v2906
          %v3591 = vpop.f32.mrf.mxu0
          %v3592 = vadd.f32 %v3543, %v3591
          %v3593 = vpop.f32.mrf.mxu0
          %v3594 = vadd.f32 %v3545, %v3593
          %3595 = vmatmul.bf16.gmra.mxu0 %v2914
          %v3596 = vpop.f32.mrf.mxu0
          %v3597 = vadd.f32 %v3548, %v3596
          %v3598 = vpop.f32.mrf.mxu0
          %v3599 = vadd.f32 %v3550, %v3598
          %3600 = vmatmul.bf16.gmra.mxu0 %v2922
          %v3601 = vpop.f32.mrf.mxu0
          %v3602 = vadd.f32 %v3553, %v3601
          %v3603 = vpop.f32.mrf.mxu0
          %v3604 = vadd.f32 %v3555, %v3603
          %3605 = vmatmul.bf16.gmra.mxu0 %v2930
          %v3606 = vpop.f32.mrf.mxu0
          %v3607 = vadd.f32 %v3558, %v3606
          %v3608 = vpop.f32.mrf.mxu0
          %v3609 = vadd.f32 %v3560, %v3608
          %3610 = vmatmul.bf16.gmra.mxu0 %v2938
          %v3611 = vpop.f32.mrf.mxu0
          %v3612 = vadd.f32 %v3563, %v3611
          %v3613 = vpop.f32.mrf.mxu0
          %v3614 = vadd.f32 %v3565, %v3613
          %3615 = vmatmul.bf16.gmra.mxu0 %v2946
          %v3616 = vpop.f32.mrf.mxu0
          %v3617 = vadd.f32 %v3568, %v3616
          %v3618 = vpop.f32.mrf.mxu0
          %v3619 = vadd.f32 %v3570, %v3618
          %3620 = vmatmul.bf16.gmra.mxu0 %v2954
          %v3621 = vpop.f32.mrf.mxu0
          %v3622 = vadd.f32 %v3573, %v3621
          %v3623 = vpop.f32.mrf.mxu0
          %v3624 = vadd.f32 %v3575, %v3623
          %3625 = vmatmul.bf16.gmra.mxu0 %v2962
          %v3626 = vpop.f32.mrf.mxu0
          %v3627 = vadd.f32 %v3578, %v3626
          %v3628 = vpop.f32.mrf.mxu0
          %v3629 = vadd.f32 %v3580, %v3628
          %3630 = vdwg.mxu0
          %3631 = vmatpush.bf16.msra.mxu0 %v3387
          %3632 = vmatpush.bf16.msra.mxu0 %v3386
          %3633 = vmatpush.bf16.msra.mxu0 %v3385
          %3634 = vmatpush.bf16.msra.mxu0 %v3384
          %3635 = vmatpush.bf16.msra.mxu0 %v3383
          %3636 = vmatpush.bf16.msra.mxu0 %v3382
          %3637 = vmatpush.bf16.msra.mxu0 %v3381
          %3638 = vmatpush.bf16.msra.mxu0 %v3380
          %3639 = vmatmul.bf16.gmra.mxu0 %v2907
          %v3640 = vpop.f32.mrf.mxu0
          %v3641 = vadd.f32 %v3592, %v3640
          %v3642 = vpop.f32.mrf.mxu0
          %v3643 = vadd.f32 %v3594, %v3642
          %3644 = vmatmul.bf16.gmra.mxu0 %v2915
          %v3645 = vpop.f32.mrf.mxu0
          %v3646 = vadd.f32 %v3597, %v3645
          %v3647 = vpop.f32.mrf.mxu0
          %v3648 = vadd.f32 %v3599, %v3647
          %3649 = vmatmul.bf16.gmra.mxu0 %v2923
          %v3650 = vpop.f32.mrf.mxu0
          %v3651 = vadd.f32 %v3602, %v3650
          %v3652 = vpop.f32.mrf.mxu0
          %v3653 = vadd.f32 %v3604, %v3652
          %3654 = vmatmul.bf16.gmra.mxu0 %v2931
          %v3655 = vpop.f32.mrf.mxu0
          %v3656 = vadd.f32 %v3607, %v3655
          %v3657 = vpop.f32.mrf.mxu0
          %v3658 = vadd.f32 %v3609, %v3657
          %3659 = vmatmul.bf16.gmra.mxu0 %v2939
          %v3660 = vpop.f32.mrf.mxu0
          %v3661 = vadd.f32 %v3612, %v3660
          %v3662 = vpop.f32.mrf.mxu0
          %v3663 = vadd.f32 %v3614, %v3662
          %3664 = vmatmul.bf16.gmra.mxu0 %v2947
          %v3665 = vpop.f32.mrf.mxu0
          %v3666 = vadd.f32 %v3617, %v3665
          %v3667 = vpop.f32.mrf.mxu0
          %v3668 = vadd.f32 %v3619, %v3667
          %3669 = vmatmul.bf16.gmra.mxu0 %v2955
          %v3670 = vpop.f32.mrf.mxu0
          %v3671 = vadd.f32 %v3622, %v3670
          %v3672 = vpop.f32.mrf.mxu0
          %v3673 = vadd.f32 %v3624, %v3672
          %3674 = vmatmul.bf16.gmra.mxu0 %v2963
          %v3675 = vpop.f32.mrf.mxu0
          %v3676 = vadd.f32 %v3627, %v3675
          %v3677 = vpop.f32.mrf.mxu0
          %v3678 = vadd.f32 %v3629, %v3677
          %3679 = vdwg.mxu0
          %3680 = vmatpush.bf16.msra.mxu0 %v3395
          %3681 = vmatpush.bf16.msra.mxu0 %v3394
          %3682 = vmatpush.bf16.msra.mxu0 %v3393
          %3683 = vmatpush.bf16.msra.mxu0 %v3392
          %3684 = vmatpush.bf16.msra.mxu0 %v3391
          %3685 = vmatpush.bf16.msra.mxu0 %v3390
          %3686 = vmatpush.bf16.msra.mxu0 %v3389
          %3687 = vmatpush.bf16.msra.mxu0 %v3388
          %3688 = vmatmul.bf16.gmra.mxu0 %v2908
          %v3689 = vpop.f32.mrf.mxu0
          %v3690 = vadd.f32 %v3641, %v3689
          %v3691 = vpop.f32.mrf.mxu0
          %v3692 = vadd.f32 %v3643, %v3691
          %3693 = vmatmul.bf16.gmra.mxu0 %v2916
          %v3694 = vpop.f32.mrf.mxu0
          %v3695 = vadd.f32 %v3646, %v3694
          %v3696 = vpop.f32.mrf.mxu0
          %v3697 = vadd.f32 %v3648, %v3696
          %3698 = vmatmul.bf16.gmra.mxu0 %v2924
          %v3699 = vpop.f32.mrf.mxu0
          %v3700 = vadd.f32 %v3651, %v3699
          %v3701 = vpop.f32.mrf.mxu0
          %v3702 = vadd.f32 %v3653, %v3701
          %3703 = vmatmul.bf16.gmra.mxu0 %v2932
          %v3704 = vpop.f32.mrf.mxu0
          %v3705 = vadd.f32 %v3656, %v3704
          %v3706 = vpop.f32.mrf.mxu0
          %v3707 = vadd.f32 %v3658, %v3706
          %3708 = vmatmul.bf16.gmra.mxu0 %v2940
          %v3709 = vpop.f32.mrf.mxu0
          %v3710 = vadd.f32 %v3661, %v3709
          %v3711 = vpop.f32.mrf.mxu0
          %v3712 = vadd.f32 %v3663, %v3711
          %3713 = vmatmul.bf16.gmra.mxu0 %v2948
          %v3714 = vpop.f32.mrf.mxu0
          %v3715 = vadd.f32 %v3666, %v3714
          %v3716 = vpop.f32.mrf.mxu0
          %v3717 = vadd.f32 %v3668, %v3716
          %3718 = vmatmul.bf16.gmra.mxu0 %v2956
          %v3719 = vpop.f32.mrf.mxu0
          %v3720 = vadd.f32 %v3671, %v3719
          %v3721 = vpop.f32.mrf.mxu0
          %v3722 = vadd.f32 %v3673, %v3721
          %3723 = vmatmul.bf16.gmra.mxu0 %v2964
          %v3724 = vpop.f32.mrf.mxu0
          %v3725 = vadd.f32 %v3676, %v3724
          %v3726 = vpop.f32.mrf.mxu0
          %v3727 = vadd.f32 %v3678, %v3726
          %3728 = vdwg.mxu0
          %3729 = vmatpush.bf16.msra.mxu0 %v3403
          %3730 = vmatpush.bf16.msra.mxu0 %v3402
          %3731 = vmatpush.bf16.msra.mxu0 %v3401
          %3732 = vmatpush.bf16.msra.mxu0 %v3400
          %3733 = vmatpush.bf16.msra.mxu0 %v3399
          %3734 = vmatpush.bf16.msra.mxu0 %v3398
          %3735 = vmatpush.bf16.msra.mxu0 %v3397
          %3736 = vmatpush.bf16.msra.mxu0 %v3396
          %3737 = vmatmul.bf16.gmra.mxu0 %v2909
          %v3738 = vpop.f32.mrf.mxu0
          %v3739 = vadd.f32 %v3690, %v3738
          %v3740 = vpop.f32.mrf.mxu0
          %v3741 = vadd.f32 %v3692, %v3740
          %3742 = vmatmul.bf16.gmra.mxu0 %v2917
          %v3743 = vpop.f32.mrf.mxu0
          %v3744 = vadd.f32 %v3695, %v3743
          %v3745 = vpop.f32.mrf.mxu0
          %v3746 = vadd.f32 %v3697, %v3745
          %3747 = vmatmul.bf16.gmra.mxu0 %v2925
          %v3748 = vpop.f32.mrf.mxu0
          %v3749 = vadd.f32 %v3700, %v3748
          %v3750 = vpop.f32.mrf.mxu0
          %v3751 = vadd.f32 %v3702, %v3750
          %3752 = vmatmul.bf16.gmra.mxu0 %v2933
          %v3753 = vpop.f32.mrf.mxu0
          %v3754 = vadd.f32 %v3705, %v3753
          %v3755 = vpop.f32.mrf.mxu0
          %v3756 = vadd.f32 %v3707, %v3755
          %3757 = vmatmul.bf16.gmra.mxu0 %v2941
          %v3758 = vpop.f32.mrf.mxu0
          %v3759 = vadd.f32 %v3710, %v3758
          %v3760 = vpop.f32.mrf.mxu0
          %v3761 = vadd.f32 %v3712, %v3760
          %3762 = vmatmul.bf16.gmra.mxu0 %v2949
          %v3763 = vpop.f32.mrf.mxu0
          %v3764 = vadd.f32 %v3715, %v3763
          %v3765 = vpop.f32.mrf.mxu0
          %v3766 = vadd.f32 %v3717, %v3765
          %3767 = vmatmul.bf16.gmra.mxu0 %v2957
          %v3768 = vpop.f32.mrf.mxu0
          %v3769 = vadd.f32 %v3720, %v3768
          %v3770 = vpop.f32.mrf.mxu0
          %v3771 = vadd.f32 %v3722, %v3770
          %3772 = vmatmul.bf16.gmra.mxu0 %v2965
          %v3773 = vpop.f32.mrf.mxu0
          %v3774 = vadd.f32 %v3725, %v3773
          %v3775 = vpop.f32.mrf.mxu0
          %v3776 = vadd.f32 %v3727, %v3775
          %3777 = vdwg.mxu0
          %3778 = vmatpush.bf16.msra.mxu0 %v3411
          %3779 = vmatpush.bf16.msra.mxu0 %v3410
          %3780 = vmatpush.bf16.msra.mxu0 %v3409
          %3781 = vmatpush.bf16.msra.mxu0 %v3408
          %3782 = vmatpush.bf16.msra.mxu0 %v3407
          %3783 = vmatpush.bf16.msra.mxu0 %v3406
          %3784 = vmatpush.bf16.msra.mxu0 %v3405
          %3785 = vmatpush.bf16.msra.mxu0 %v3404
          %3786 = vmatmul.bf16.gmra.mxu0 %v2910
          %v3787 = vpop.f32.mrf.mxu0
          %v3788 = vadd.f32 %v3739, %v3787
          %v3789 = vpop.f32.mrf.mxu0
          %v3790 = vadd.f32 %v3741, %v3789
          %3791 = vmatmul.bf16.gmra.mxu0 %v2918
          %v3792 = vpop.f32.mrf.mxu0
          %v3793 = vadd.f32 %v3744, %v3792
          %v3794 = vpop.f32.mrf.mxu0
          %v3795 = vadd.f32 %v3746, %v3794
          %3796 = vmatmul.bf16.gmra.mxu0 %v2926
          %v3797 = vpop.f32.mrf.mxu0
          %v3798 = vadd.f32 %v3749, %v3797
          %v3799 = vpop.f32.mrf.mxu0
          %v3800 = vadd.f32 %v3751, %v3799
          %3801 = vmatmul.bf16.gmra.mxu0 %v2934
          %v3802 = vpop.f32.mrf.mxu0
          %v3803 = vadd.f32 %v3754, %v3802
          %v3804 = vpop.f32.mrf.mxu0
          %v3805 = vadd.f32 %v3756, %v3804
          %3806 = vmatmul.bf16.gmra.mxu0 %v2942
          %v3807 = vpop.f32.mrf.mxu0
          %v3808 = vadd.f32 %v3759, %v3807
          %v3809 = vpop.f32.mrf.mxu0
          %v3810 = vadd.f32 %v3761, %v3809
          %3811 = vmatmul.bf16.gmra.mxu0 %v2950
          %v3812 = vpop.f32.mrf.mxu0
          %v3813 = vadd.f32 %v3764, %v3812
          %v3814 = vpop.f32.mrf.mxu0
          %v3815 = vadd.f32 %v3766, %v3814
          %3816 = vmatmul.bf16.gmra.mxu0 %v2958
          %v3817 = vpop.f32.mrf.mxu0
          %v3818 = vadd.f32 %v3769, %v3817
          %v3819 = vpop.f32.mrf.mxu0
          %v3820 = vadd.f32 %v3771, %v3819
          %3821 = vmatmul.bf16.gmra.mxu0 %v2966
          %v3822 = vpop.f32.mrf.mxu0
          %v3823 = vadd.f32 %v3774, %v3822
          %v3824 = vpop.f32.mrf.mxu0
          %v3825 = vadd.f32 %v3776, %v3824
          %3826 = vdwg.mxu0
          %3827 = vmatpush.bf16.msra.mxu0 %v3419
          %3828 = vmatpush.bf16.msra.mxu0 %v3418
          %3829 = vmatpush.bf16.msra.mxu0 %v3417
          %3830 = vmatpush.bf16.msra.mxu0 %v3416
          %3831 = vmatpush.bf16.msra.mxu0 %v3415
          %3832 = vmatpush.bf16.msra.mxu0 %v3414
          %3833 = vmatpush.bf16.msra.mxu0 %v3413
          %3834 = vmatpush.bf16.msra.mxu0 %v3412
          %3835 = vmatmul.bf16.gmra.mxu0 %v2911
          %v3836 = vpop.f32.mrf.mxu0
          %v3837 = vadd.f32 %v3788, %v3836
          %v3838 = vpop.f32.mrf.mxu0
          %v3839 = vadd.f32 %v3790, %v3838
          %3840 = vmatmul.bf16.gmra.mxu0 %v2919
          %v3841 = vpop.f32.mrf.mxu0
          %v3842 = vadd.f32 %v3793, %v3841
          %v3843 = vpop.f32.mrf.mxu0
          %v3844 = vadd.f32 %v3795, %v3843
          %3845 = vmatmul.bf16.gmra.mxu0 %v2927
          %v3846 = vpop.f32.mrf.mxu0
          %v3847 = vadd.f32 %v3798, %v3846
          %v3848 = vpop.f32.mrf.mxu0
          %v3849 = vadd.f32 %v3800, %v3848
          %3850 = vmatmul.bf16.gmra.mxu0 %v2935
          %v3851 = vpop.f32.mrf.mxu0
          %v3852 = vadd.f32 %v3803, %v3851
          %v3853 = vpop.f32.mrf.mxu0
          %v3854 = vadd.f32 %v3805, %v3853
          %3855 = vmatmul.bf16.gmra.mxu0 %v2943
          %v3856 = vpop.f32.mrf.mxu0
          %v3857 = vadd.f32 %v3808, %v3856
          %v3858 = vpop.f32.mrf.mxu0
          %v3859 = vadd.f32 %v3810, %v3858
          %3860 = vmatmul.bf16.gmra.mxu0 %v2951
          %v3861 = vpop.f32.mrf.mxu0
          %v3862 = vadd.f32 %v3813, %v3861
          %v3863 = vpop.f32.mrf.mxu0
          %v3864 = vadd.f32 %v3815, %v3863
          %3865 = vmatmul.bf16.gmra.mxu0 %v2959
          %v3866 = vpop.f32.mrf.mxu0
          %v3867 = vadd.f32 %v3818, %v3866
          %v3868 = vpop.f32.mrf.mxu0
          %v3869 = vadd.f32 %v3820, %v3868
          %3870 = vmatmul.bf16.gmra.mxu0 %v2967
          %v3871 = vpop.f32.mrf.mxu0
          %v3872 = vadd.f32 %v3823, %v3871
          %v3873 = vpop.f32.mrf.mxu0
          %v3874 = vadd.f32 %v3825, %v3873
          %3875 = vdwg.mxu0
          %3876 = vmax.xlane.f32.xlu0 %v3837
          %v3877 = vpop.xlane.xlu0 %3876
          %3878 = vmax.xlane.f32.xlu0 %v3839
          %v3879 = vpop.xlane.xlu0 %3878
          %3880 = vmax.xlane.f32.xlu0 %v3842
          %v3881 = vpop.xlane.xlu0 %3880
          %3882 = vmax.xlane.f32.xlu0 %v3844
          %v3883 = vpop.xlane.xlu0 %3882
          %3884 = vmax.xlane.f32.xlu0 %v3847
          %v3885 = vpop.xlane.xlu0 %3884
          %3886 = vmax.xlane.f32.xlu0 %v3849
          %v3887 = vpop.xlane.xlu0 %3886
          %3888 = vmax.xlane.f32.xlu0 %v3852
          %v3889 = vpop.xlane.xlu0 %3888
          %3890 = vmax.xlane.f32.xlu0 %v3854
          %v3891 = vpop.xlane.xlu0 %3890
          %3892 = vmax.xlane.f32.xlu0 %v3857
          %v3893 = vpop.xlane.xlu0 %3892
          %3894 = vmax.xlane.f32.xlu0 %v3859
          %v3895 = vpop.xlane.xlu0 %3894
          %3896 = vmax.xlane.f32.xlu0 %v3862
          %v3897 = vpop.xlane.xlu0 %3896
          %3898 = vmax.xlane.f32.xlu0 %v3864
          %v3899 = vpop.xlane.xlu0 %3898
          %3900 = vmax.xlane.f32.xlu0 %v3867
          %v3901 = vpop.xlane.xlu0 %3900
          %3902 = vmax.xlane.f32.xlu0 %v3869
          %v3903 = vpop.xlane.xlu0 %3902
          %3904 = vmax.xlane.f32.xlu0 %v3872
          %v3905 = vpop.xlane.xlu0 %3904
          %3906 = vmax.xlane.f32.xlu0 %v3874
          %v3907 = vpop.xlane.xlu0 %3906
          %v3908 = vsub.f32 %v3837, %v3877
          %v3909 = vsub.f32 %v3839, %v3879
          %v3910 = vsub.f32 %v3842, %v3881
          %v3911 = vsub.f32 %v3844, %v3883
          %v3912 = vsub.f32 %v3847, %v3885
          %v3913 = vsub.f32 %v3849, %v3887
          %v3914 = vsub.f32 %v3852, %v3889
          %v3915 = vsub.f32 %v3854, %v3891
          %v3916 = vsub.f32 %v3857, %v3893
          %v3917 = vsub.f32 %v3859, %v3895
          %v3918 = vsub.f32 %v3862, %v3897
          %v3919 = vsub.f32 %v3864, %v3899
          %v3920 = vsub.f32 %v3867, %v3901
          %v3921 = vsub.f32 %v3869, %v3903
          %v3922 = vsub.f32 %v3872, %v3905
          %v3923 = vsub.f32 %v3874, %v3907
          %v3924 = vmul.f32 %v3908, 1.442695
          %v3925 = vpow.pop %v3924
          %v3926 = vmul.f32 %v3909, 1.442695
          %v3927 = vpow.pop %v3926
          %v3928 = vmul.f32 %v3910, 1.442695
          %v3929 = vpow.pop %v3928
          %v3930 = vmul.f32 %v3911, 1.442695
          %v3931 = vpow.pop %v3930
          %v3932 = vmul.f32 %v3912, 1.442695
          %v3933 = vpow.pop %v3932
          %v3934 = vmul.f32 %v3913, 1.442695
          %v3935 = vpow.pop %v3934
          %v3936 = vmul.f32 %v3914, 1.442695
          %v3937 = vpow.pop %v3936
          %v3938 = vmul.f32 %v3915, 1.442695
          %v3939 = vpow.pop %v3938
          %v3940 = vmul.f32 %v3916, 1.442695
          %v3941 = vpow.pop %v3940
          %v3942 = vmul.f32 %v3917, 1.442695
          %v3943 = vpow.pop %v3942
          %v3944 = vmul.f32 %v3918, 1.442695
          %v3945 = vpow.pop %v3944
          %v3946 = vmul.f32 %v3919, 1.442695
          %v3947 = vpow.pop %v3946
          %v3948 = vmul.f32 %v3920, 1.442695
          %v3949 = vpow.pop %v3948
          %v3950 = vmul.f32 %v3921, 1.442695
          %v3951 = vpow.pop %v3950
          %v3952 = vmul.f32 %v3922, 1.442695
          %v3953 = vpow.pop %v3952
          %v3954 = vmul.f32 %v3923, 1.442695
          %v3955 = vpow.pop %v3954
          %3956 = vadd.xlane.f32.xlu0 %v3925
          %v3957 = vpop.xlane.xlu0 %3956
          %3958 = vadd.xlane.f32.xlu0 %v3927
          %v3959 = vpop.xlane.xlu0 %3958
          %3960 = vadd.xlane.f32.xlu0 %v3929
          %v3961 = vpop.xlane.xlu0 %3960
          %3962 = vadd.xlane.f32.xlu0 %v3931
          %v3963 = vpop.xlane.xlu0 %3962
          %3964 = vadd.xlane.f32.xlu0 %v3933
          %v3965 = vpop.xlane.xlu0 %3964
          %3966 = vadd.xlane.f32.xlu0 %v3935
          %v3967 = vpop.xlane.xlu0 %3966
          %3968 = vadd.xlane.f32.xlu0 %v3937
          %v3969 = vpop.xlane.xlu0 %3968
          %3970 = vadd.xlane.f32.xlu0 %v3939
          %v3971 = vpop.xlane.xlu0 %3970
          %3972 = vadd.xlane.f32.xlu0 %v3941
          %v3973 = vpop.xlane.xlu0 %3972
          %3974 = vadd.xlane.f32.xlu0 %v3943
          %v3975 = vpop.xlane.xlu0 %3974
          %3976 = vadd.xlane.f32.xlu0 %v3945
          %v3977 = vpop.xlane.xlu0 %3976
          %3978 = vadd.xlane.f32.xlu0 %v3947
          %v3979 = vpop.xlane.xlu0 %3978
          %3980 = vadd.xlane.f32.xlu0 %v3949
          %v3981 = vpop.xlane.xlu0 %3980
          %3982 = vadd.xlane.f32.xlu0 %v3951
          %v3983 = vpop.xlane.xlu0 %3982
          %3984 = vadd.xlane.f32.xlu0 %v3953
          %v3985 = vpop.xlane.xlu0 %3984
          %3986 = vadd.xlane.f32.xlu0 %v3955
          %v3987 = vpop.xlane.xlu0 %3986
          %v3988 = vlog2.pop %v3957
          %v3989 = vmul.f32 %v3988, 0.6931472
          %v3990 = vlog2.pop %v3959
          %v3991 = vmul.f32 %v3990, 0.6931472
          %v3992 = vlog2.pop %v3961
          %v3993 = vmul.f32 %v3992, 0.6931472
          %v3994 = vlog2.pop %v3963
          %v3995 = vmul.f32 %v3994, 0.6931472
          %v3996 = vlog2.pop %v3965
          %v3997 = vmul.f32 %v3996, 0.6931472
          %v3998 = vlog2.pop %v3967
          %v3999 = vmul.f32 %v3998, 0.6931472
          %v4000 = vlog2.pop %v3969
          %v4001 = vmul.f32 %v4000, 0.6931472
          %v4002 = vlog2.pop %v3971
          %v4003 = vmul.f32 %v4002, 0.6931472
          %v4004 = vlog2.pop %v3973
          %v4005 = vmul.f32 %v4004, 0.6931472
          %v4006 = vlog2.pop %v3975
          %v4007 = vmul.f32 %v4006, 0.6931472
          %v4008 = vlog2.pop %v3977
          %v4009 = vmul.f32 %v4008, 0.6931472
          %v4010 = vlog2.pop %v3979
          %v4011 = vmul.f32 %v4010, 0.6931472
          %v4012 = vlog2.pop %v3981
          %v4013 = vmul.f32 %v4012, 0.6931472
          %v4014 = vlog2.pop %v3983
          %v4015 = vmul.f32 %v4014, 0.6931472
          %v4016 = vlog2.pop %v3985
          %v4017 = vmul.f32 %v4016, 0.6931472
          %v4018 = vlog2.pop %v3987
          %v4019 = vmul.f32 %v4018, 0.6931472
          %v4020 = vsub.f32 %v3908, %v3989
          %v4021 = vsub.f32 %v3909, %v3991
          %v4022 = vsub.f32 %v3910, %v3993
          %v4023 = vsub.f32 %v3911, %v3995
          %v4024 = vsub.f32 %v3912, %v3997
          %v4025 = vsub.f32 %v3913, %v3999
          %v4026 = vsub.f32 %v3914, %v4001
          %v4027 = vsub.f32 %v3915, %v4003
          %v4028 = vsub.f32 %v3916, %v4005
          %v4029 = vsub.f32 %v3917, %v4007
          %v4030 = vsub.f32 %v3918, %v4009
          %v4031 = vsub.f32 %v3919, %v4011
          %v4032 = vsub.f32 %v3920, %v4013
          %v4033 = vsub.f32 %v3921, %v4015
          %v4034 = vsub.f32 %v3922, %v4017
          %v4035 = vsub.f32 %v3923, %v4019
          %4036 = vst [vmem:[%s466] sm:$0xff] %v4020
          %4037 = vst [vmem:[%s466 + $0x8] sm:$0xff] %v4021
          %4038 = vst [vmem:[%s466 + $0x10] sm:$0xff] %v4022
          %4039 = vst [vmem:[%s466 + $0x18] sm:$0xff] %v4023
          %4040 = vst [vmem:[%s466 + $0x20] sm:$0xff] %v4024
          %4041 = vst [vmem:[%s466 + $0x28] sm:$0xff] %v4025
          %4042 = vst [vmem:[%s466 + $0x30] sm:$0xff] %v4026
          %4043 = vst [vmem:[%s466 + $0x38] sm:$0xff] %v4027
          %4044 = vst [vmem:[%s466 + $0x40] sm:$0xff] %v4028
          %4045 = vst [vmem:[%s466 + $0x48] sm:$0xff] %v4029
          %4046 = vst [vmem:[%s466 + $0x50] sm:$0xff] %v4030
          %4047 = vst [vmem:[%s466 + $0x58] sm:$0xff] %v4031
          %4048 = vst [vmem:[%s466 + $0x60] sm:$0xff] %v4032
          %4049 = vst [vmem:[%s466 + $0x68] sm:$0xff] %v4033
          %4050 = vst [vmem:[%s466 + $0x70] sm:$0xff] %v4034
          %4051 = vst [vmem:[%s466 + $0x78] sm:$0xff] %v4035
        $region106: #{forward.1} parent=81 // pred_fallthru
          _
        %s4052 = smul.u32 16, %s26
        %p4053 = scmp.lt.s32.totalorder %s4052, 31
        %s4054 = scalar_select %p4053, %s4052, 31
        %s4055 = smul.addr %s4054, 8
        %s4056 = scalar_lea.vmem %s7, %s4055
        // Predicated region
        $region107: #{forward.1} parent=81 // pred_check
          %p4057 = pneg %p211
        $region108: #{forward.1} parent=81 // pred_check_branch
          %4059 = sbr.rel (%p4057) target = $region110
        $region109: #{forward.1} parent=81 // pred_region
          %s4060 = smul.u32 16, %s26
        $region110: #{forward.1} parent=81 // pred_fallthru
          _
      $region82: #{forward.1} parent=5 // pred_fallthru
        _
      %p4061 = scmp.le.s32.totalorder 2, %s17
      // Predicated region
      $region111: #{forward.1} parent=5 // pred_check
        %p4062 = pneg %p4061
      $region112: #{forward.1} parent=5 // pred_check_branch
        %4064 = sbr.rel (%p4062) target = $region114
      $region113: #{forward.1} parent=5 // pred_region
        %s4065 = ssub.s32 %s17, 2
        // Predicated region
        $region115: #{forward.1} parent=113 // pred_check
          %p4066 = pneg %p217
        $region116: #{forward.1} parent=113 // pred_check_branch
          %4068 = sbr.rel (%p4066) target = $region118
        $region117: #{forward.1} parent=113 // pred_region
          %s4069 = smul.u32 16, %s28
          %p4070 = scmp.lt.s32.totalorder %s4069, 31
          %s4071 = scalar_select %p4070, %s4069, 31
          %s4072 = smul.addr %s4071, 8
          %s4073 = scalar_lea.vmem %s7, %s4072
        $region118: #{forward.1} parent=113 // pred_fallthru
          _
      $region114: #{forward.1} parent=5 // pred_fallthru
        _
    $region6: #{forward.1} parent=1 // loop_footer
      %s21 = sadd.s32 1, %s17
    $region7: #{forward.1} parent=1 // loop_footer_branch
      %16 = sbr.rel target = $region3
    $region8: #{forward.1} parent=1 // loop_exit
      _
    %4074 = vsyncpa [#allocation5], 1
    %s4075 = scalar_lea.sflag [#allocation5], 1
    %4076 = vsyncpa %s4075, 1
    %4077 = vsyncpa [#allocation7], 1

</llo_original>
